<compile_context>
chip_gen: v7x
topology: tpu7x:2x2x1
jax: 0.10.0
libtpu: 0.0.40
codegen_flags: <defaults>
</compile_context>

<pallas_src>
import jax
import jax.numpy as jnp
from jax import lax
from jax.experimental import pallas as pl
from jax.experimental.pallas import tpu as pltpu


# ----------------------------- input prep (plain jnp / XLA) -------------------
def _gaussian_kernel(kernel_size: int, sigma: float) -> jnp.ndarray:
    """Same as SSM.gaussian_kernel (kernel_size=6 -> 7 taps)."""
    half = kernel_size // 2
    x = jnp.arange(-half, half + 1, dtype=jnp.float32)
    k = jnp.exp(-0.5 * sigma * x * x)
    return k / jnp.sum(k)


def _smooth_delays(delays: jnp.ndarray, gk: jnp.ndarray) -> jnp.ndarray:
    """SSM._smooth_delay: reflect right-pad by KS-1 then 1-D cross-correlation."""
    T, C = delays.shape
    KS = gk.shape[0]
    refl_idx = jnp.arange(T - 2, T - 2 - (KS - 1), -1)
    xpad = jnp.concatenate([delays, delays[refl_idx]], axis=0)     # (T+KS-1, C)
    y = jnp.zeros((T, C), jnp.float32)
    for j in range(KS):
        y = y + xpad[j:j + T, :] * gk[j]
    return y


# ------------------- Pallas kernel: batched MOSE ADM over TB steps ------------
def _make_moses_kernel(lag: int, d: int, TB: int):
    n = (lag + 1) * d          # full Gram size
    n_p = lag * d              # state size
    n_io = (lag - 1) * d       # rows of the [I | 0] block
    f32 = jnp.float32

    def kernel(sigma_ref, tau_ref, epsI_ref, io_ref, drow_ref, dcol_ref, aq_ref):
        sigma = sigma_ref[0, 0]

        # ---- MOSE Gram matrix  S[r, c, t] = exp(-0.5*sigma*(tau[r,c]+d[t,r]-d[t,c])^2) + eps*I
        arg = tau_ref[...] + drow_ref[...] - dcol_ref[...]          # (n,n,1)+(n,1,TB)-(1,n,TB) -> (n,n,TB)
        S = jnp.exp((f32(-0.5) * sigma) * arg * arg) + epsI_ref[...]

        # ---- batched right-looking Cholesky on the leading n_p columns (VPU only).
        # The symmetric rank-1 Schur update uses row j of the (symmetric) working
        # matrix instead of a transpose.  Rows/cols < j of A (and rows < j of L's
        # column j) hold stale values after step j but are provably never read
        # again, so no masking is needed.
        cvec = lax.broadcasted_iota(jnp.int32, (n_p, 1), 0)         # column index on sublanes
        A = S
        L = jnp.zeros((n, n_p, TB), f32)
        for j in range(n_p):                                        # unrolled, 12 iters
            inv_d = lax.rsqrt(jnp.maximum(A[j:j + 1, j:j + 1, :], f32(1e-20)))   # (1,1,TB)
            colj = A[:, j:j + 1, :] * inv_d                         # (n,1,TB)
            rowj = A[j:j + 1, :, :] * inv_d                         # (1,n,TB)
            L = jnp.where(cvec == j, colj, L)
            A = A - colj * rowj                                     # trailing Schur update

        # after n_p steps:  A[n_p:, n_p:] = S22 - S21 inv(S11) S12  (Schur complement)
        Cmat = f32(0.5) * A[n_p:, n_p:, :]                          # (d, d, TB)

        # ---- B = L21 @ inv(L11) = S21 @ inv(S11), column-oriented back substitution.
        # Each solved column is scattered straight into its lag-reversed slot of
        # the top d rows of A_t.
        Rhs = L[n_p:, :, :]                                         # L21, (d, n_p, TB)
        A_top = jnp.zeros((d, n_p, TB), f32)
        for m in range(n_p - 1, -1, -1):
            bm = Rhs[:, m:m + 1, :] / L[m:m + 1, m:m + 1, :]        # (d,1,TB)
            blk, off = divmod(m, d)
            tgt = (lag - 1 - blk) * d + off                         # lag-block reversal
            A_top = jnp.where(cvec == tgt, bm, A_top)
            Rhs = Rhs - bm * L[m:m + 1, :, :]                       # eliminate column m

        # ---- assemble A_t = [[B_rev], [I | 0]] and Q_t = blockdiag(C, ..., C) ----
        if n_io > 0:
            bottom = jnp.broadcast_to(io_ref[...], (n_io, n_p, TB))
            A_work = jnp.concatenate([A_top, bottom], axis=0)       # (n_p, n_p, TB)
        else:
            A_work = A_top

        zero_dd = jnp.zeros((d, d, TB), f32)
        q_rows = [jnp.concatenate([Cmat if k == i else zero_dd for k in range(lag)],
                                  axis=1)
                  for i in range(lag)]
        Q_work = jnp.concatenate(q_rows, axis=0)                    # (n_p, n_p, TB)

        # single full-tile store of the fused [A; Q] slab
        aq_ref[...] = jnp.concatenate([A_work, Q_work], axis=0)

    return kernel


def moses_ssm_forward(log_sigma, delays, *, lag: int, T: int, num_dim: int, eps: float):
    """MOSESSM.forward -> (A_all, Q_all), each (T, lag*num_dim, lag*num_dim)."""
    d = num_dim
    n = (lag + 1) * d
    n_p = lag * d
    n_io = (lag - 1) * d
    f32 = jnp.float32

    # --- parameter prep (tiny; plain XLA so it fuses with the rest of the prep) ---
    sigma = jnp.exp(log_sigma).astype(f32).reshape(1, 1)
    gk = _gaussian_kernel(6, 0.05)
    smoothed = _smooth_delays(delays.astype(f32), gk)                       # (T, d-1)
    full_delays = jnp.concatenate([jnp.zeros((T, 1), f32), smoothed], axis=1)  # (T, d)

    tau1 = jnp.arange(0, lag + 1, dtype=f32)
    tau = tau1[:, None] - tau1[None, :]                                     # (lag+1, lag+1)
    tau_arr = jnp.kron(tau, jnp.ones((d, d), f32))[:, :, None]              # (n, n, 1)
    eps_arr = (jnp.float32(eps) * jnp.eye(n, dtype=f32))[:, :, None]        # (n, n, 1)
    if n_io > 0:
        io_arr = jnp.concatenate([jnp.eye(n_io, dtype=f32),
                                  jnp.zeros((n_io, d), f32)], axis=1)[:, :, None]  # (n_io, n_p, 1)
    else:
        io_arr = jnp.zeros((1, n_p, 1), f32)                                # dummy (unused)

    # time goes on the LANE axis inside the kernel: (row/col, ..., t)
    dvec = jnp.tile(full_delays, (1, lag + 1))                              # (T, n): col r -> delay[t, r % d]
    if T <= 128:
        TB, Tp = T, T
    else:
        TB = 128
        Tp = ((T + TB - 1) // TB) * TB
    if Tp != T:
        dvec = jnp.concatenate([dvec, jnp.zeros((Tp - T, n), f32)], axis=0)
    dvecT = dvec.T                                                          # (n, Tp)
    drow = dvecT[:, None, :]                                                # (n, 1, Tp)
    dcol = dvecT[None, :, :]                                                # (1, n, Tp)

    aq = pl.pallas_call(
        _make_moses_kernel(lag, d, TB),
        out_shape=jax.ShapeDtypeStruct((2 * n_p, n_p, Tp), f32),
        grid=(Tp // TB,),
        in_specs=[
            pl.BlockSpec(memory_space=pltpu.MemorySpace.SMEM),              # sigma (1, 1)
            pl.BlockSpec((n, n, 1), lambda tb: (0, 0, 0)),                  # kron(tau, 1_dxd)
            pl.BlockSpec((n, n, 1), lambda tb: (0, 0, 0)),                  # eps * I_n
            pl.BlockSpec(io_arr.shape, lambda tb: (0, 0, 0)),               # [I | 0]
            pl.BlockSpec((n, 1, TB), lambda tb: (0, 0, tb)),                # delays, row view
            pl.BlockSpec((1, n, TB), lambda tb: (0, 0, tb)),                # delays, col view
        ],
        out_specs=pl.BlockSpec((2 * n_p, n_p, TB), lambda tb: (0, 0, tb)),  # fused [A; Q] slab
        compiler_params=pltpu.CompilerParams(dimension_semantics=("parallel",)),
    )(sigma, tau_arr, eps_arr, io_arr, drow, dcol)

    aq = jnp.transpose(aq, (2, 0, 1))[:T]                                   # (T, 2*n_p, n_p)
    return aq[:, :n_p, :], aq[:, n_p:, :]


# ------------------------------ pure-JAX reference ----------------------------
def _reference_forward(log_sigma, delays, *, lag, T, num_dim, eps):
    d = num_dim
    n_p = lag * d
    dtype = jnp.float32
    sigma = jnp.exp(log_sigma).astype(dtype)

    gk = _gaussian_kernel(6, 0.05)
    KS = gk.shape[0]
    refl_idx = jnp.arange(T - 2, T - 2 - (KS - 1), -1)
    xpad = jnp.concatenate([delays, delays[refl_idx]], axis=0)
    y = jnp.zeros((T, d - 1), dtype)
    for j in range(KS):
        y = y + xpad[j:j + T, :] * gk[j]
    full_delays = jnp.concatenate([jnp.zeros((T, 1), dtype), y], axis=1)

    tau1 = jnp.arange(0, lag + 1, dtype=dtype)
    tau = tau1[:, None] - tau1[None, :]
    arg = (tau[None, :, None, :, None]
           + full_delays[:, None, :, None, None]
           - full_delays[:, None, None, None, :])                           # (T,lag+1,d,lag+1,d)
    big = jnp.exp(-0.5 * sigma * arg * arg).reshape(T, (lag + 1) * d, (lag + 1) * d)
    S = big + eps * jnp.eye((lag + 1) * d, dtype=dtype)[None]

    S11, S12 = S[:, :n_p, :n_p], S[:, :n_p, n_p:]
    S21, S22 = S[:, n_p:, :n_p], S[:, n_p:, n_p:]
    X = jnp.linalg.solve(S11, S12)                                           # (T, n_p, d)
    B = jnp.swapaxes(X, -1, -2)                                              # == S21 @ inv(S11)
    C = 0.5 * (S22 - S21 @ X)                                                # Schur complement / 2

    A_flat = B.reshape(T, d, lag, d)[:, :, ::-1, :].reshape(T, d, n_p)
    IO = jnp.concatenate([jnp.eye((lag - 1) * d, dtype=dtype),
                          jnp.zeros(((lag - 1) * d, d), dtype)], axis=1)
    A_all = jnp.concatenate([A_flat, jnp.broadcast_to(IO, (T,) + IO.shape)], axis=1)
    Q_all = jnp.zeros((T, n_p, n_p), dtype)
    for i in range(lag):
        Q_all = Q_all.at[:, i * d:(i + 1) * d, i * d:(i + 1) * d].set(C)
    return A_all, Q_all


# ------------------------------------ main -------------------------------------
if __name__ == "__main__":
    lag, T, num_dim, eps = 3, 8, 4, 1e-2
    key = jax.random.PRNGKey(0)

    # deterministic "parameters" (module init: log_sigma = log(0.05); delays are the
    # learnable nn.Parameter — initialized here with a fixed PRNG instead of zeros)
    log_sigma = jnp.log(jnp.float32(0.05))
    delays = 0.3 * jax.random.normal(key, (T, num_dim - 1), dtype=jnp.float32)

    A_all, Q_all = moses_ssm_forward(log_sigma, delays, lag=lag, T=T,
                                     num_dim=num_dim, eps=eps)
    jax.block_until_ready((A_all, Q_all))

    A_ref, Q_ref = _reference_forward(log_sigma, delays, lag=lag, T=T,
                                      num_dim=num_dim, eps=eps)

    assert A_all.shape == (T, lag * num_dim, lag * num_dim)
    assert Q_all.shape == (T, lag * num_dim, lag * num_dim)
    assert bool(jnp.all(jnp.isfinite(A_all))) and bool(jnp.all(jnp.isfinite(Q_all)))
    assert jnp.allclose(A_all, A_ref, atol=1e-2, rtol=1e-2)
    assert jnp.allclose(Q_all, Q_ref, atol=1e-2, rtol=1e-2)
    print("KERNEL_OK")
</pallas_src>

<mosaic_0001>
module attributes {stable_mosaic.version = 11 : i64} {
  func.func @kernel(%arg0: i32, %arg1: memref<1x1xf32, #tpu.memory_space<smem>>, %arg2: memref<16x16x1xf32, #tpu.memory_space<vmem>>, %arg3: memref<16x16x1xf32, #tpu.memory_space<vmem>>, %arg4: memref<8x12x1xf32, #tpu.memory_space<vmem>>, %arg5: memref<16x1x8xf32, #tpu.memory_space<vmem>>, %arg6: memref<1x16x8xf32, #tpu.memory_space<vmem>>, %arg7: memref<24x12x8xf32, #tpu.memory_space<vmem>>) attributes {dimension_semantics = [#tpu.dimension_semantics<parallel>], iteration_bounds = array<i64: 1>, scalar_prefetch = 0 : i64, scratch_operands = 0 : i64, tpu.core_type = #tpu.core_type<tc>, window_params = [{transform_indices = @transform_0, window_bounds = array<i64: 1, 1>}, {pipeline_mode = #tpu.pipeline_mode<synchronous>, transform_indices = @transform_1, window_bounds = array<i64: 16, 16, 1>}, {pipeline_mode = #tpu.pipeline_mode<synchronous>, transform_indices = @transform_2, window_bounds = array<i64: 16, 16, 1>}, {pipeline_mode = #tpu.pipeline_mode<synchronous>, transform_indices = @transform_3, window_bounds = array<i64: 8, 12, 1>}, {transform_indices = @transform_4, window_bounds = array<i64: 16, 1, 8>}, {transform_indices = @transform_5, window_bounds = array<i64: 1, 16, 8>}, {transform_indices = @transform_6, window_bounds = array<i64: 24, 12, 8>}]} {
    %c0 = arith.constant 0 : index
    %c0_0 = arith.constant 0 : index
    %0 = memref.load %arg1[%c0, %c0_0] : memref<1x1xf32, #tpu.memory_space<smem>>
    %c0_1 = arith.constant 0 : index
    %c0_2 = arith.constant 0 : index
    %c0_3 = arith.constant 0 : index
    %1 = vector.load %arg2[%c0_1, %c0_2, %c0_3] : memref<16x16x1xf32, #tpu.memory_space<vmem>>, vector<16x16x1xf32>
    %c0_4 = arith.constant 0 : index
    %c0_5 = arith.constant 0 : index
    %c0_6 = arith.constant 0 : index
    %2 = vector.load %arg5[%c0_4, %c0_5, %c0_6] : memref<16x1x8xf32, #tpu.memory_space<vmem>>, vector<16x1x8xf32>
    %3 = vector.broadcast %1 : vector<16x16x1xf32> to vector<16x16x8xf32>
    %4 = vector.broadcast %2 : vector<16x1x8xf32> to vector<16x16x8xf32>
    %5 = arith.addf %3, %4 : vector<16x16x8xf32>
    %c0_7 = arith.constant 0 : index
    %c0_8 = arith.constant 0 : index
    %c0_9 = arith.constant 0 : index
    %6 = vector.load %arg6[%c0_7, %c0_8, %c0_9] : memref<1x16x8xf32, #tpu.memory_space<vmem>>, vector<1x16x8xf32>
    %7 = vector.broadcast %6 : vector<1x16x8xf32> to vector<16x16x8xf32>
    %8 = arith.subf %5, %7 : vector<16x16x8xf32>
    %cst = arith.constant -5.000000e-01 : f32
    %9 = arith.mulf %cst, %0 : f32
    %10 = vector.broadcast %9 : f32 to vector<16x16x8xf32>
    %11 = arith.mulf %10, %8 : vector<16x16x8xf32>
    %12 = arith.mulf %11, %8 : vector<16x16x8xf32>
    %13 = math.exp %12 : vector<16x16x8xf32>
    %c0_10 = arith.constant 0 : index
    %c0_11 = arith.constant 0 : index
    %c0_12 = arith.constant 0 : index
    %14 = vector.load %arg3[%c0_10, %c0_11, %c0_12] : memref<16x16x1xf32, #tpu.memory_space<vmem>>, vector<16x16x1xf32>
    %15 = vector.broadcast %14 : vector<16x16x1xf32> to vector<16x16x8xf32>
    %16 = arith.addf %13, %15 : vector<16x16x8xf32>
    %17 = tpu.iota {dimensions = array<i32: 0>} : vector<12x1xi32>
    %cst_13 = arith.constant 0.000000e+00 : f32
    %18 = vector.broadcast %cst_13 : f32 to vector<16x12x8xf32>
    %19 = vector.extract_strided_slice %16 {offsets = [0, 0, 0], sizes = [1, 1, 8], strides = [1, 1, 1]} : vector<16x16x8xf32> to vector<1x1x8xf32>
    %cst_14 = arith.constant 9.99999968E-21 : f32
    %20 = vector.broadcast %cst_14 : f32 to vector<1x1x8xf32>
    %21 = arith.maximumf %19, %20 : vector<1x1x8xf32>
    %22 = math.rsqrt %21 : vector<1x1x8xf32>
    %23 = vector.extract_strided_slice %16 {offsets = [0, 0, 0], sizes = [16, 1, 8], strides = [1, 1, 1]} : vector<16x16x8xf32> to vector<16x1x8xf32>
    %24 = vector.broadcast %22 : vector<1x1x8xf32> to vector<16x1x8xf32>
    %25 = arith.mulf %23, %24 : vector<16x1x8xf32>
    %26 = vector.extract_strided_slice %16 {offsets = [0, 0, 0], sizes = [1, 16, 8], strides = [1, 1, 1]} : vector<16x16x8xf32> to vector<1x16x8xf32>
    %27 = vector.broadcast %22 : vector<1x1x8xf32> to vector<1x16x8xf32>
    %28 = arith.mulf %26, %27 : vector<1x16x8xf32>
    %c0_i32 = arith.constant 0 : i32
    %29 = vector.broadcast %c0_i32 : i32 to vector<12x1xi32>
    %30 = arith.cmpi eq, %17, %29 : vector<12x1xi32>
    %31 = vector.shape_cast %30 : vector<12x1xi1> to vector<1x12x1xi1>
    %32 = vector.broadcast %31 : vector<1x12x1xi1> to vector<16x12x8xi1>
    %33 = vector.shape_cast %25 : vector<16x1x8xf32> to vector<16x1x8xf32>
    %34 = vector.broadcast %33 : vector<16x1x8xf32> to vector<16x12x8xf32>
    %35 = arith.select %32, %34, %18 : vector<16x12x8xi1>, vector<16x12x8xf32>
    %36 = vector.broadcast %25 : vector<16x1x8xf32> to vector<16x16x8xf32>
    %37 = vector.broadcast %28 : vector<1x16x8xf32> to vector<16x16x8xf32>
    %38 = arith.mulf %36, %37 : vector<16x16x8xf32>
    %39 = arith.subf %16, %38 : vector<16x16x8xf32>
    %40 = vector.extract_strided_slice %39 {offsets = [1, 1, 0], sizes = [1, 1, 8], strides = [1, 1, 1]} : vector<16x16x8xf32> to vector<1x1x8xf32>
    %cst_15 = arith.constant 9.99999968E-21 : f32
    %41 = vector.broadcast %cst_15 : f32 to vector<1x1x8xf32>
    %42 = arith.maximumf %40, %41 : vector<1x1x8xf32>
    %43 = math.rsqrt %42 : vector<1x1x8xf32>
    %44 = vector.extract_strided_slice %39 {offsets = [0, 1, 0], sizes = [16, 1, 8], strides = [1, 1, 1]} : vector<16x16x8xf32> to vector<16x1x8xf32>
    %45 = vector.broadcast %43 : vector<1x1x8xf32> to vector<16x1x8xf32>
    %46 = arith.mulf %44, %45 : vector<16x1x8xf32>
    %47 = vector.extract_strided_slice %39 {offsets = [1, 0, 0], sizes = [1, 16, 8], strides = [1, 1, 1]} : vector<16x16x8xf32> to vector<1x16x8xf32>
    %48 = vector.broadcast %43 : vector<1x1x8xf32> to vector<1x16x8xf32>
    %49 = arith.mulf %47, %48 : vector<1x16x8xf32>
    %c1_i32 = arith.constant 1 : i32
    %50 = vector.broadcast %c1_i32 : i32 to vector<12x1xi32>
    %51 = arith.cmpi eq, %17, %50 : vector<12x1xi32>
    %52 = vector.shape_cast %51 : vector<12x1xi1> to vector<1x12x1xi1>
    %53 = vector.broadcast %52 : vector<1x12x1xi1> to vector<16x12x8xi1>
    %54 = vector.shape_cast %46 : vector<16x1x8xf32> to vector<16x1x8xf32>
    %55 = vector.broadcast %54 : vector<16x1x8xf32> to vector<16x12x8xf32>
    %56 = arith.select %53, %55, %35 : vector<16x12x8xi1>, vector<16x12x8xf32>
    %57 = vector.broadcast %46 : vector<16x1x8xf32> to vector<16x16x8xf32>
    %58 = vector.broadcast %49 : vector<1x16x8xf32> to vector<16x16x8xf32>
    %59 = arith.mulf %57, %58 : vector<16x16x8xf32>
    %60 = arith.subf %39, %59 : vector<16x16x8xf32>
    %61 = vector.extract_strided_slice %60 {offsets = [2, 2, 0], sizes = [1, 1, 8], strides = [1, 1, 1]} : vector<16x16x8xf32> to vector<1x1x8xf32>
    %cst_16 = arith.constant 9.99999968E-21 : f32
    %62 = vector.broadcast %cst_16 : f32 to vector<1x1x8xf32>
    %63 = arith.maximumf %61, %62 : vector<1x1x8xf32>
    %64 = math.rsqrt %63 : vector<1x1x8xf32>
    %65 = vector.extract_strided_slice %60 {offsets = [0, 2, 0], sizes = [16, 1, 8], strides = [1, 1, 1]} : vector<16x16x8xf32> to vector<16x1x8xf32>
    %66 = vector.broadcast %64 : vector<1x1x8xf32> to vector<16x1x8xf32>
    %67 = arith.mulf %65, %66 : vector<16x1x8xf32>
    %68 = vector.extract_strided_slice %60 {offsets = [2, 0, 0], sizes = [1, 16, 8], strides = [1, 1, 1]} : vector<16x16x8xf32> to vector<1x16x8xf32>
    %69 = vector.broadcast %64 : vector<1x1x8xf32> to vector<1x16x8xf32>
    %70 = arith.mulf %68, %69 : vector<1x16x8xf32>
    %c2_i32 = arith.constant 2 : i32
    %71 = vector.broadcast %c2_i32 : i32 to vector<12x1xi32>
    %72 = arith.cmpi eq, %17, %71 : vector<12x1xi32>
    %73 = vector.shape_cast %72 : vector<12x1xi1> to vector<1x12x1xi1>
    %74 = vector.broadcast %73 : vector<1x12x1xi1> to vector<16x12x8xi1>
    %75 = vector.shape_cast %67 : vector<16x1x8xf32> to vector<16x1x8xf32>
    %76 = vector.broadcast %75 : vector<16x1x8xf32> to vector<16x12x8xf32>
    %77 = arith.select %74, %76, %56 : vector<16x12x8xi1>, vector<16x12x8xf32>
    %78 = vector.broadcast %67 : vector<16x1x8xf32> to vector<16x16x8xf32>
    %79 = vector.broadcast %70 : vector<1x16x8xf32> to vector<16x16x8xf32>
    %80 = arith.mulf %78, %79 : vector<16x16x8xf32>
    %81 = arith.subf %60, %80 : vector<16x16x8xf32>
    %82 = vector.extract_strided_slice %81 {offsets = [3, 3, 0], sizes = [1, 1, 8], strides = [1, 1, 1]} : vector<16x16x8xf32> to vector<1x1x8xf32>
    %cst_17 = arith.constant 9.99999968E-21 : f32
    %83 = vector.broadcast %cst_17 : f32 to vector<1x1x8xf32>
    %84 = arith.maximumf %82, %83 : vector<1x1x8xf32>
    %85 = math.rsqrt %84 : vector<1x1x8xf32>
    %86 = vector.extract_strided_slice %81 {offsets = [0, 3, 0], sizes = [16, 1, 8], strides = [1, 1, 1]} : vector<16x16x8xf32> to vector<16x1x8xf32>
    %87 = vector.broadcast %85 : vector<1x1x8xf32> to vector<16x1x8xf32>
    %88 = arith.mulf %86, %87 : vector<16x1x8xf32>
    %89 = vector.extract_strided_slice %81 {offsets = [3, 0, 0], sizes = [1, 16, 8], strides = [1, 1, 1]} : vector<16x16x8xf32> to vector<1x16x8xf32>
    %90 = vector.broadcast %85 : vector<1x1x8xf32> to vector<1x16x8xf32>
    %91 = arith.mulf %89, %90 : vector<1x16x8xf32>
    %c3_i32 = arith.constant 3 : i32
    %92 = vector.broadcast %c3_i32 : i32 to vector<12x1xi32>
    %93 = arith.cmpi eq, %17, %92 : vector<12x1xi32>
    %94 = vector.shape_cast %93 : vector<12x1xi1> to vector<1x12x1xi1>
    %95 = vector.broadcast %94 : vector<1x12x1xi1> to vector<16x12x8xi1>
    %96 = vector.shape_cast %88 : vector<16x1x8xf32> to vector<16x1x8xf32>
    %97 = vector.broadcast %96 : vector<16x1x8xf32> to vector<16x12x8xf32>
    %98 = arith.select %95, %97, %77 : vector<16x12x8xi1>, vector<16x12x8xf32>
    %99 = vector.broadcast %88 : vector<16x1x8xf32> to vector<16x16x8xf32>
    %100 = vector.broadcast %91 : vector<1x16x8xf32> to vector<16x16x8xf32>
    %101 = arith.mulf %99, %100 : vector<16x16x8xf32>
    %102 = arith.subf %81, %101 : vector<16x16x8xf32>
    %103 = vector.extract_strided_slice %102 {offsets = [4, 4, 0], sizes = [1, 1, 8], strides = [1, 1, 1]} : vector<16x16x8xf32> to vector<1x1x8xf32>
    %cst_18 = arith.constant 9.99999968E-21 : f32
    %104 = vector.broadcast %cst_18 : f32 to vector<1x1x8xf32>
    %105 = arith.maximumf %103, %104 : vector<1x1x8xf32>
    %106 = math.rsqrt %105 : vector<1x1x8xf32>
    %107 = vector.extract_strided_slice %102 {offsets = [0, 4, 0], sizes = [16, 1, 8], strides = [1, 1, 1]} : vector<16x16x8xf32> to vector<16x1x8xf32>
    %108 = vector.broadcast %106 : vector<1x1x8xf32> to vector<16x1x8xf32>
    %109 = arith.mulf %107, %108 : vector<16x1x8xf32>
    %110 = vector.extract_strided_slice %102 {offsets = [4, 0, 0], sizes = [1, 16, 8], strides = [1, 1, 1]} : vector<16x16x8xf32> to vector<1x16x8xf32>
    %111 = vector.broadcast %106 : vector<1x1x8xf32> to vector<1x16x8xf32>
    %112 = arith.mulf %110, %111 : vector<1x16x8xf32>
    %c4_i32 = arith.constant 4 : i32
    %113 = vector.broadcast %c4_i32 : i32 to vector<12x1xi32>
    %114 = arith.cmpi eq, %17, %113 : vector<12x1xi32>
    %115 = vector.shape_cast %114 : vector<12x1xi1> to vector<1x12x1xi1>
    %116 = vector.broadcast %115 : vector<1x12x1xi1> to vector<16x12x8xi1>
    %117 = vector.shape_cast %109 : vector<16x1x8xf32> to vector<16x1x8xf32>
    %118 = vector.broadcast %117 : vector<16x1x8xf32> to vector<16x12x8xf32>
    %119 = arith.select %116, %118, %98 : vector<16x12x8xi1>, vector<16x12x8xf32>
    %120 = vector.broadcast %109 : vector<16x1x8xf32> to vector<16x16x8xf32>
    %121 = vector.broadcast %112 : vector<1x16x8xf32> to vector<16x16x8xf32>
    %122 = arith.mulf %120, %121 : vector<16x16x8xf32>
    %123 = arith.subf %102, %122 : vector<16x16x8xf32>
    %124 = vector.extract_strided_slice %123 {offsets = [5, 5, 0], sizes = [1, 1, 8], strides = [1, 1, 1]} : vector<16x16x8xf32> to vector<1x1x8xf32>
    %cst_19 = arith.constant 9.99999968E-21 : f32
    %125 = vector.broadcast %cst_19 : f32 to vector<1x1x8xf32>
    %126 = arith.maximumf %124, %125 : vector<1x1x8xf32>
    %127 = math.rsqrt %126 : vector<1x1x8xf32>
    %128 = vector.extract_strided_slice %123 {offsets = [0, 5, 0], sizes = [16, 1, 8], strides = [1, 1, 1]} : vector<16x16x8xf32> to vector<16x1x8xf32>
    %129 = vector.broadcast %127 : vector<1x1x8xf32> to vector<16x1x8xf32>
    %130 = arith.mulf %128, %129 : vector<16x1x8xf32>
    %131 = vector.extract_strided_slice %123 {offsets = [5, 0, 0], sizes = [1, 16, 8], strides = [1, 1, 1]} : vector<16x16x8xf32> to vector<1x16x8xf32>
    %132 = vector.broadcast %127 : vector<1x1x8xf32> to vector<1x16x8xf32>
    %133 = arith.mulf %131, %132 : vector<1x16x8xf32>
    %c5_i32 = arith.constant 5 : i32
    %134 = vector.broadcast %c5_i32 : i32 to vector<12x1xi32>
    %135 = arith.cmpi eq, %17, %134 : vector<12x1xi32>
    %136 = vector.shape_cast %135 : vector<12x1xi1> to vector<1x12x1xi1>
    %137 = vector.broadcast %136 : vector<1x12x1xi1> to vector<16x12x8xi1>
    %138 = vector.shape_cast %130 : vector<16x1x8xf32> to vector<16x1x8xf32>
    %139 = vector.broadcast %138 : vector<16x1x8xf32> to vector<16x12x8xf32>
    %140 = arith.select %137, %139, %119 : vector<16x12x8xi1>, vector<16x12x8xf32>
    %141 = vector.broadcast %130 : vector<16x1x8xf32> to vector<16x16x8xf32>
    %142 = vector.broadcast %133 : vector<1x16x8xf32> to vector<16x16x8xf32>
    %143 = arith.mulf %141, %142 : vector<16x16x8xf32>
    %144 = arith.subf %123, %143 : vector<16x16x8xf32>
    %145 = vector.extract_strided_slice %144 {offsets = [6, 6, 0], sizes = [1, 1, 8], strides = [1, 1, 1]} : vector<16x16x8xf32> to vector<1x1x8xf32>
    %cst_20 = arith.constant 9.99999968E-21 : f32
    %146 = vector.broadcast %cst_20 : f32 to vector<1x1x8xf32>
    %147 = arith.maximumf %145, %146 : vector<1x1x8xf32>
    %148 = math.rsqrt %147 : vector<1x1x8xf32>
    %149 = vector.extract_strided_slice %144 {offsets = [0, 6, 0], sizes = [16, 1, 8], strides = [1, 1, 1]} : vector<16x16x8xf32> to vector<16x1x8xf32>
    %150 = vector.broadcast %148 : vector<1x1x8xf32> to vector<16x1x8xf32>
    %151 = arith.mulf %149, %150 : vector<16x1x8xf32>
    %152 = vector.extract_strided_slice %144 {offsets = [6, 0, 0], sizes = [1, 16, 8], strides = [1, 1, 1]} : vector<16x16x8xf32> to vector<1x16x8xf32>
    %153 = vector.broadcast %148 : vector<1x1x8xf32> to vector<1x16x8xf32>
    %154 = arith.mulf %152, %153 : vector<1x16x8xf32>
    %c6_i32 = arith.constant 6 : i32
    %155 = vector.broadcast %c6_i32 : i32 to vector<12x1xi32>
    %156 = arith.cmpi eq, %17, %155 : vector<12x1xi32>
    %157 = vector.shape_cast %156 : vector<12x1xi1> to vector<1x12x1xi1>
    %158 = vector.broadcast %157 : vector<1x12x1xi1> to vector<16x12x8xi1>
    %159 = vector.shape_cast %151 : vector<16x1x8xf32> to vector<16x1x8xf32>
    %160 = vector.broadcast %159 : vector<16x1x8xf32> to vector<16x12x8xf32>
    %161 = arith.select %158, %160, %140 : vector<16x12x8xi1>, vector<16x12x8xf32>
    %162 = vector.broadcast %151 : vector<16x1x8xf32> to vector<16x16x8xf32>
    %163 = vector.broadcast %154 : vector<1x16x8xf32> to vector<16x16x8xf32>
    %164 = arith.mulf %162, %163 : vector<16x16x8xf32>
    %165 = arith.subf %144, %164 : vector<16x16x8xf32>
    %166 = vector.extract_strided_slice %165 {offsets = [7, 7, 0], sizes = [1, 1, 8], strides = [1, 1, 1]} : vector<16x16x8xf32> to vector<1x1x8xf32>
    %cst_21 = arith.constant 9.99999968E-21 : f32
    %167 = vector.broadcast %cst_21 : f32 to vector<1x1x8xf32>
    %168 = arith.maximumf %166, %167 : vector<1x1x8xf32>
    %169 = math.rsqrt %168 : vector<1x1x8xf32>
    %170 = vector.extract_strided_slice %165 {offsets = [0, 7, 0], sizes = [16, 1, 8], strides = [1, 1, 1]} : vector<16x16x8xf32> to vector<16x1x8xf32>
    %171 = vector.broadcast %169 : vector<1x1x8xf32> to vector<16x1x8xf32>
    %172 = arith.mulf %170, %171 : vector<16x1x8xf32>
    %173 = vector.extract_strided_slice %165 {offsets = [7, 0, 0], sizes = [1, 16, 8], strides = [1, 1, 1]} : vector<16x16x8xf32> to vector<1x16x8xf32>
    %174 = vector.broadcast %169 : vector<1x1x8xf32> to vector<1x16x8xf32>
    %175 = arith.mulf %173, %174 : vector<1x16x8xf32>
    %c7_i32 = arith.constant 7 : i32
    %176 = vector.broadcast %c7_i32 : i32 to vector<12x1xi32>
    %177 = arith.cmpi eq, %17, %176 : vector<12x1xi32>
    %178 = vector.shape_cast %177 : vector<12x1xi1> to vector<1x12x1xi1>
    %179 = vector.broadcast %178 : vector<1x12x1xi1> to vector<16x12x8xi1>
    %180 = vector.shape_cast %172 : vector<16x1x8xf32> to vector<16x1x8xf32>
    %181 = vector.broadcast %180 : vector<16x1x8xf32> to vector<16x12x8xf32>
    %182 = arith.select %179, %181, %161 : vector<16x12x8xi1>, vector<16x12x8xf32>
    %183 = vector.broadcast %172 : vector<16x1x8xf32> to vector<16x16x8xf32>
    %184 = vector.broadcast %175 : vector<1x16x8xf32> to vector<16x16x8xf32>
    %185 = arith.mulf %183, %184 : vector<16x16x8xf32>
    %186 = arith.subf %165, %185 : vector<16x16x8xf32>
    %187 = vector.extract_strided_slice %186 {offsets = [8, 8, 0], sizes = [1, 1, 8], strides = [1, 1, 1]} : vector<16x16x8xf32> to vector<1x1x8xf32>
    %cst_22 = arith.constant 9.99999968E-21 : f32
    %188 = vector.broadcast %cst_22 : f32 to vector<1x1x8xf32>
    %189 = arith.maximumf %187, %188 : vector<1x1x8xf32>
    %190 = math.rsqrt %189 : vector<1x1x8xf32>
    %191 = vector.extract_strided_slice %186 {offsets = [0, 8, 0], sizes = [16, 1, 8], strides = [1, 1, 1]} : vector<16x16x8xf32> to vector<16x1x8xf32>
    %192 = vector.broadcast %190 : vector<1x1x8xf32> to vector<16x1x8xf32>
    %193 = arith.mulf %191, %192 : vector<16x1x8xf32>
    %194 = vector.extract_strided_slice %186 {offsets = [8, 0, 0], sizes = [1, 16, 8], strides = [1, 1, 1]} : vector<16x16x8xf32> to vector<1x16x8xf32>
    %195 = vector.broadcast %190 : vector<1x1x8xf32> to vector<1x16x8xf32>
    %196 = arith.mulf %194, %195 : vector<1x16x8xf32>
    %c8_i32 = arith.constant 8 : i32
    %197 = vector.broadcast %c8_i32 : i32 to vector<12x1xi32>
    %198 = arith.cmpi eq, %17, %197 : vector<12x1xi32>
    %199 = vector.shape_cast %198 : vector<12x1xi1> to vector<1x12x1xi1>
    %200 = vector.broadcast %199 : vector<1x12x1xi1> to vector<16x12x8xi1>
    %201 = vector.shape_cast %193 : vector<16x1x8xf32> to vector<16x1x8xf32>
    %202 = vector.broadcast %201 : vector<16x1x8xf32> to vector<16x12x8xf32>
    %203 = arith.select %200, %202, %182 : vector<16x12x8xi1>, vector<16x12x8xf32>
    %204 = vector.broadcast %193 : vector<16x1x8xf32> to vector<16x16x8xf32>
    %205 = vector.broadcast %196 : vector<1x16x8xf32> to vector<16x16x8xf32>
    %206 = arith.mulf %204, %205 : vector<16x16x8xf32>
    %207 = arith.subf %186, %206 : vector<16x16x8xf32>
    %208 = vector.extract_strided_slice %207 {offsets = [9, 9, 0], sizes = [1, 1, 8], strides = [1, 1, 1]} : vector<16x16x8xf32> to vector<1x1x8xf32>
    %cst_23 = arith.constant 9.99999968E-21 : f32
    %209 = vector.broadcast %cst_23 : f32 to vector<1x1x8xf32>
    %210 = arith.maximumf %208, %209 : vector<1x1x8xf32>
    %211 = math.rsqrt %210 : vector<1x1x8xf32>
    %212 = vector.extract_strided_slice %207 {offsets = [0, 9, 0], sizes = [16, 1, 8], strides = [1, 1, 1]} : vector<16x16x8xf32> to vector<16x1x8xf32>
    %213 = vector.broadcast %211 : vector<1x1x8xf32> to vector<16x1x8xf32>
    %214 = arith.mulf %212, %213 : vector<16x1x8xf32>
    %215 = vector.extract_strided_slice %207 {offsets = [9, 0, 0], sizes = [1, 16, 8], strides = [1, 1, 1]} : vector<16x16x8xf32> to vector<1x16x8xf32>
    %216 = vector.broadcast %211 : vector<1x1x8xf32> to vector<1x16x8xf32>
    %217 = arith.mulf %215, %216 : vector<1x16x8xf32>
    %c9_i32 = arith.constant 9 : i32
    %218 = vector.broadcast %c9_i32 : i32 to vector<12x1xi32>
    %219 = arith.cmpi eq, %17, %218 : vector<12x1xi32>
    %220 = vector.shape_cast %219 : vector<12x1xi1> to vector<1x12x1xi1>
    %221 = vector.broadcast %220 : vector<1x12x1xi1> to vector<16x12x8xi1>
    %222 = vector.shape_cast %214 : vector<16x1x8xf32> to vector<16x1x8xf32>
    %223 = vector.broadcast %222 : vector<16x1x8xf32> to vector<16x12x8xf32>
    %224 = arith.select %221, %223, %203 : vector<16x12x8xi1>, vector<16x12x8xf32>
    %225 = vector.broadcast %214 : vector<16x1x8xf32> to vector<16x16x8xf32>
    %226 = vector.broadcast %217 : vector<1x16x8xf32> to vector<16x16x8xf32>
    %227 = arith.mulf %225, %226 : vector<16x16x8xf32>
    %228 = arith.subf %207, %227 : vector<16x16x8xf32>
    %229 = vector.extract_strided_slice %228 {offsets = [10, 10, 0], sizes = [1, 1, 8], strides = [1, 1, 1]} : vector<16x16x8xf32> to vector<1x1x8xf32>
    %cst_24 = arith.constant 9.99999968E-21 : f32
    %230 = vector.broadcast %cst_24 : f32 to vector<1x1x8xf32>
    %231 = arith.maximumf %229, %230 : vector<1x1x8xf32>
    %232 = math.rsqrt %231 : vector<1x1x8xf32>
    %233 = vector.extract_strided_slice %228 {offsets = [0, 10, 0], sizes = [16, 1, 8], strides = [1, 1, 1]} : vector<16x16x8xf32> to vector<16x1x8xf32>
    %234 = vector.broadcast %232 : vector<1x1x8xf32> to vector<16x1x8xf32>
    %235 = arith.mulf %233, %234 : vector<16x1x8xf32>
    %236 = vector.extract_strided_slice %228 {offsets = [10, 0, 0], sizes = [1, 16, 8], strides = [1, 1, 1]} : vector<16x16x8xf32> to vector<1x16x8xf32>
    %237 = vector.broadcast %232 : vector<1x1x8xf32> to vector<1x16x8xf32>
    %238 = arith.mulf %236, %237 : vector<1x16x8xf32>
    %c10_i32 = arith.constant 10 : i32
    %239 = vector.broadcast %c10_i32 : i32 to vector<12x1xi32>
    %240 = arith.cmpi eq, %17, %239 : vector<12x1xi32>
    %241 = vector.shape_cast %240 : vector<12x1xi1> to vector<1x12x1xi1>
    %242 = vector.broadcast %241 : vector<1x12x1xi1> to vector<16x12x8xi1>
    %243 = vector.shape_cast %235 : vector<16x1x8xf32> to vector<16x1x8xf32>
    %244 = vector.broadcast %243 : vector<16x1x8xf32> to vector<16x12x8xf32>
    %245 = arith.select %242, %244, %224 : vector<16x12x8xi1>, vector<16x12x8xf32>
    %246 = vector.broadcast %235 : vector<16x1x8xf32> to vector<16x16x8xf32>
    %247 = vector.broadcast %238 : vector<1x16x8xf32> to vector<16x16x8xf32>
    %248 = arith.mulf %246, %247 : vector<16x16x8xf32>
    %249 = arith.subf %228, %248 : vector<16x16x8xf32>
    %250 = vector.extract_strided_slice %249 {offsets = [11, 11, 0], sizes = [1, 1, 8], strides = [1, 1, 1]} : vector<16x16x8xf32> to vector<1x1x8xf32>
    %cst_25 = arith.constant 9.99999968E-21 : f32
    %251 = vector.broadcast %cst_25 : f32 to vector<1x1x8xf32>
    %252 = arith.maximumf %250, %251 : vector<1x1x8xf32>
    %253 = math.rsqrt %252 : vector<1x1x8xf32>
    %254 = vector.extract_strided_slice %249 {offsets = [0, 11, 0], sizes = [16, 1, 8], strides = [1, 1, 1]} : vector<16x16x8xf32> to vector<16x1x8xf32>
    %255 = vector.broadcast %253 : vector<1x1x8xf32> to vector<16x1x8xf32>
    %256 = arith.mulf %254, %255 : vector<16x1x8xf32>
    %257 = vector.extract_strided_slice %249 {offsets = [11, 0, 0], sizes = [1, 16, 8], strides = [1, 1, 1]} : vector<16x16x8xf32> to vector<1x16x8xf32>
    %258 = vector.broadcast %253 : vector<1x1x8xf32> to vector<1x16x8xf32>
    %259 = arith.mulf %257, %258 : vector<1x16x8xf32>
    %c11_i32 = arith.constant 11 : i32
    %260 = vector.broadcast %c11_i32 : i32 to vector<12x1xi32>
    %261 = arith.cmpi eq, %17, %260 : vector<12x1xi32>
    %262 = vector.shape_cast %261 : vector<12x1xi1> to vector<1x12x1xi1>
    %263 = vector.broadcast %262 : vector<1x12x1xi1> to vector<16x12x8xi1>
    %264 = vector.shape_cast %256 : vector<16x1x8xf32> to vector<16x1x8xf32>
    %265 = vector.broadcast %264 : vector<16x1x8xf32> to vector<16x12x8xf32>
    %266 = arith.select %263, %265, %245 : vector<16x12x8xi1>, vector<16x12x8xf32>
    %267 = vector.broadcast %256 : vector<16x1x8xf32> to vector<16x16x8xf32>
    %268 = vector.broadcast %259 : vector<1x16x8xf32> to vector<16x16x8xf32>
    %269 = arith.mulf %267, %268 : vector<16x16x8xf32>
    %270 = arith.subf %249, %269 : vector<16x16x8xf32>
    %271 = vector.extract_strided_slice %270 {offsets = [12, 12, 0], sizes = [4, 4, 8], strides = [1, 1, 1]} : vector<16x16x8xf32> to vector<4x4x8xf32>
    %cst_26 = arith.constant 5.000000e-01 : f32
    %272 = vector.broadcast %cst_26 : f32 to vector<4x4x8xf32>
    %273 = arith.mulf %272, %271 : vector<4x4x8xf32>
    %274 = vector.extract_strided_slice %266 {offsets = [12, 0, 0], sizes = [4, 12, 8], strides = [1, 1, 1]} : vector<16x12x8xf32> to vector<4x12x8xf32>
    %cst_27 = arith.constant 0.000000e+00 : f32
    %275 = vector.broadcast %cst_27 : f32 to vector<4x12x8xf32>
    %276 = vector.extract_strided_slice %274 {offsets = [0, 11, 0], sizes = [4, 1, 8], strides = [1, 1, 1]} : vector<4x12x8xf32> to vector<4x1x8xf32>
    %277 = vector.extract_strided_slice %266 {offsets = [11, 11, 0], sizes = [1, 1, 8], strides = [1, 1, 1]} : vector<16x12x8xf32> to vector<1x1x8xf32>
    %278 = vector.broadcast %277 : vector<1x1x8xf32> to vector<4x1x8xf32>
    %279 = arith.divf %276, %278 : vector<4x1x8xf32>
    %c3_i32_28 = arith.constant 3 : i32
    %280 = vector.broadcast %c3_i32_28 : i32 to vector<12x1xi32>
    %281 = arith.cmpi eq, %17, %280 : vector<12x1xi32>
    %282 = vector.shape_cast %281 : vector<12x1xi1> to vector<1x12x1xi1>
    %283 = vector.broadcast %282 : vector<1x12x1xi1> to vector<4x12x8xi1>
    %284 = vector.shape_cast %279 : vector<4x1x8xf32> to vector<4x1x8xf32>
    %285 = vector.broadcast %284 : vector<4x1x8xf32> to vector<4x12x8xf32>
    %286 = arith.select %283, %285, %275 : vector<4x12x8xi1>, vector<4x12x8xf32>
    %287 = vector.extract_strided_slice %266 {offsets = [11, 0, 0], sizes = [1, 12, 8], strides = [1, 1, 1]} : vector<16x12x8xf32> to vector<1x12x8xf32>
    %288 = vector.broadcast %279 : vector<4x1x8xf32> to vector<4x12x8xf32>
    %289 = vector.broadcast %287 : vector<1x12x8xf32> to vector<4x12x8xf32>
    %290 = arith.mulf %288, %289 : vector<4x12x8xf32>
    %291 = arith.subf %274, %290 : vector<4x12x8xf32>
    %292 = vector.extract_strided_slice %291 {offsets = [0, 10, 0], sizes = [4, 1, 8], strides = [1, 1, 1]} : vector<4x12x8xf32> to vector<4x1x8xf32>
    %293 = vector.extract_strided_slice %266 {offsets = [10, 10, 0], sizes = [1, 1, 8], strides = [1, 1, 1]} : vector<16x12x8xf32> to vector<1x1x8xf32>
    %294 = vector.broadcast %293 : vector<1x1x8xf32> to vector<4x1x8xf32>
    %295 = arith.divf %292, %294 : vector<4x1x8xf32>
    %c2_i32_29 = arith.constant 2 : i32
    %296 = vector.broadcast %c2_i32_29 : i32 to vector<12x1xi32>
    %297 = arith.cmpi eq, %17, %296 : vector<12x1xi32>
    %298 = vector.shape_cast %297 : vector<12x1xi1> to vector<1x12x1xi1>
    %299 = vector.broadcast %298 : vector<1x12x1xi1> to vector<4x12x8xi1>
    %300 = vector.shape_cast %295 : vector<4x1x8xf32> to vector<4x1x8xf32>
    %301 = vector.broadcast %300 : vector<4x1x8xf32> to vector<4x12x8xf32>
    %302 = arith.select %299, %301, %286 : vector<4x12x8xi1>, vector<4x12x8xf32>
    %303 = vector.extract_strided_slice %266 {offsets = [10, 0, 0], sizes = [1, 12, 8], strides = [1, 1, 1]} : vector<16x12x8xf32> to vector<1x12x8xf32>
    %304 = vector.broadcast %295 : vector<4x1x8xf32> to vector<4x12x8xf32>
    %305 = vector.broadcast %303 : vector<1x12x8xf32> to vector<4x12x8xf32>
    %306 = arith.mulf %304, %305 : vector<4x12x8xf32>
    %307 = arith.subf %291, %306 : vector<4x12x8xf32>
    %308 = vector.extract_strided_slice %307 {offsets = [0, 9, 0], sizes = [4, 1, 8], strides = [1, 1, 1]} : vector<4x12x8xf32> to vector<4x1x8xf32>
    %309 = vector.extract_strided_slice %266 {offsets = [9, 9, 0], sizes = [1, 1, 8], strides = [1, 1, 1]} : vector<16x12x8xf32> to vector<1x1x8xf32>
    %310 = vector.broadcast %309 : vector<1x1x8xf32> to vector<4x1x8xf32>
    %311 = arith.divf %308, %310 : vector<4x1x8xf32>
    %c1_i32_30 = arith.constant 1 : i32
    %312 = vector.broadcast %c1_i32_30 : i32 to vector<12x1xi32>
    %313 = arith.cmpi eq, %17, %312 : vector<12x1xi32>
    %314 = vector.shape_cast %313 : vector<12x1xi1> to vector<1x12x1xi1>
    %315 = vector.broadcast %314 : vector<1x12x1xi1> to vector<4x12x8xi1>
    %316 = vector.shape_cast %311 : vector<4x1x8xf32> to vector<4x1x8xf32>
    %317 = vector.broadcast %316 : vector<4x1x8xf32> to vector<4x12x8xf32>
    %318 = arith.select %315, %317, %302 : vector<4x12x8xi1>, vector<4x12x8xf32>
    %319 = vector.extract_strided_slice %266 {offsets = [9, 0, 0], sizes = [1, 12, 8], strides = [1, 1, 1]} : vector<16x12x8xf32> to vector<1x12x8xf32>
    %320 = vector.broadcast %311 : vector<4x1x8xf32> to vector<4x12x8xf32>
    %321 = vector.broadcast %319 : vector<1x12x8xf32> to vector<4x12x8xf32>
    %322 = arith.mulf %320, %321 : vector<4x12x8xf32>
    %323 = arith.subf %307, %322 : vector<4x12x8xf32>
    %324 = vector.extract_strided_slice %323 {offsets = [0, 8, 0], sizes = [4, 1, 8], strides = [1, 1, 1]} : vector<4x12x8xf32> to vector<4x1x8xf32>
    %325 = vector.extract_strided_slice %266 {offsets = [8, 8, 0], sizes = [1, 1, 8], strides = [1, 1, 1]} : vector<16x12x8xf32> to vector<1x1x8xf32>
    %326 = vector.broadcast %325 : vector<1x1x8xf32> to vector<4x1x8xf32>
    %327 = arith.divf %324, %326 : vector<4x1x8xf32>
    %c0_i32_31 = arith.constant 0 : i32
    %328 = vector.broadcast %c0_i32_31 : i32 to vector<12x1xi32>
    %329 = arith.cmpi eq, %17, %328 : vector<12x1xi32>
    %330 = vector.shape_cast %329 : vector<12x1xi1> to vector<1x12x1xi1>
    %331 = vector.broadcast %330 : vector<1x12x1xi1> to vector<4x12x8xi1>
    %332 = vector.shape_cast %327 : vector<4x1x8xf32> to vector<4x1x8xf32>
    %333 = vector.broadcast %332 : vector<4x1x8xf32> to vector<4x12x8xf32>
    %334 = arith.select %331, %333, %318 : vector<4x12x8xi1>, vector<4x12x8xf32>
    %335 = vector.extract_strided_slice %266 {offsets = [8, 0, 0], sizes = [1, 12, 8], strides = [1, 1, 1]} : vector<16x12x8xf32> to vector<1x12x8xf32>
    %336 = vector.broadcast %327 : vector<4x1x8xf32> to vector<4x12x8xf32>
    %337 = vector.broadcast %335 : vector<1x12x8xf32> to vector<4x12x8xf32>
    %338 = arith.mulf %336, %337 : vector<4x12x8xf32>
    %339 = arith.subf %323, %338 : vector<4x12x8xf32>
    %340 = vector.extract_strided_slice %339 {offsets = [0, 7, 0], sizes = [4, 1, 8], strides = [1, 1, 1]} : vector<4x12x8xf32> to vector<4x1x8xf32>
    %341 = vector.extract_strided_slice %266 {offsets = [7, 7, 0], sizes = [1, 1, 8], strides = [1, 1, 1]} : vector<16x12x8xf32> to vector<1x1x8xf32>
    %342 = vector.broadcast %341 : vector<1x1x8xf32> to vector<4x1x8xf32>
    %343 = arith.divf %340, %342 : vector<4x1x8xf32>
    %c7_i32_32 = arith.constant 7 : i32
    %344 = vector.broadcast %c7_i32_32 : i32 to vector<12x1xi32>
    %345 = arith.cmpi eq, %17, %344 : vector<12x1xi32>
    %346 = vector.shape_cast %345 : vector<12x1xi1> to vector<1x12x1xi1>
    %347 = vector.broadcast %346 : vector<1x12x1xi1> to vector<4x12x8xi1>
    %348 = vector.shape_cast %343 : vector<4x1x8xf32> to vector<4x1x8xf32>
    %349 = vector.broadcast %348 : vector<4x1x8xf32> to vector<4x12x8xf32>
    %350 = arith.select %347, %349, %334 : vector<4x12x8xi1>, vector<4x12x8xf32>
    %351 = vector.extract_strided_slice %266 {offsets = [7, 0, 0], sizes = [1, 12, 8], strides = [1, 1, 1]} : vector<16x12x8xf32> to vector<1x12x8xf32>
    %352 = vector.broadcast %343 : vector<4x1x8xf32> to vector<4x12x8xf32>
    %353 = vector.broadcast %351 : vector<1x12x8xf32> to vector<4x12x8xf32>
    %354 = arith.mulf %352, %353 : vector<4x12x8xf32>
    %355 = arith.subf %339, %354 : vector<4x12x8xf32>
    %356 = vector.extract_strided_slice %355 {offsets = [0, 6, 0], sizes = [4, 1, 8], strides = [1, 1, 1]} : vector<4x12x8xf32> to vector<4x1x8xf32>
    %357 = vector.extract_strided_slice %266 {offsets = [6, 6, 0], sizes = [1, 1, 8], strides = [1, 1, 1]} : vector<16x12x8xf32> to vector<1x1x8xf32>
    %358 = vector.broadcast %357 : vector<1x1x8xf32> to vector<4x1x8xf32>
    %359 = arith.divf %356, %358 : vector<4x1x8xf32>
    %c6_i32_33 = arith.constant 6 : i32
    %360 = vector.broadcast %c6_i32_33 : i32 to vector<12x1xi32>
    %361 = arith.cmpi eq, %17, %360 : vector<12x1xi32>
    %362 = vector.shape_cast %361 : vector<12x1xi1> to vector<1x12x1xi1>
    %363 = vector.broadcast %362 : vector<1x12x1xi1> to vector<4x12x8xi1>
    %364 = vector.shape_cast %359 : vector<4x1x8xf32> to vector<4x1x8xf32>
    %365 = vector.broadcast %364 : vector<4x1x8xf32> to vector<4x12x8xf32>
    %366 = arith.select %363, %365, %350 : vector<4x12x8xi1>, vector<4x12x8xf32>
    %367 = vector.extract_strided_slice %266 {offsets = [6, 0, 0], sizes = [1, 12, 8], strides = [1, 1, 1]} : vector<16x12x8xf32> to vector<1x12x8xf32>
    %368 = vector.broadcast %359 : vector<4x1x8xf32> to vector<4x12x8xf32>
    %369 = vector.broadcast %367 : vector<1x12x8xf32> to vector<4x12x8xf32>
    %370 = arith.mulf %368, %369 : vector<4x12x8xf32>
    %371 = arith.subf %355, %370 : vector<4x12x8xf32>
    %372 = vector.extract_strided_slice %371 {offsets = [0, 5, 0], sizes = [4, 1, 8], strides = [1, 1, 1]} : vector<4x12x8xf32> to vector<4x1x8xf32>
    %373 = vector.extract_strided_slice %266 {offsets = [5, 5, 0], sizes = [1, 1, 8], strides = [1, 1, 1]} : vector<16x12x8xf32> to vector<1x1x8xf32>
    %374 = vector.broadcast %373 : vector<1x1x8xf32> to vector<4x1x8xf32>
    %375 = arith.divf %372, %374 : vector<4x1x8xf32>
    %c5_i32_34 = arith.constant 5 : i32
    %376 = vector.broadcast %c5_i32_34 : i32 to vector<12x1xi32>
    %377 = arith.cmpi eq, %17, %376 : vector<12x1xi32>
    %378 = vector.shape_cast %377 : vector<12x1xi1> to vector<1x12x1xi1>
    %379 = vector.broadcast %378 : vector<1x12x1xi1> to vector<4x12x8xi1>
    %380 = vector.shape_cast %375 : vector<4x1x8xf32> to vector<4x1x8xf32>
    %381 = vector.broadcast %380 : vector<4x1x8xf32> to vector<4x12x8xf32>
    %382 = arith.select %379, %381, %366 : vector<4x12x8xi1>, vector<4x12x8xf32>
    %383 = vector.extract_strided_slice %266 {offsets = [5, 0, 0], sizes = [1, 12, 8], strides = [1, 1, 1]} : vector<16x12x8xf32> to vector<1x12x8xf32>
    %384 = vector.broadcast %375 : vector<4x1x8xf32> to vector<4x12x8xf32>
    %385 = vector.broadcast %383 : vector<1x12x8xf32> to vector<4x12x8xf32>
    %386 = arith.mulf %384, %385 : vector<4x12x8xf32>
    %387 = arith.subf %371, %386 : vector<4x12x8xf32>
    %388 = vector.extract_strided_slice %387 {offsets = [0, 4, 0], sizes = [4, 1, 8], strides = [1, 1, 1]} : vector<4x12x8xf32> to vector<4x1x8xf32>
    %389 = vector.extract_strided_slice %266 {offsets = [4, 4, 0], sizes = [1, 1, 8], strides = [1, 1, 1]} : vector<16x12x8xf32> to vector<1x1x8xf32>
    %390 = vector.broadcast %389 : vector<1x1x8xf32> to vector<4x1x8xf32>
    %391 = arith.divf %388, %390 : vector<4x1x8xf32>
    %c4_i32_35 = arith.constant 4 : i32
    %392 = vector.broadcast %c4_i32_35 : i32 to vector<12x1xi32>
    %393 = arith.cmpi eq, %17, %392 : vector<12x1xi32>
    %394 = vector.shape_cast %393 : vector<12x1xi1> to vector<1x12x1xi1>
    %395 = vector.broadcast %394 : vector<1x12x1xi1> to vector<4x12x8xi1>
    %396 = vector.shape_cast %391 : vector<4x1x8xf32> to vector<4x1x8xf32>
    %397 = vector.broadcast %396 : vector<4x1x8xf32> to vector<4x12x8xf32>
    %398 = arith.select %395, %397, %382 : vector<4x12x8xi1>, vector<4x12x8xf32>
    %399 = vector.extract_strided_slice %266 {offsets = [4, 0, 0], sizes = [1, 12, 8], strides = [1, 1, 1]} : vector<16x12x8xf32> to vector<1x12x8xf32>
    %400 = vector.broadcast %391 : vector<4x1x8xf32> to vector<4x12x8xf32>
    %401 = vector.broadcast %399 : vector<1x12x8xf32> to vector<4x12x8xf32>
    %402 = arith.mulf %400, %401 : vector<4x12x8xf32>
    %403 = arith.subf %387, %402 : vector<4x12x8xf32>
    %404 = vector.extract_strided_slice %403 {offsets = [0, 3, 0], sizes = [4, 1, 8], strides = [1, 1, 1]} : vector<4x12x8xf32> to vector<4x1x8xf32>
    %405 = vector.extract_strided_slice %266 {offsets = [3, 3, 0], sizes = [1, 1, 8], strides = [1, 1, 1]} : vector<16x12x8xf32> to vector<1x1x8xf32>
    %406 = vector.broadcast %405 : vector<1x1x8xf32> to vector<4x1x8xf32>
    %407 = arith.divf %404, %406 : vector<4x1x8xf32>
    %c11_i32_36 = arith.constant 11 : i32
    %408 = vector.broadcast %c11_i32_36 : i32 to vector<12x1xi32>
    %409 = arith.cmpi eq, %17, %408 : vector<12x1xi32>
    %410 = vector.shape_cast %409 : vector<12x1xi1> to vector<1x12x1xi1>
    %411 = vector.broadcast %410 : vector<1x12x1xi1> to vector<4x12x8xi1>
    %412 = vector.shape_cast %407 : vector<4x1x8xf32> to vector<4x1x8xf32>
    %413 = vector.broadcast %412 : vector<4x1x8xf32> to vector<4x12x8xf32>
    %414 = arith.select %411, %413, %398 : vector<4x12x8xi1>, vector<4x12x8xf32>
    %415 = vector.extract_strided_slice %266 {offsets = [3, 0, 0], sizes = [1, 12, 8], strides = [1, 1, 1]} : vector<16x12x8xf32> to vector<1x12x8xf32>
    %416 = vector.broadcast %407 : vector<4x1x8xf32> to vector<4x12x8xf32>
    %417 = vector.broadcast %415 : vector<1x12x8xf32> to vector<4x12x8xf32>
    %418 = arith.mulf %416, %417 : vector<4x12x8xf32>
    %419 = arith.subf %403, %418 : vector<4x12x8xf32>
    %420 = vector.extract_strided_slice %419 {offsets = [0, 2, 0], sizes = [4, 1, 8], strides = [1, 1, 1]} : vector<4x12x8xf32> to vector<4x1x8xf32>
    %421 = vector.extract_strided_slice %266 {offsets = [2, 2, 0], sizes = [1, 1, 8], strides = [1, 1, 1]} : vector<16x12x8xf32> to vector<1x1x8xf32>
    %422 = vector.broadcast %421 : vector<1x1x8xf32> to vector<4x1x8xf32>
    %423 = arith.divf %420, %422 : vector<4x1x8xf32>
    %c10_i32_37 = arith.constant 10 : i32
    %424 = vector.broadcast %c10_i32_37 : i32 to vector<12x1xi32>
    %425 = arith.cmpi eq, %17, %424 : vector<12x1xi32>
    %426 = vector.shape_cast %425 : vector<12x1xi1> to vector<1x12x1xi1>
    %427 = vector.broadcast %426 : vector<1x12x1xi1> to vector<4x12x8xi1>
    %428 = vector.shape_cast %423 : vector<4x1x8xf32> to vector<4x1x8xf32>
    %429 = vector.broadcast %428 : vector<4x1x8xf32> to vector<4x12x8xf32>
    %430 = arith.select %427, %429, %414 : vector<4x12x8xi1>, vector<4x12x8xf32>
    %431 = vector.extract_strided_slice %266 {offsets = [2, 0, 0], sizes = [1, 12, 8], strides = [1, 1, 1]} : vector<16x12x8xf32> to vector<1x12x8xf32>
    %432 = vector.broadcast %423 : vector<4x1x8xf32> to vector<4x12x8xf32>
    %433 = vector.broadcast %431 : vector<1x12x8xf32> to vector<4x12x8xf32>
    %434 = arith.mulf %432, %433 : vector<4x12x8xf32>
    %435 = arith.subf %419, %434 : vector<4x12x8xf32>
    %436 = vector.extract_strided_slice %435 {offsets = [0, 1, 0], sizes = [4, 1, 8], strides = [1, 1, 1]} : vector<4x12x8xf32> to vector<4x1x8xf32>
    %437 = vector.extract_strided_slice %266 {offsets = [1, 1, 0], sizes = [1, 1, 8], strides = [1, 1, 1]} : vector<16x12x8xf32> to vector<1x1x8xf32>
    %438 = vector.broadcast %437 : vector<1x1x8xf32> to vector<4x1x8xf32>
    %439 = arith.divf %436, %438 : vector<4x1x8xf32>
    %c9_i32_38 = arith.constant 9 : i32
    %440 = vector.broadcast %c9_i32_38 : i32 to vector<12x1xi32>
    %441 = arith.cmpi eq, %17, %440 : vector<12x1xi32>
    %442 = vector.shape_cast %441 : vector<12x1xi1> to vector<1x12x1xi1>
    %443 = vector.broadcast %442 : vector<1x12x1xi1> to vector<4x12x8xi1>
    %444 = vector.shape_cast %439 : vector<4x1x8xf32> to vector<4x1x8xf32>
    %445 = vector.broadcast %444 : vector<4x1x8xf32> to vector<4x12x8xf32>
    %446 = arith.select %443, %445, %430 : vector<4x12x8xi1>, vector<4x12x8xf32>
    %447 = vector.extract_strided_slice %266 {offsets = [1, 0, 0], sizes = [1, 12, 8], strides = [1, 1, 1]} : vector<16x12x8xf32> to vector<1x12x8xf32>
    %448 = vector.broadcast %439 : vector<4x1x8xf32> to vector<4x12x8xf32>
    %449 = vector.broadcast %447 : vector<1x12x8xf32> to vector<4x12x8xf32>
    %450 = arith.mulf %448, %449 : vector<4x12x8xf32>
    %451 = arith.subf %435, %450 : vector<4x12x8xf32>
    %452 = vector.extract_strided_slice %451 {offsets = [0, 0, 0], sizes = [4, 1, 8], strides = [1, 1, 1]} : vector<4x12x8xf32> to vector<4x1x8xf32>
    %453 = vector.extract_strided_slice %266 {offsets = [0, 0, 0], sizes = [1, 1, 8], strides = [1, 1, 1]} : vector<16x12x8xf32> to vector<1x1x8xf32>
    %454 = vector.broadcast %453 : vector<1x1x8xf32> to vector<4x1x8xf32>
    %455 = arith.divf %452, %454 : vector<4x1x8xf32>
    %c8_i32_39 = arith.constant 8 : i32
    %456 = vector.broadcast %c8_i32_39 : i32 to vector<12x1xi32>
    %457 = arith.cmpi eq, %17, %456 : vector<12x1xi32>
    %458 = vector.shape_cast %457 : vector<12x1xi1> to vector<1x12x1xi1>
    %459 = vector.broadcast %458 : vector<1x12x1xi1> to vector<4x12x8xi1>
    %460 = vector.shape_cast %455 : vector<4x1x8xf32> to vector<4x1x8xf32>
    %461 = vector.broadcast %460 : vector<4x1x8xf32> to vector<4x12x8xf32>
    %462 = arith.select %459, %461, %446 : vector<4x12x8xi1>, vector<4x12x8xf32>
    %c0_40 = arith.constant 0 : index
    %c0_41 = arith.constant 0 : index
    %c0_42 = arith.constant 0 : index
    %463 = vector.load %arg4[%c0_40, %c0_41, %c0_42] : memref<8x12x1xf32, #tpu.memory_space<vmem>>, vector<8x12x1xf32>
    %464 = vector.shape_cast %463 : vector<8x12x1xf32> to vector<8x12x1xf32>
    %465 = vector.broadcast %464 : vector<8x12x1xf32> to vector<8x12x8xf32>
    %466 = tpu.concatenate %462, %465 in 0 : vector<4x12x8xf32>, vector<8x12x8xf32> -> vector<12x12x8xf32>
    %cst_43 = arith.constant 0.000000e+00 : f32
    %467 = vector.broadcast %cst_43 : f32 to vector<4x4x8xf32>
    %468 = tpu.concatenate %273, %467, %467 in 1 : vector<4x4x8xf32>, vector<4x4x8xf32>, vector<4x4x8xf32> -> vector<4x12x8xf32>
    %469 = tpu.concatenate %467, %273, %467 in 1 : vector<4x4x8xf32>, vector<4x4x8xf32>, vector<4x4x8xf32> -> vector<4x12x8xf32>
    %470 = tpu.concatenate %467, %467, %273 in 1 : vector<4x4x8xf32>, vector<4x4x8xf32>, vector<4x4x8xf32> -> vector<4x12x8xf32>
    %471 = tpu.concatenate %468, %469, %470 in 0 : vector<4x12x8xf32>, vector<4x12x8xf32>, vector<4x12x8xf32> -> vector<12x12x8xf32>
    %472 = tpu.concatenate %466, %471 in 0 : vector<12x12x8xf32>, vector<12x12x8xf32> -> vector<24x12x8xf32>
    %c0_44 = arith.constant 0 : index
    %c0_45 = arith.constant 0 : index
    %c0_46 = arith.constant 0 : index
    %473 = vector.load %arg7[%c0_44, %c0_45, %c0_46] : memref<24x12x8xf32, #tpu.memory_space<vmem>>, vector<24x12x8xf32>
    tpu.vector_store %arg7[%c0_44, %c0_45, %c0_46], %472 {strides = array<i32>} : memref<24x12x8xf32, #tpu.memory_space<vmem>>, vector<24x12x8xf32>,
    return
  }
  func.func @transform_0(%arg0: i32) -> (i32, i32) {
    %c0_i32 = arith.constant 0 : i32
    %c0_i32_0 = arith.constant 0 : i32
    %c0_i32_1 = arith.constant 0 : i32
    return %c0_i32, %c0_i32_0 : i32, i32
  }
  func.func @transform_1(%arg0: i32) -> (i32, i32, i32) {
    %c0_i32 = arith.constant 0 : i32
    %c0_i32_0 = arith.constant 0 : i32
    %c0_i32_1 = arith.constant 0 : i32
    %c0_i32_2 = arith.constant 0 : i32
    return %c0_i32, %c0_i32_0, %c0_i32_1 : i32, i32, i32
  }
  func.func @transform_2(%arg0: i32) -> (i32, i32, i32) {
    %c0_i32 = arith.constant 0 : i32
    %c0_i32_0 = arith.constant 0 : i32
    %c0_i32_1 = arith.constant 0 : i32
    %c0_i32_2 = arith.constant 0 : i32
    return %c0_i32, %c0_i32_0, %c0_i32_1 : i32, i32, i32
  }
  func.func @transform_3(%arg0: i32) -> (i32, i32, i32) {
    %c0_i32 = arith.constant 0 : i32
    %c0_i32_0 = arith.constant 0 : i32
    %c0_i32_1 = arith.constant 0 : i32
    %c0_i32_2 = arith.constant 0 : i32
    return %c0_i32, %c0_i32_0, %c0_i32_1 : i32, i32, i32
  }
  func.func @transform_4(%arg0: i32) -> (i32, i32, i32) {
    %c0_i32 = arith.constant 0 : i32
    %c0_i32_0 = arith.constant 0 : i32
    %c0_i32_1 = arith.constant 0 : i32
    return %c0_i32, %c0_i32_0, %arg0 : i32, i32, i32
  }
  func.func @transform_5(%arg0: i32) -> (i32, i32, i32) {
    %c0_i32 = arith.constant 0 : i32
    %c0_i32_0 = arith.constant 0 : i32
    %c0_i32_1 = arith.constant 0 : i32
    return %c0_i32, %c0_i32_0, %arg0 : i32, i32, i32
  }
  func.func @transform_6(%arg0: i32) -> (i32, i32, i32) {
    %c0_i32 = arith.constant 0 : i32
    %c0_i32_0 = arith.constant 0 : i32
    %c0_i32_1 = arith.constant 0 : i32
    return %c0_i32, %c0_i32_0, %arg0 : i32, i32, i32
  }
}

</mosaic_0001>

<llo_original>
// kernel: tpu_custom_call.1
$region0: #{tpu_custom_call.1}
  #allocation0 [shape = 'u32[]', space=smem, size = 0x4, offset = 0x4, fixed_abs, tag = 'smem constant byte address 0x4 - core index']
  #allocation1 [shape = 'u32[144,128]{1,0:T(1,128)}', space=vmem, size = 0x12000, scoped, tag = 'internal scratch']
  #allocation2 [shape = 'f32[1,1]{1,0:T(1,128)S(6)}', space=smem, size = 0x200, scoped, tag = 'scoped memory for tpu_custom_call.1']
  %s0 = inlined_call_operand.<no memory space> [shape: f32[1,1], index: 0, kind: input, shape index: {}]
  %s1 = inlined_call_operand.vmem [shape: f32[16,16,1], index: 1, kind: input, shape index: {}]
  %s2 = inlined_call_operand.vmem [shape: f32[16,16,1], index: 2, kind: input, shape index: {}]
  %s3 = inlined_call_operand.vmem [shape: f32[8,12,1], index: 3, kind: input, shape index: {}]
  %s4 = inlined_call_operand.vmem [shape: f32[16,1,8], index: 4, kind: input, shape index: {}]
  %s5 = inlined_call_operand.vmem [shape: f32[1,16,8], index: 5, kind: input, shape index: {}]
  %s6 = inlined_call_operand.vmem [shape: f32[24,12,8], index: 6, kind: output, shape index: {}]
  %s7 = sld [smem:[#allocation0]]
  $region34: #{tpu_custom_call.1} parent=0
    _
  %s9 = ssub.s32 1, %s7
  %s10 = scalar_select 0, %s9, %s7
  %11 = sst [smem:[#allocation2]] %s0
  // Predicated region
  $region2: #{tpu_custom_call.1} parent=0 // pred_check
    _
  $region3: #{tpu_custom_call.1} parent=0 // pred_check_branch
    %13 = sbr.rel (0) target = $region5
  $region4: #{tpu_custom_call.1} parent=0 // pred_region
    _
  $region5: #{tpu_custom_call.1} parent=0 // pred_fallthru
    _
  // Predicated region
  $region6: #{tpu_custom_call.1} parent=0 // pred_check
    _
  $region7: #{tpu_custom_call.1} parent=0 // pred_check_branch
    %15 = sbr.rel (0) target = $region9
  $region8: #{tpu_custom_call.1} parent=0 // pred_region
    _
  $region9: #{tpu_custom_call.1} parent=0 // pred_fallthru
    _
  // Predicated region
  $region10: #{tpu_custom_call.1} parent=0 // pred_check
    _
  $region11: #{tpu_custom_call.1} parent=0 // pred_check_branch
    %17 = sbr.rel (0) target = $region13
  $region12: #{tpu_custom_call.1} parent=0 // pred_region
    _
  $region13: #{tpu_custom_call.1} parent=0 // pred_fallthru
    _
  // Predicated region
  $region14: #{tpu_custom_call.1} parent=0 // pred_check
    _
  $region15: #{tpu_custom_call.1} parent=0 // pred_check_branch
    %19 = sbr.rel (0) target = $region17
  $region16: #{tpu_custom_call.1} parent=0 // pred_region
    _
  $region17: #{tpu_custom_call.1} parent=0 // pred_fallthru
    _
  // Predicated region
  $region18: #{tpu_custom_call.1} parent=0 // pred_check
    _
  $region19: #{tpu_custom_call.1} parent=0 // pred_check_branch
    %21 = sbr.rel (0) target = $region21
  $region20: #{tpu_custom_call.1} parent=0 // pred_region
    _
  $region21: #{tpu_custom_call.1} parent=0 // pred_fallthru
    _
  // Predicated region
  $region22: #{tpu_custom_call.1} parent=0 // pred_check
    _
  $region23: #{tpu_custom_call.1} parent=0 // pred_check_branch
    %23 = sbr.rel (0) target = $region25
  $region24: #{tpu_custom_call.1} parent=0 // pred_region
    _
  $region25: #{tpu_custom_call.1} parent=0 // pred_fallthru
    _
  %s24 = sld [smem:[#allocation2]]
  %v25 = vld [vmem:[%s1] sm:$0xff]
  %v26 = vld [vmem:[%s1 + $0x8] sm:$0xff]
  %v27 = vld [vmem:[%s1 + $0x10] sm:$0xff]
  %v28 = vld [vmem:[%s1 + $0x18] sm:$0xff]
  %v29 = vld [vmem:[%s1 + $0x20] sm:$0xff]
  %v30 = vld [vmem:[%s1 + $0x28] sm:$0xff]
  %v31 = vld [vmem:[%s1 + $0x30] sm:$0xff]
  %v32 = vld [vmem:[%s1 + $0x38] sm:$0xff]
  %v33 = vld [vmem:[%s1 + $0x40] sm:$0xff]
  %v34 = vld [vmem:[%s1 + $0x48] sm:$0xff]
  %v35 = vld [vmem:[%s1 + $0x50] sm:$0xff]
  %v36 = vld [vmem:[%s1 + $0x58] sm:$0xff]
  %v37 = vld [vmem:[%s1 + $0x60] sm:$0xff]
  %v38 = vld [vmem:[%s1 + $0x68] sm:$0xff]
  %v39 = vld [vmem:[%s1 + $0x70] sm:$0xff]
  %v40 = vld [vmem:[%s1 + $0x78] sm:$0xff]
  %v41 = vld [vmem:[%s1 + $0x80] sm:$0xff]
  %v42 = vld [vmem:[%s1 + $0x88] sm:$0xff]
  %v43 = vld [vmem:[%s1 + $0x90] sm:$0xff]
  %v44 = vld [vmem:[%s1 + $0x98] sm:$0xff]
  %v45 = vld [vmem:[%s1 + $0xa0] sm:$0xff]
  %v46 = vld [vmem:[%s1 + $0xa8] sm:$0xff]
  %v47 = vld [vmem:[%s1 + $0xb0] sm:$0xff]
  %v48 = vld [vmem:[%s1 + $0xb8] sm:$0xff]
  %v49 = vld [vmem:[%s1 + $0xc0] sm:$0xff]
  %v50 = vld [vmem:[%s1 + $0xc8] sm:$0xff]
  %v51 = vld [vmem:[%s1 + $0xd0] sm:$0xff]
  %v52 = vld [vmem:[%s1 + $0xd8] sm:$0xff]
  %v53 = vld [vmem:[%s1 + $0xe0] sm:$0xff]
  %v54 = vld [vmem:[%s1 + $0xe8] sm:$0xff]
  %v55 = vld [vmem:[%s1 + $0xf0] sm:$0xff]
  %v56 = vld [vmem:[%s1 + $0xf8] sm:$0xff]
  %v57 = vld [vmem:[%s4] sm:$0x1]
  %v58 = vld [vmem:[%s4 + $0x1] sm:$0x1]
  %v59 = vld [vmem:[%s4 + $0x2] sm:$0x1]
  %v60 = vld [vmem:[%s4 + $0x3] sm:$0x1]
  %v61 = vld [vmem:[%s4 + $0x4] sm:$0x1]
  %v62 = vld [vmem:[%s4 + $0x5] sm:$0x1]
  %v63 = vld [vmem:[%s4 + $0x6] sm:$0x1]
  %v64 = vld [vmem:[%s4 + $0x7] sm:$0x1]
  %v65 = vld [vmem:[%s4 + $0x8] sm:$0x1]
  %v66 = vld [vmem:[%s4 + $0x9] sm:$0x1]
  %v67 = vld [vmem:[%s4 + $0xa] sm:$0x1]
  %v68 = vld [vmem:[%s4 + $0xb] sm:$0x1]
  %v69 = vld [vmem:[%s4 + $0xc] sm:$0x1]
  %v70 = vld [vmem:[%s4 + $0xd] sm:$0x1]
  %v71 = vld [vmem:[%s4 + $0xe] sm:$0x1]
  %v72 = vld [vmem:[%s4 + $0xf] sm:$0x1]
  %74 = vset.pattern.permute.xlu0 0
  %75 = vperm.xlu0 %74, %v25
  %v76 = vpop.permute.xlu0 %75
  %79 = vset.pattern.permute.xlu0 0
  %80 = vperm.xlu0 %79, %v26
  %v81 = vpop.permute.xlu0 %80
  %84 = vset.pattern.permute.xlu0 0
  %85 = vperm.xlu0 %84, %v27
  %v86 = vpop.permute.xlu0 %85
  %89 = vset.pattern.permute.xlu0 0
  %90 = vperm.xlu0 %89, %v28
  %v91 = vpop.permute.xlu0 %90
  %94 = vset.pattern.permute.xlu0 0
  %95 = vperm.xlu0 %94, %v29
  %v96 = vpop.permute.xlu0 %95
  %99 = vset.pattern.permute.xlu0 0
  %100 = vperm.xlu0 %99, %v30
  %v101 = vpop.permute.xlu0 %100
  %104 = vset.pattern.permute.xlu0 0
  %105 = vperm.xlu0 %104, %v31
  %v106 = vpop.permute.xlu0 %105
  %109 = vset.pattern.permute.xlu0 0
  %110 = vperm.xlu0 %109, %v32
  %v111 = vpop.permute.xlu0 %110
  %114 = vset.pattern.permute.xlu0 0
  %115 = vperm.xlu0 %114, %v33
  %v116 = vpop.permute.xlu0 %115
  %119 = vset.pattern.permute.xlu0 0
  %120 = vperm.xlu0 %119, %v34
  %v121 = vpop.permute.xlu0 %120
  %124 = vset.pattern.permute.xlu0 0
  %125 = vperm.xlu0 %124, %v35
  %v126 = vpop.permute.xlu0 %125
  %129 = vset.pattern.permute.xlu0 0
  %130 = vperm.xlu0 %129, %v36
  %v131 = vpop.permute.xlu0 %130
  %134 = vset.pattern.permute.xlu0 0
  %135 = vperm.xlu0 %134, %v37
  %v136 = vpop.permute.xlu0 %135
  %139 = vset.pattern.permute.xlu0 0
  %140 = vperm.xlu0 %139, %v38
  %v141 = vpop.permute.xlu0 %140
  %144 = vset.pattern.permute.xlu0 0
  %145 = vperm.xlu0 %144, %v39
  %v146 = vpop.permute.xlu0 %145
  %149 = vset.pattern.permute.xlu0 0
  %150 = vperm.xlu0 %149, %v40
  %v151 = vpop.permute.xlu0 %150
  %154 = vset.pattern.permute.xlu0 0
  %155 = vperm.xlu0 %154, %v41
  %v156 = vpop.permute.xlu0 %155
  %159 = vset.pattern.permute.xlu0 0
  %160 = vperm.xlu0 %159, %v42
  %v161 = vpop.permute.xlu0 %160
  %164 = vset.pattern.permute.xlu0 0
  %165 = vperm.xlu0 %164, %v43
  %v166 = vpop.permute.xlu0 %165
  %169 = vset.pattern.permute.xlu0 0
  %170 = vperm.xlu0 %169, %v44
  %v171 = vpop.permute.xlu0 %170
  %174 = vset.pattern.permute.xlu0 0
  %175 = vperm.xlu0 %174, %v45
  %v176 = vpop.permute.xlu0 %175
  %179 = vset.pattern.permute.xlu0 0
  %180 = vperm.xlu0 %179, %v46
  %v181 = vpop.permute.xlu0 %180
  %184 = vset.pattern.permute.xlu0 0
  %185 = vperm.xlu0 %184, %v47
  %v186 = vpop.permute.xlu0 %185
  %189 = vset.pattern.permute.xlu0 0
  %190 = vperm.xlu0 %189, %v48
  %v191 = vpop.permute.xlu0 %190
  %194 = vset.pattern.permute.xlu0 0
  %195 = vperm.xlu0 %194, %v49
  %v196 = vpop.permute.xlu0 %195
  %199 = vset.pattern.permute.xlu0 0
  %200 = vperm.xlu0 %199, %v50
  %v201 = vpop.permute.xlu0 %200
  %204 = vset.pattern.permute.xlu0 0
  %205 = vperm.xlu0 %204, %v51
  %v206 = vpop.permute.xlu0 %205
  %209 = vset.pattern.permute.xlu0 0
  %210 = vperm.xlu0 %209, %v52
  %v211 = vpop.permute.xlu0 %210
  %214 = vset.pattern.permute.xlu0 0
  %215 = vperm.xlu0 %214, %v53
  %v216 = vpop.permute.xlu0 %215
  %219 = vset.pattern.permute.xlu0 0
  %220 = vperm.xlu0 %219, %v54
  %v221 = vpop.permute.xlu0 %220
  %224 = vset.pattern.permute.xlu0 0
  %225 = vperm.xlu0 %224, %v55
  %v226 = vpop.permute.xlu0 %225
  %229 = vset.pattern.permute.xlu0 0
  %230 = vperm.xlu0 %229, %v56
  %v231 = vpop.permute.xlu0 %230
  %v249 = vlaneseq
  %v250 = vshrl.u32 %v249, 7
  %v251 = vsub.s32 0, %v250
  %v252 = vrot.slane %v57, %v251
  %v253 = vlaneseq
  %v254 = vshrl.u32 %v253, 7
  %v255 = vsub.s32 0, %v254
  %v256 = vrot.slane %v58, %v255
  %v257 = vlaneseq
  %v258 = vshrl.u32 %v257, 7
  %v259 = vsub.s32 0, %v258
  %v260 = vrot.slane %v59, %v259
  %v261 = vlaneseq
  %v262 = vshrl.u32 %v261, 7
  %v263 = vsub.s32 0, %v262
  %v264 = vrot.slane %v60, %v263
  %v265 = vlaneseq
  %v266 = vshrl.u32 %v265, 7
  %v267 = vsub.s32 0, %v266
  %v268 = vrot.slane %v61, %v267
  %v269 = vlaneseq
  %v270 = vshrl.u32 %v269, 7
  %v271 = vsub.s32 0, %v270
  %v272 = vrot.slane %v62, %v271
  %v273 = vlaneseq
  %v274 = vshrl.u32 %v273, 7
  %v275 = vsub.s32 0, %v274
  %v276 = vrot.slane %v63, %v275
  %v277 = vlaneseq
  %v278 = vshrl.u32 %v277, 7
  %v279 = vsub.s32 0, %v278
  %v280 = vrot.slane %v64, %v279
  %v281 = vlaneseq
  %v282 = vshrl.u32 %v281, 7
  %v283 = vsub.s32 0, %v282
  %v284 = vrot.slane %v65, %v283
  %v285 = vlaneseq
  %v286 = vshrl.u32 %v285, 7
  %v287 = vsub.s32 0, %v286
  %v288 = vrot.slane %v66, %v287
  %v289 = vlaneseq
  %v290 = vshrl.u32 %v289, 7
  %v291 = vsub.s32 0, %v290
  %v292 = vrot.slane %v67, %v291
  %v293 = vlaneseq
  %v294 = vshrl.u32 %v293, 7
  %v295 = vsub.s32 0, %v294
  %v296 = vrot.slane %v68, %v295
  %v297 = vlaneseq
  %v298 = vshrl.u32 %v297, 7
  %v299 = vsub.s32 0, %v298
  %v300 = vrot.slane %v69, %v299
  %v301 = vlaneseq
  %v302 = vshrl.u32 %v301, 7
  %v303 = vsub.s32 0, %v302
  %v304 = vrot.slane %v70, %v303
  %v305 = vlaneseq
  %v306 = vshrl.u32 %v305, 7
  %v307 = vsub.s32 0, %v306
  %v308 = vrot.slane %v71, %v307
  %v309 = vlaneseq
  %v310 = vshrl.u32 %v309, 7
  %v311 = vsub.s32 0, %v310
  %v312 = vrot.slane %v72, %v311
  %v329 = vadd.f32 %v76, %v252
  %v330 = vadd.f32 %v81, %v252
  %v331 = vadd.f32 %v86, %v256
  %v332 = vadd.f32 %v91, %v256
  %v333 = vadd.f32 %v96, %v260
  %v334 = vadd.f32 %v101, %v260
  %v335 = vadd.f32 %v106, %v264
  %v336 = vadd.f32 %v111, %v264
  %v337 = vadd.f32 %v116, %v268
  %v338 = vadd.f32 %v121, %v268
  %v339 = vadd.f32 %v126, %v272
  %v340 = vadd.f32 %v131, %v272
  %v341 = vadd.f32 %v136, %v276
  %v342 = vadd.f32 %v141, %v276
  %v343 = vadd.f32 %v146, %v280
  %v344 = vadd.f32 %v151, %v280
  %v345 = vadd.f32 %v156, %v284
  %v346 = vadd.f32 %v161, %v284
  %v347 = vadd.f32 %v166, %v288
  %v348 = vadd.f32 %v171, %v288
  %v349 = vadd.f32 %v176, %v292
  %v350 = vadd.f32 %v181, %v292
  %v351 = vadd.f32 %v186, %v296
  %v352 = vadd.f32 %v191, %v296
  %v353 = vadd.f32 %v196, %v300
  %v354 = vadd.f32 %v201, %v300
  %v355 = vadd.f32 %v206, %v304
  %v356 = vadd.f32 %v211, %v304
  %v357 = vadd.f32 %v216, %v308
  %v358 = vadd.f32 %v221, %v308
  %v359 = vadd.f32 %v226, %v312
  %v360 = vadd.f32 %v231, %v312
  %v361 = vld [vmem:[%s5] sm:$0xff]
  %v362 = vld [vmem:[%s5 + $0x8] sm:$0xff]
  %v363 = vsub.f32 %v329, %v361
  %v364 = vsub.f32 %v330, %v362
  %v365 = vsub.f32 %v331, %v361
  %v366 = vsub.f32 %v332, %v362
  %v367 = vsub.f32 %v333, %v361
  %v368 = vsub.f32 %v334, %v362
  %v369 = vsub.f32 %v335, %v361
  %v370 = vsub.f32 %v336, %v362
  %v371 = vsub.f32 %v337, %v361
  %v372 = vsub.f32 %v338, %v362
  %v373 = vsub.f32 %v339, %v361
  %v374 = vsub.f32 %v340, %v362
  %v375 = vsub.f32 %v341, %v361
  %v376 = vsub.f32 %v342, %v362
  %v377 = vsub.f32 %v343, %v361
  %v378 = vsub.f32 %v344, %v362
  %v379 = vsub.f32 %v345, %v361
  %v380 = vsub.f32 %v346, %v362
  %v381 = vsub.f32 %v347, %v361
  %v382 = vsub.f32 %v348, %v362
  %v383 = vsub.f32 %v349, %v361
  %v384 = vsub.f32 %v350, %v362
  %v385 = vsub.f32 %v351, %v361
  %v386 = vsub.f32 %v352, %v362
  %v387 = vsub.f32 %v353, %v361
  %v388 = vsub.f32 %v354, %v362
  %v389 = vsub.f32 %v355, %v361
  %v390 = vsub.f32 %v356, %v362
  %v391 = vsub.f32 %v357, %v361
  %v392 = vsub.f32 %v358, %v362
  %v393 = vsub.f32 %v359, %v361
  %v394 = vsub.f32 %v360, %v362
  %s395 = smul.f32 %s24, -0.5
  %v396 = vstv %s395
  %v397 = vmul.f32 %v396, %v363
  %v398 = vmul.f32 %v396, %v364
  %v399 = vmul.f32 %v396, %v365
  %v400 = vmul.f32 %v396, %v366
  %v401 = vmul.f32 %v396, %v367
  %v402 = vmul.f32 %v396, %v368
  %v403 = vmul.f32 %v396, %v369
  %v404 = vmul.f32 %v396, %v370
  %v405 = vmul.f32 %v396, %v371
  %v406 = vmul.f32 %v396, %v372
  %v407 = vmul.f32 %v396, %v373
  %v408 = vmul.f32 %v396, %v374
  %v409 = vmul.f32 %v396, %v375
  %v410 = vmul.f32 %v396, %v376
  %v411 = vmul.f32 %v396, %v377
  %v412 = vmul.f32 %v396, %v378
  %v413 = vmul.f32 %v396, %v379
  %v414 = vmul.f32 %v396, %v380
  %v415 = vmul.f32 %v396, %v381
  %v416 = vmul.f32 %v396, %v382
  %v417 = vmul.f32 %v396, %v383
  %v418 = vmul.f32 %v396, %v384
  %v419 = vmul.f32 %v396, %v385
  %v420 = vmul.f32 %v396, %v386
  %v421 = vmul.f32 %v396, %v387
  %v422 = vmul.f32 %v396, %v388
  %v423 = vmul.f32 %v396, %v389
  %v424 = vmul.f32 %v396, %v390
  %v425 = vmul.f32 %v396, %v391
  %v426 = vmul.f32 %v396, %v392
  %v427 = vmul.f32 %v396, %v393
  %v428 = vmul.f32 %v396, %v394
  %v429 = vmul.f32 %v397, %v363
  %v430 = vmul.f32 %v398, %v364
  %v431 = vmul.f32 %v399, %v365
  %v432 = vmul.f32 %v400, %v366
  %v433 = vmul.f32 %v401, %v367
  %v434 = vmul.f32 %v402, %v368
  %v435 = vmul.f32 %v403, %v369
  %v436 = vmul.f32 %v404, %v370
  %v437 = vmul.f32 %v405, %v371
  %v438 = vmul.f32 %v406, %v372
  %v439 = vmul.f32 %v407, %v373
  %v440 = vmul.f32 %v408, %v374
  %v441 = vmul.f32 %v409, %v375
  %v442 = vmul.f32 %v410, %v376
  %v443 = vmul.f32 %v411, %v377
  %v444 = vmul.f32 %v412, %v378
  %v445 = vmul.f32 %v413, %v379
  %v446 = vmul.f32 %v414, %v380
  %v447 = vmul.f32 %v415, %v381
  %v448 = vmul.f32 %v416, %v382
  %v449 = vmul.f32 %v417, %v383
  %v450 = vmul.f32 %v418, %v384
  %v451 = vmul.f32 %v419, %v385
  %v452 = vmul.f32 %v420, %v386
  %v453 = vmul.f32 %v421, %v387
  %v454 = vmul.f32 %v422, %v388
  %v455 = vmul.f32 %v423, %v389
  %v456 = vmul.f32 %v424, %v390
  %v457 = vmul.f32 %v425, %v391
  %v458 = vmul.f32 %v426, %v392
  %v459 = vmul.f32 %v427, %v393
  %v460 = vmul.f32 %v428, %v394
  %v461 = vmul.f32 %v429, 1.442695
  %v462 = vpow.pop %v461
  %v463 = vmul.f32 %v430, 1.442695
  %v464 = vpow.pop %v463
  %v465 = vmul.f32 %v431, 1.442695
  %v466 = vpow.pop %v465
  %v467 = vmul.f32 %v432, 1.442695
  %v468 = vpow.pop %v467
  %v469 = vmul.f32 %v433, 1.442695
  %v470 = vpow.pop %v469
  %v471 = vmul.f32 %v434, 1.442695
  %v472 = vpow.pop %v471
  %v473 = vmul.f32 %v435, 1.442695
  %v474 = vpow.pop %v473
  %v475 = vmul.f32 %v436, 1.442695
  %v476 = vpow.pop %v475
  %v477 = vmul.f32 %v437, 1.442695
  %v478 = vpow.pop %v477
  %v479 = vmul.f32 %v438, 1.442695
  %v480 = vpow.pop %v479
  %v481 = vmul.f32 %v439, 1.442695
  %v482 = vpow.pop %v481
  %v483 = vmul.f32 %v440, 1.442695
  %v484 = vpow.pop %v483
  %v485 = vmul.f32 %v441, 1.442695
  %v486 = vpow.pop %v485
  %v487 = vmul.f32 %v442, 1.442695
  %v488 = vpow.pop %v487
  %v489 = vmul.f32 %v443, 1.442695
  %v490 = vpow.pop %v489
  %v491 = vmul.f32 %v444, 1.442695
  %v492 = vpow.pop %v491
  %v493 = vmul.f32 %v445, 1.442695
  %v494 = vpow.pop %v493
  %v495 = vmul.f32 %v446, 1.442695
  %v496 = vpow.pop %v495
  %v497 = vmul.f32 %v447, 1.442695
  %v498 = vpow.pop %v497
  %v499 = vmul.f32 %v448, 1.442695
  %v500 = vpow.pop %v499
  %v501 = vmul.f32 %v449, 1.442695
  %v502 = vpow.pop %v501
  %v503 = vmul.f32 %v450, 1.442695
  %v504 = vpow.pop %v503
  %v505 = vmul.f32 %v451, 1.442695
  %v506 = vpow.pop %v505
  %v507 = vmul.f32 %v452, 1.442695
  %v508 = vpow.pop %v507
  %v509 = vmul.f32 %v453, 1.442695
  %v510 = vpow.pop %v509
  %v511 = vmul.f32 %v454, 1.442695
  %v512 = vpow.pop %v511
  %v513 = vmul.f32 %v455, 1.442695
  %v514 = vpow.pop %v513
  %v515 = vmul.f32 %v456, 1.442695
  %v516 = vpow.pop %v515
  %v517 = vmul.f32 %v457, 1.442695
  %v518 = vpow.pop %v517
  %v519 = vmul.f32 %v458, 1.442695
  %v520 = vpow.pop %v519
  %v521 = vmul.f32 %v459, 1.442695
  %v522 = vpow.pop %v521
  %v523 = vmul.f32 %v460, 1.442695
  %v524 = vpow.pop %v523
  %v525 = vld [vmem:[%s2] sm:$0xff]
  %v526 = vld [vmem:[%s2 + $0x8] sm:$0xff]
  %v527 = vld [vmem:[%s2 + $0x10] sm:$0xff]
  %v528 = vld [vmem:[%s2 + $0x18] sm:$0xff]
  %v529 = vld [vmem:[%s2 + $0x20] sm:$0xff]
  %v530 = vld [vmem:[%s2 + $0x28] sm:$0xff]
  %v531 = vld [vmem:[%s2 + $0x30] sm:$0xff]
  %v532 = vld [vmem:[%s2 + $0x38] sm:$0xff]
  %v533 = vld [vmem:[%s2 + $0x40] sm:$0xff]
  %v534 = vld [vmem:[%s2 + $0x48] sm:$0xff]
  %v535 = vld [vmem:[%s2 + $0x50] sm:$0xff]
  %v536 = vld [vmem:[%s2 + $0x58] sm:$0xff]
  %v537 = vld [vmem:[%s2 + $0x60] sm:$0xff]
  %v538 = vld [vmem:[%s2 + $0x68] sm:$0xff]
  %v539 = vld [vmem:[%s2 + $0x70] sm:$0xff]
  %v540 = vld [vmem:[%s2 + $0x78] sm:$0xff]
  %v541 = vld [vmem:[%s2 + $0x80] sm:$0xff]
  %v542 = vld [vmem:[%s2 + $0x88] sm:$0xff]
  %v543 = vld [vmem:[%s2 + $0x90] sm:$0xff]
  %v544 = vld [vmem:[%s2 + $0x98] sm:$0xff]
  %v545 = vld [vmem:[%s2 + $0xa0] sm:$0xff]
  %v546 = vld [vmem:[%s2 + $0xa8] sm:$0xff]
  %v547 = vld [vmem:[%s2 + $0xb0] sm:$0xff]
  %v548 = vld [vmem:[%s2 + $0xb8] sm:$0xff]
  %v549 = vld [vmem:[%s2 + $0xc0] sm:$0xff]
  %v550 = vld [vmem:[%s2 + $0xc8] sm:$0xff]
  %v551 = vld [vmem:[%s2 + $0xd0] sm:$0xff]
  %v552 = vld [vmem:[%s2 + $0xd8] sm:$0xff]
  %v553 = vld [vmem:[%s2 + $0xe0] sm:$0xff]
  %v554 = vld [vmem:[%s2 + $0xe8] sm:$0xff]
  %v555 = vld [vmem:[%s2 + $0xf0] sm:$0xff]
  %v556 = vld [vmem:[%s2 + $0xf8] sm:$0xff]
  %558 = vset.pattern.permute.xlu0 0
  %559 = vperm.xlu0 %558, %v525
  %v560 = vpop.permute.xlu0 %559
  %563 = vset.pattern.permute.xlu0 0
  %564 = vperm.xlu0 %563, %v526
  %v565 = vpop.permute.xlu0 %564
  %568 = vset.pattern.permute.xlu0 0
  %569 = vperm.xlu0 %568, %v527
  %v570 = vpop.permute.xlu0 %569
  %573 = vset.pattern.permute.xlu0 0
  %574 = vperm.xlu0 %573, %v528
  %v575 = vpop.permute.xlu0 %574
  %578 = vset.pattern.permute.xlu0 0
  %579 = vperm.xlu0 %578, %v529
  %v580 = vpop.permute.xlu0 %579
  %583 = vset.pattern.permute.xlu0 0
  %584 = vperm.xlu0 %583, %v530
  %v585 = vpop.permute.xlu0 %584
  %588 = vset.pattern.permute.xlu0 0
  %589 = vperm.xlu0 %588, %v531
  %v590 = vpop.permute.xlu0 %589
  %593 = vset.pattern.permute.xlu0 0
  %594 = vperm.xlu0 %593, %v532
  %v595 = vpop.permute.xlu0 %594
  %598 = vset.pattern.permute.xlu0 0
  %599 = vperm.xlu0 %598, %v533
  %v600 = vpop.permute.xlu0 %599
  %603 = vset.pattern.permute.xlu0 0
  %604 = vperm.xlu0 %603, %v534
  %v605 = vpop.permute.xlu0 %604
  %608 = vset.pattern.permute.xlu0 0
  %609 = vperm.xlu0 %608, %v535
  %v610 = vpop.permute.xlu0 %609
  %613 = vset.pattern.permute.xlu0 0
  %614 = vperm.xlu0 %613, %v536
  %v615 = vpop.permute.xlu0 %614
  %618 = vset.pattern.permute.xlu0 0
  %619 = vperm.xlu0 %618, %v537
  %v620 = vpop.permute.xlu0 %619
  %623 = vset.pattern.permute.xlu0 0
  %624 = vperm.xlu0 %623, %v538
  %v625 = vpop.permute.xlu0 %624
  %628 = vset.pattern.permute.xlu0 0
  %629 = vperm.xlu0 %628, %v539
  %v630 = vpop.permute.xlu0 %629
  %633 = vset.pattern.permute.xlu0 0
  %634 = vperm.xlu0 %633, %v540
  %v635 = vpop.permute.xlu0 %634
  %638 = vset.pattern.permute.xlu0 0
  %639 = vperm.xlu0 %638, %v541
  %v640 = vpop.permute.xlu0 %639
  %643 = vset.pattern.permute.xlu0 0
  %644 = vperm.xlu0 %643, %v542
  %v645 = vpop.permute.xlu0 %644
  %648 = vset.pattern.permute.xlu0 0
  %649 = vperm.xlu0 %648, %v543
  %v650 = vpop.permute.xlu0 %649
  %653 = vset.pattern.permute.xlu0 0
  %654 = vperm.xlu0 %653, %v544
  %v655 = vpop.permute.xlu0 %654
  %658 = vset.pattern.permute.xlu0 0
  %659 = vperm.xlu0 %658, %v545
  %v660 = vpop.permute.xlu0 %659
  %663 = vset.pattern.permute.xlu0 0
  %664 = vperm.xlu0 %663, %v546
  %v665 = vpop.permute.xlu0 %664
  %668 = vset.pattern.permute.xlu0 0
  %669 = vperm.xlu0 %668, %v547
  %v670 = vpop.permute.xlu0 %669
  %673 = vset.pattern.permute.xlu0 0
  %674 = vperm.xlu0 %673, %v548
  %v675 = vpop.permute.xlu0 %674
  %678 = vset.pattern.permute.xlu0 0
  %679 = vperm.xlu0 %678, %v549
  %v680 = vpop.permute.xlu0 %679
  %683 = vset.pattern.permute.xlu0 0
  %684 = vperm.xlu0 %683, %v550
  %v685 = vpop.permute.xlu0 %684
  %688 = vset.pattern.permute.xlu0 0
  %689 = vperm.xlu0 %688, %v551
  %v690 = vpop.permute.xlu0 %689
  %693 = vset.pattern.permute.xlu0 0
  %694 = vperm.xlu0 %693, %v552
  %v695 = vpop.permute.xlu0 %694
  %698 = vset.pattern.permute.xlu0 0
  %699 = vperm.xlu0 %698, %v553
  %v700 = vpop.permute.xlu0 %699
  %703 = vset.pattern.permute.xlu0 0
  %704 = vperm.xlu0 %703, %v554
  %v705 = vpop.permute.xlu0 %704
  %708 = vset.pattern.permute.xlu0 0
  %709 = vperm.xlu0 %708, %v555
  %v710 = vpop.permute.xlu0 %709
  %713 = vset.pattern.permute.xlu0 0
  %714 = vperm.xlu0 %713, %v556
  %v715 = vpop.permute.xlu0 %714
  %v717 = vadd.f32 %v462, %v560
  %v718 = vadd.f32 %v464, %v565
  %v719 = vadd.f32 %v466, %v570
  %v720 = vadd.f32 %v468, %v575
  %v721 = vadd.f32 %v470, %v580
  %v722 = vadd.f32 %v472, %v585
  %v723 = vadd.f32 %v474, %v590
  %v724 = vadd.f32 %v476, %v595
  %v725 = vadd.f32 %v478, %v600
  %v726 = vadd.f32 %v480, %v605
  %v727 = vadd.f32 %v482, %v610
  %v728 = vadd.f32 %v484, %v615
  %v729 = vadd.f32 %v486, %v620
  %v730 = vadd.f32 %v488, %v625
  %v731 = vadd.f32 %v490, %v630
  %v732 = vadd.f32 %v492, %v635
  %v733 = vadd.f32 %v494, %v640
  %v734 = vadd.f32 %v496, %v645
  %v735 = vadd.f32 %v498, %v650
  %v736 = vadd.f32 %v500, %v655
  %v737 = vadd.f32 %v502, %v660
  %v738 = vadd.f32 %v504, %v665
  %v739 = vadd.f32 %v506, %v670
  %v740 = vadd.f32 %v508, %v675
  %v741 = vadd.f32 %v510, %v680
  %v742 = vadd.f32 %v512, %v685
  %v743 = vadd.f32 %v514, %v690
  %v744 = vadd.f32 %v516, %v695
  %v745 = vadd.f32 %v518, %v700
  %v746 = vadd.f32 %v520, %v705
  %v747 = vadd.f32 %v522, %v710
  %v748 = vadd.f32 %v524, %v715
  %v749 = vlaneseq
  %v750 = vshrl.u32 %v749, 7
  %v751 = vadd.s32 %v750, 8
  %v752 = vmax.f32 %v717, 1e-20
  %v753 = vrsqrt.pop %v752
  %v754 = vmul.f32 %v717, %v753
  %v755 = vmul.f32 %v719, %v753
  %v756 = vmul.f32 %v721, %v753
  %v757 = vmul.f32 %v723, %v753
  %v758 = vmul.f32 %v725, %v753
  %v759 = vmul.f32 %v727, %v753
  %v760 = vmul.f32 %v729, %v753
  %v761 = vmul.f32 %v731, %v753
  %v762 = vmul.f32 %v733, %v753
  %v763 = vmul.f32 %v735, %v753
  %v764 = vmul.f32 %v737, %v753
  %v765 = vmul.f32 %v739, %v753
  %v766 = vmul.f32 %v741, %v753
  %v767 = vmul.f32 %v743, %v753
  %v768 = vmul.f32 %v745, %v753
  %v769 = vmul.f32 %v747, %v753
  %v770 = vlaneseq
  %v771 = vshrl.u32 %v770, 7
  %v772 = vsub.s32 0, %v771
  %v773 = vrot.slane %v753, %v772
  %v774 = vmul.f32 %v717, %v773
  %v775 = vmul.f32 %v718, %v773
  %vm776 = vcmp.eq.s32.totalorder %v750, 0
  %vm777 = vcmp.eq.s32.totalorder %v751, 0
  %v778 = vsel %vm776, 1, 0
  %v779 = vsel %vm777, 1, 0
  %vm780 = vcmp.eq.s32.totalorder %v778, 1
  %vm781 = vcmp.eq.s32.totalorder %v779, 1
  %v782 = vlaneseq
  %v783 = vshrl.u32 %v782, 7
  %v784 = vsub.s32 0, %v783
  %v785 = vrot.slane %v754, %v784
  %v786 = vlaneseq
  %v787 = vshrl.u32 %v786, 7
  %v788 = vsub.s32 0, %v787
  %v789 = vrot.slane %v755, %v788
  %v790 = vlaneseq
  %v791 = vshrl.u32 %v790, 7
  %v792 = vsub.s32 0, %v791
  %v793 = vrot.slane %v756, %v792
  %v794 = vlaneseq
  %v795 = vshrl.u32 %v794, 7
  %v796 = vsub.s32 0, %v795
  %v797 = vrot.slane %v757, %v796
  %v798 = vlaneseq
  %v799 = vshrl.u32 %v798, 7
  %v800 = vsub.s32 0, %v799
  %v801 = vrot.slane %v758, %v800
  %v802 = vlaneseq
  %v803 = vshrl.u32 %v802, 7
  %v804 = vsub.s32 0, %v803
  %v805 = vrot.slane %v759, %v804
  %v806 = vlaneseq
  %v807 = vshrl.u32 %v806, 7
  %v808 = vsub.s32 0, %v807
  %v809 = vrot.slane %v760, %v808
  %v810 = vlaneseq
  %v811 = vshrl.u32 %v810, 7
  %v812 = vsub.s32 0, %v811
  %v813 = vrot.slane %v761, %v812
  %v814 = vlaneseq
  %v815 = vshrl.u32 %v814, 7
  %v816 = vsub.s32 0, %v815
  %v817 = vrot.slane %v762, %v816
  %v818 = vlaneseq
  %v819 = vshrl.u32 %v818, 7
  %v820 = vsub.s32 0, %v819
  %v821 = vrot.slane %v763, %v820
  %v822 = vlaneseq
  %v823 = vshrl.u32 %v822, 7
  %v824 = vsub.s32 0, %v823
  %v825 = vrot.slane %v764, %v824
  %v826 = vlaneseq
  %v827 = vshrl.u32 %v826, 7
  %v828 = vsub.s32 0, %v827
  %v829 = vrot.slane %v765, %v828
  %v830 = vlaneseq
  %v831 = vshrl.u32 %v830, 7
  %v832 = vsub.s32 0, %v831
  %v833 = vrot.slane %v766, %v832
  %v834 = vlaneseq
  %v835 = vshrl.u32 %v834, 7
  %v836 = vsub.s32 0, %v835
  %v837 = vrot.slane %v767, %v836
  %v838 = vlaneseq
  %v839 = vshrl.u32 %v838, 7
  %v840 = vsub.s32 0, %v839
  %v841 = vrot.slane %v768, %v840
  %v842 = vlaneseq
  %v843 = vshrl.u32 %v842, 7
  %v844 = vsub.s32 0, %v843
  %v845 = vrot.slane %v769, %v844
  %v846 = vsel %vm780, %v785, 0.0
  %v847 = vsel %vm780, %v789, 0.0
  %v848 = vsel %vm780, %v793, 0.0
  %v849 = vsel %vm780, %v797, 0.0
  %v850 = vsel %vm780, %v801, 0.0
  %v851 = vsel %vm780, %v805, 0.0
  %v852 = vsel %vm780, %v809, 0.0
  %v853 = vsel %vm780, %v813, 0.0
  %v854 = vsel %vm780, %v817, 0.0
  %v855 = vsel %vm781, %v817, 0.0
  %v856 = vsel %vm780, %v821, 0.0
  %v857 = vsel %vm781, %v821, 0.0
  %v858 = vsel %vm780, %v825, 0.0
  %v859 = vsel %vm781, %v825, 0.0
  %v860 = vsel %vm780, %v829, 0.0
  %v861 = vsel %vm781, %v829, 0.0
  %v862 = vsel %vm780, %v833, 0.0
  %v863 = vsel %vm781, %v833, 0.0
  %v864 = vsel %vm780, %v837, 0.0
  %v865 = vsel %vm781, %v837, 0.0
  %v866 = vsel %vm780, %v841, 0.0
  %v867 = vsel %vm781, %v841, 0.0
  %v868 = vsel %vm780, %v845, 0.0
  %v869 = vsel %vm781, %v845, 0.0
  %v870 = vmul.f32 %v785, %v774
  %v871 = vmul.f32 %v785, %v775
  %v872 = vmul.f32 %v789, %v774
  %v873 = vmul.f32 %v789, %v775
  %v874 = vmul.f32 %v793, %v774
  %v875 = vmul.f32 %v793, %v775
  %v876 = vmul.f32 %v797, %v774
  %v877 = vmul.f32 %v797, %v775
  %v878 = vmul.f32 %v801, %v774
  %v879 = vmul.f32 %v801, %v775
  %v880 = vmul.f32 %v805, %v774
  %v881 = vmul.f32 %v805, %v775
  %v882 = vmul.f32 %v809, %v774
  %v883 = vmul.f32 %v809, %v775
  %v884 = vmul.f32 %v813, %v774
  %v885 = vmul.f32 %v813, %v775
  %v886 = vmul.f32 %v817, %v774
  %v887 = vmul.f32 %v817, %v775
  %v888 = vmul.f32 %v821, %v774
  %v889 = vmul.f32 %v821, %v775
  %v890 = vmul.f32 %v825, %v774
  %v891 = vmul.f32 %v825, %v775
  %v892 = vmul.f32 %v829, %v774
  %v893 = vmul.f32 %v829, %v775
  %v894 = vmul.f32 %v833, %v774
  %v895 = vmul.f32 %v833, %v775
  %v896 = vmul.f32 %v837, %v774
  %v897 = vmul.f32 %v837, %v775
  %v898 = vmul.f32 %v841, %v774
  %v899 = vmul.f32 %v841, %v775
  %v900 = vmul.f32 %v845, %v774
  %v901 = vmul.f32 %v845, %v775
  %v902 = vsub.f32 %v717, %v870
  %v903 = vsub.f32 %v718, %v871
  %v904 = vsub.f32 %v719, %v872
  %v905 = vsub.f32 %v720, %v873
  %v906 = vsub.f32 %v721, %v874
  %v907 = vsub.f32 %v722, %v875
  %v908 = vsub.f32 %v723, %v876
  %v909 = vsub.f32 %v724, %v877
  %v910 = vsub.f32 %v725, %v878
  %v911 = vsub.f32 %v726, %v879
  %v912 = vsub.f32 %v727, %v880
  %v913 = vsub.f32 %v728, %v881
  %v914 = vsub.f32 %v729, %v882
  %v915 = vsub.f32 %v730, %v883
  %v916 = vsub.f32 %v731, %v884
  %v917 = vsub.f32 %v732, %v885
  %v918 = vsub.f32 %v733, %v886
  %v919 = vsub.f32 %v734, %v887
  %v920 = vsub.f32 %v735, %v888
  %v921 = vsub.f32 %v736, %v889
  %v922 = vsub.f32 %v737, %v890
  %v923 = vsub.f32 %v738, %v891
  %v924 = vsub.f32 %v739, %v892
  %v925 = vsub.f32 %v740, %v893
  %v926 = vsub.f32 %v741, %v894
  %v927 = vsub.f32 %v742, %v895
  %v928 = vsub.f32 %v743, %v896
  %v929 = vsub.f32 %v744, %v897
  %v930 = vsub.f32 %v745, %v898
  %v931 = vsub.f32 %v746, %v899
  %v932 = vsub.f32 %v747, %v900
  %v933 = vsub.f32 %v748, %v901
  %v934 = vmax.f32 %v904, 1e-20
  %v935 = vrsqrt.pop %v934
  %v936 = vmul.f32 %v902, %v935
  %v937 = vmul.f32 %v904, %v935
  %v938 = vmul.f32 %v906, %v935
  %v939 = vmul.f32 %v908, %v935
  %v940 = vmul.f32 %v910, %v935
  %v941 = vmul.f32 %v912, %v935
  %v942 = vmul.f32 %v914, %v935
  %v943 = vmul.f32 %v916, %v935
  %v944 = vmul.f32 %v918, %v935
  %v945 = vmul.f32 %v920, %v935
  %v946 = vmul.f32 %v922, %v935
  %v947 = vmul.f32 %v924, %v935
  %v948 = vmul.f32 %v926, %v935
  %v949 = vmul.f32 %v928, %v935
  %v950 = vmul.f32 %v930, %v935
  %v951 = vmul.f32 %v932, %v935
  %v952 = vlaneseq
  %v953 = vshrl.u32 %v952, 7
  %v954 = vsub.s32 1, %v953
  %v955 = vrot.slane %v935, %v954
  %v956 = vmul.f32 %v904, %v955
  %v957 = vmul.f32 %v905, %v955
  %vm958 = vcmp.eq.s32.totalorder %v750, 1
  %vm959 = vcmp.eq.s32.totalorder %v751, 1
  %v960 = vsel %vm958, 1, 0
  %v961 = vsel %vm959, 1, 0
  %vm962 = vcmp.eq.s32.totalorder %v960, 1
  %vm963 = vcmp.eq.s32.totalorder %v961, 1
  %v964 = vlaneseq
  %v965 = vshrl.u32 %v964, 7
  %v966 = vsub.s32 1, %v965
  %v967 = vrot.slane %v936, %v966
  %v968 = vlaneseq
  %v969 = vshrl.u32 %v968, 7
  %v970 = vsub.s32 1, %v969
  %v971 = vrot.slane %v937, %v970
  %v972 = vlaneseq
  %v973 = vshrl.u32 %v972, 7
  %v974 = vsub.s32 1, %v973
  %v975 = vrot.slane %v938, %v974
  %v976 = vlaneseq
  %v977 = vshrl.u32 %v976, 7
  %v978 = vsub.s32 1, %v977
  %v979 = vrot.slane %v939, %v978
  %v980 = vlaneseq
  %v981 = vshrl.u32 %v980, 7
  %v982 = vsub.s32 1, %v981
  %v983 = vrot.slane %v940, %v982
  %v984 = vlaneseq
  %v985 = vshrl.u32 %v984, 7
  %v986 = vsub.s32 1, %v985
  %v987 = vrot.slane %v941, %v986
  %v988 = vlaneseq
  %v989 = vshrl.u32 %v988, 7
  %v990 = vsub.s32 1, %v989
  %v991 = vrot.slane %v942, %v990
  %v992 = vlaneseq
  %v993 = vshrl.u32 %v992, 7
  %v994 = vsub.s32 1, %v993
  %v995 = vrot.slane %v943, %v994
  %v996 = vlaneseq
  %v997 = vshrl.u32 %v996, 7
  %v998 = vsub.s32 1, %v997
  %v999 = vrot.slane %v944, %v998
  %v1000 = vlaneseq
  %v1001 = vshrl.u32 %v1000, 7
  %v1002 = vsub.s32 1, %v1001
  %v1003 = vrot.slane %v945, %v1002
  %v1004 = vlaneseq
  %v1005 = vshrl.u32 %v1004, 7
  %v1006 = vsub.s32 1, %v1005
  %v1007 = vrot.slane %v946, %v1006
  %v1008 = vlaneseq
  %v1009 = vshrl.u32 %v1008, 7
  %v1010 = vsub.s32 1, %v1009
  %v1011 = vrot.slane %v947, %v1010
  %v1012 = vlaneseq
  %v1013 = vshrl.u32 %v1012, 7
  %v1014 = vsub.s32 1, %v1013
  %v1015 = vrot.slane %v948, %v1014
  %v1016 = vlaneseq
  %v1017 = vshrl.u32 %v1016, 7
  %v1018 = vsub.s32 1, %v1017
  %v1019 = vrot.slane %v949, %v1018
  %v1020 = vlaneseq
  %v1021 = vshrl.u32 %v1020, 7
  %v1022 = vsub.s32 1, %v1021
  %v1023 = vrot.slane %v950, %v1022
  %v1024 = vlaneseq
  %v1025 = vshrl.u32 %v1024, 7
  %v1026 = vsub.s32 1, %v1025
  %v1027 = vrot.slane %v951, %v1026
  %v1028 = vsel %vm962, %v967, %v846
  %v1029 = vsel %vm962, %v971, %v847
  %v1030 = vsel %vm962, %v975, %v848
  %v1031 = vsel %vm962, %v979, %v849
  %v1032 = vsel %vm962, %v983, %v850
  %v1033 = vsel %vm962, %v987, %v851
  %v1034 = vsel %vm962, %v991, %v852
  %v1035 = vsel %vm962, %v995, %v853
  %v1036 = vsel %vm962, %v999, %v854
  %v1037 = vsel %vm963, %v999, %v855
  %v1038 = vsel %vm962, %v1003, %v856
  %v1039 = vsel %vm963, %v1003, %v857
  %v1040 = vsel %vm962, %v1007, %v858
  %v1041 = vsel %vm963, %v1007, %v859
  %v1042 = vsel %vm962, %v1011, %v860
  %v1043 = vsel %vm963, %v1011, %v861
  %v1044 = vsel %vm962, %v1015, %v862
  %v1045 = vsel %vm963, %v1015, %v863
  %v1046 = vsel %vm962, %v1019, %v864
  %v1047 = vsel %vm963, %v1019, %v865
  %v1048 = vsel %vm962, %v1023, %v866
  %v1049 = vsel %vm963, %v1023, %v867
  %v1050 = vsel %vm962, %v1027, %v868
  %v1051 = vsel %vm963, %v1027, %v869
  %v1052 = vmul.f32 %v967, %v956
  %v1053 = vmul.f32 %v967, %v957
  %v1054 = vmul.f32 %v971, %v956
  %v1055 = vmul.f32 %v971, %v957
  %v1056 = vmul.f32 %v975, %v956
  %v1057 = vmul.f32 %v975, %v957
  %v1058 = vmul.f32 %v979, %v956
  %v1059 = vmul.f32 %v979, %v957
  %v1060 = vmul.f32 %v983, %v956
  %v1061 = vmul.f32 %v983, %v957
  %v1062 = vmul.f32 %v987, %v956
  %v1063 = vmul.f32 %v987, %v957
  %v1064 = vmul.f32 %v991, %v956
  %v1065 = vmul.f32 %v991, %v957
  %v1066 = vmul.f32 %v995, %v956
  %v1067 = vmul.f32 %v995, %v957
  %v1068 = vmul.f32 %v999, %v956
  %v1069 = vmul.f32 %v999, %v957
  %v1070 = vmul.f32 %v1003, %v956
  %v1071 = vmul.f32 %v1003, %v957
  %v1072 = vmul.f32 %v1007, %v956
  %v1073 = vmul.f32 %v1007, %v957
  %v1074 = vmul.f32 %v1011, %v956
  %v1075 = vmul.f32 %v1011, %v957
  %v1076 = vmul.f32 %v1015, %v956
  %v1077 = vmul.f32 %v1015, %v957
  %v1078 = vmul.f32 %v1019, %v956
  %v1079 = vmul.f32 %v1019, %v957
  %v1080 = vmul.f32 %v1023, %v956
  %v1081 = vmul.f32 %v1023, %v957
  %v1082 = vmul.f32 %v1027, %v956
  %v1083 = vmul.f32 %v1027, %v957
  %v1084 = vsub.f32 %v902, %v1052
  %v1085 = vsub.f32 %v903, %v1053
  %v1086 = vsub.f32 %v904, %v1054
  %v1087 = vsub.f32 %v905, %v1055
  %v1088 = vsub.f32 %v906, %v1056
  %v1089 = vsub.f32 %v907, %v1057
  %v1090 = vsub.f32 %v908, %v1058
  %v1091 = vsub.f32 %v909, %v1059
  %v1092 = vsub.f32 %v910, %v1060
  %v1093 = vsub.f32 %v911, %v1061
  %v1094 = vsub.f32 %v912, %v1062
  %v1095 = vsub.f32 %v913, %v1063
  %v1096 = vsub.f32 %v914, %v1064
  %v1097 = vsub.f32 %v915, %v1065
  %v1098 = vsub.f32 %v916, %v1066
  %v1099 = vsub.f32 %v917, %v1067
  %v1100 = vsub.f32 %v918, %v1068
  %v1101 = vsub.f32 %v919, %v1069
  %v1102 = vsub.f32 %v920, %v1070
  %v1103 = vsub.f32 %v921, %v1071
  %v1104 = vsub.f32 %v922, %v1072
  %v1105 = vsub.f32 %v923, %v1073
  %v1106 = vsub.f32 %v924, %v1074
  %v1107 = vsub.f32 %v925, %v1075
  %v1108 = vsub.f32 %v926, %v1076
  %v1109 = vsub.f32 %v927, %v1077
  %v1110 = vsub.f32 %v928, %v1078
  %v1111 = vsub.f32 %v929, %v1079
  %v1112 = vsub.f32 %v930, %v1080
  %v1113 = vsub.f32 %v931, %v1081
  %v1114 = vsub.f32 %v932, %v1082
  %v1115 = vsub.f32 %v933, %v1083
  %v1116 = vmax.f32 %v1088, 1e-20
  %v1117 = vrsqrt.pop %v1116
  %v1118 = vmul.f32 %v1084, %v1117
  %v1119 = vmul.f32 %v1086, %v1117
  %v1120 = vmul.f32 %v1088, %v1117
  %v1121 = vmul.f32 %v1090, %v1117
  %v1122 = vmul.f32 %v1092, %v1117
  %v1123 = vmul.f32 %v1094, %v1117
  %v1124 = vmul.f32 %v1096, %v1117
  %v1125 = vmul.f32 %v1098, %v1117
  %v1126 = vmul.f32 %v1100, %v1117
  %v1127 = vmul.f32 %v1102, %v1117
  %v1128 = vmul.f32 %v1104, %v1117
  %v1129 = vmul.f32 %v1106, %v1117
  %v1130 = vmul.f32 %v1108, %v1117
  %v1131 = vmul.f32 %v1110, %v1117
  %v1132 = vmul.f32 %v1112, %v1117
  %v1133 = vmul.f32 %v1114, %v1117
  %v1134 = vlaneseq
  %v1135 = vshrl.u32 %v1134, 7
  %v1136 = vsub.s32 2, %v1135
  %v1137 = vrot.slane %v1117, %v1136
  %v1138 = vmul.f32 %v1088, %v1137
  %v1139 = vmul.f32 %v1089, %v1137
  %vm1140 = vcmp.eq.s32.totalorder %v750, 2
  %vm1141 = vcmp.eq.s32.totalorder %v751, 2
  %v1142 = vsel %vm1140, 1, 0
  %v1143 = vsel %vm1141, 1, 0
  %vm1144 = vcmp.eq.s32.totalorder %v1142, 1
  %vm1145 = vcmp.eq.s32.totalorder %v1143, 1
  %v1146 = vlaneseq
  %v1147 = vshrl.u32 %v1146, 7
  %v1148 = vsub.s32 2, %v1147
  %v1149 = vrot.slane %v1118, %v1148
  %v1150 = vlaneseq
  %v1151 = vshrl.u32 %v1150, 7
  %v1152 = vsub.s32 2, %v1151
  %v1153 = vrot.slane %v1119, %v1152
  %v1154 = vlaneseq
  %v1155 = vshrl.u32 %v1154, 7
  %v1156 = vsub.s32 2, %v1155
  %v1157 = vrot.slane %v1120, %v1156
  %v1158 = vlaneseq
  %v1159 = vshrl.u32 %v1158, 7
  %v1160 = vsub.s32 2, %v1159
  %v1161 = vrot.slane %v1121, %v1160
  %v1162 = vlaneseq
  %v1163 = vshrl.u32 %v1162, 7
  %v1164 = vsub.s32 2, %v1163
  %v1165 = vrot.slane %v1122, %v1164
  %v1166 = vlaneseq
  %v1167 = vshrl.u32 %v1166, 7
  %v1168 = vsub.s32 2, %v1167
  %v1169 = vrot.slane %v1123, %v1168
  %v1170 = vlaneseq
  %v1171 = vshrl.u32 %v1170, 7
  %v1172 = vsub.s32 2, %v1171
  %v1173 = vrot.slane %v1124, %v1172
  %v1174 = vlaneseq
  %v1175 = vshrl.u32 %v1174, 7
  %v1176 = vsub.s32 2, %v1175
  %v1177 = vrot.slane %v1125, %v1176
  %v1178 = vlaneseq
  %v1179 = vshrl.u32 %v1178, 7
  %v1180 = vsub.s32 2, %v1179
  %v1181 = vrot.slane %v1126, %v1180
  %v1182 = vlaneseq
  %v1183 = vshrl.u32 %v1182, 7
  %v1184 = vsub.s32 2, %v1183
  %v1185 = vrot.slane %v1127, %v1184
  %v1186 = vlaneseq
  %v1187 = vshrl.u32 %v1186, 7
  %v1188 = vsub.s32 2, %v1187
  %v1189 = vrot.slane %v1128, %v1188
  %v1190 = vlaneseq
  %v1191 = vshrl.u32 %v1190, 7
  %v1192 = vsub.s32 2, %v1191
  %v1193 = vrot.slane %v1129, %v1192
  %v1194 = vlaneseq
  %v1195 = vshrl.u32 %v1194, 7
  %v1196 = vsub.s32 2, %v1195
  %v1197 = vrot.slane %v1130, %v1196
  %v1198 = vlaneseq
  %v1199 = vshrl.u32 %v1198, 7
  %v1200 = vsub.s32 2, %v1199
  %v1201 = vrot.slane %v1131, %v1200
  %v1202 = vlaneseq
  %v1203 = vshrl.u32 %v1202, 7
  %v1204 = vsub.s32 2, %v1203
  %v1205 = vrot.slane %v1132, %v1204
  %v1206 = vlaneseq
  %v1207 = vshrl.u32 %v1206, 7
  %v1208 = vsub.s32 2, %v1207
  %v1209 = vrot.slane %v1133, %v1208
  %v1210 = vsel %vm1144, %v1149, %v1028
  %v1211 = vsel %vm1144, %v1153, %v1029
  %v1212 = vsel %vm1144, %v1157, %v1030
  %v1213 = vsel %vm1144, %v1161, %v1031
  %v1214 = vsel %vm1144, %v1165, %v1032
  %v1215 = vsel %vm1144, %v1169, %v1033
  %v1216 = vsel %vm1144, %v1173, %v1034
  %v1217 = vsel %vm1144, %v1177, %v1035
  %v1218 = vsel %vm1144, %v1181, %v1036
  %v1219 = vsel %vm1145, %v1181, %v1037
  %v1220 = vsel %vm1144, %v1185, %v1038
  %v1221 = vsel %vm1145, %v1185, %v1039
  %v1222 = vsel %vm1144, %v1189, %v1040
  %v1223 = vsel %vm1145, %v1189, %v1041
  %v1224 = vsel %vm1144, %v1193, %v1042
  %v1225 = vsel %vm1145, %v1193, %v1043
  %v1226 = vsel %vm1144, %v1197, %v1044
  %v1227 = vsel %vm1145, %v1197, %v1045
  %v1228 = vsel %vm1144, %v1201, %v1046
  %v1229 = vsel %vm1145, %v1201, %v1047
  %v1230 = vsel %vm1144, %v1205, %v1048
  %v1231 = vsel %vm1145, %v1205, %v1049
  %v1232 = vsel %vm1144, %v1209, %v1050
  %v1233 = vsel %vm1145, %v1209, %v1051
  %v1234 = vmul.f32 %v1149, %v1138
  %v1235 = vmul.f32 %v1149, %v1139
  %v1236 = vmul.f32 %v1153, %v1138
  %v1237 = vmul.f32 %v1153, %v1139
  %v1238 = vmul.f32 %v1157, %v1138
  %v1239 = vmul.f32 %v1157, %v1139
  %v1240 = vmul.f32 %v1161, %v1138
  %v1241 = vmul.f32 %v1161, %v1139
  %v1242 = vmul.f32 %v1165, %v1138
  %v1243 = vmul.f32 %v1165, %v1139
  %v1244 = vmul.f32 %v1169, %v1138
  %v1245 = vmul.f32 %v1169, %v1139
  %v1246 = vmul.f32 %v1173, %v1138
  %v1247 = vmul.f32 %v1173, %v1139
  %v1248 = vmul.f32 %v1177, %v1138
  %v1249 = vmul.f32 %v1177, %v1139
  %v1250 = vmul.f32 %v1181, %v1138
  %v1251 = vmul.f32 %v1181, %v1139
  %v1252 = vmul.f32 %v1185, %v1138
  %v1253 = vmul.f32 %v1185, %v1139
  %v1254 = vmul.f32 %v1189, %v1138
  %v1255 = vmul.f32 %v1189, %v1139
  %v1256 = vmul.f32 %v1193, %v1138
  %v1257 = vmul.f32 %v1193, %v1139
  %v1258 = vmul.f32 %v1197, %v1138
  %v1259 = vmul.f32 %v1197, %v1139
  %v1260 = vmul.f32 %v1201, %v1138
  %v1261 = vmul.f32 %v1201, %v1139
  %v1262 = vmul.f32 %v1205, %v1138
  %v1263 = vmul.f32 %v1205, %v1139
  %v1264 = vmul.f32 %v1209, %v1138
  %v1265 = vmul.f32 %v1209, %v1139
  %v1266 = vsub.f32 %v1084, %v1234
  %v1267 = vsub.f32 %v1085, %v1235
  %v1268 = vsub.f32 %v1086, %v1236
  %v1269 = vsub.f32 %v1087, %v1237
  %v1270 = vsub.f32 %v1088, %v1238
  %v1271 = vsub.f32 %v1089, %v1239
  %v1272 = vsub.f32 %v1090, %v1240
  %v1273 = vsub.f32 %v1091, %v1241
  %v1274 = vsub.f32 %v1092, %v1242
  %v1275 = vsub.f32 %v1093, %v1243
  %v1276 = vsub.f32 %v1094, %v1244
  %v1277 = vsub.f32 %v1095, %v1245
  %v1278 = vsub.f32 %v1096, %v1246
  %v1279 = vsub.f32 %v1097, %v1247
  %v1280 = vsub.f32 %v1098, %v1248
  %v1281 = vsub.f32 %v1099, %v1249
  %v1282 = vsub.f32 %v1100, %v1250
  %v1283 = vsub.f32 %v1101, %v1251
  %v1284 = vsub.f32 %v1102, %v1252
  %v1285 = vsub.f32 %v1103, %v1253
  %v1286 = vsub.f32 %v1104, %v1254
  %v1287 = vsub.f32 %v1105, %v1255
  %v1288 = vsub.f32 %v1106, %v1256
  %v1289 = vsub.f32 %v1107, %v1257
  %v1290 = vsub.f32 %v1108, %v1258
  %v1291 = vsub.f32 %v1109, %v1259
  %v1292 = vsub.f32 %v1110, %v1260
  %v1293 = vsub.f32 %v1111, %v1261
  %v1294 = vsub.f32 %v1112, %v1262
  %v1295 = vsub.f32 %v1113, %v1263
  %v1296 = vsub.f32 %v1114, %v1264
  %v1297 = vsub.f32 %v1115, %v1265
  %v1298 = vmax.f32 %v1272, 1e-20
  %v1299 = vrsqrt.pop %v1298
  %v1300 = vmul.f32 %v1266, %v1299
  %v1301 = vmul.f32 %v1268, %v1299
  %v1302 = vmul.f32 %v1270, %v1299
  %v1303 = vmul.f32 %v1272, %v1299
  %v1304 = vmul.f32 %v1274, %v1299
  %v1305 = vmul.f32 %v1276, %v1299
  %v1306 = vmul.f32 %v1278, %v1299
  %v1307 = vmul.f32 %v1280, %v1299
  %v1308 = vmul.f32 %v1282, %v1299
  %v1309 = vmul.f32 %v1284, %v1299
  %v1310 = vmul.f32 %v1286, %v1299
  %v1311 = vmul.f32 %v1288, %v1299
  %v1312 = vmul.f32 %v1290, %v1299
  %v1313 = vmul.f32 %v1292, %v1299
  %v1314 = vmul.f32 %v1294, %v1299
  %v1315 = vmul.f32 %v1296, %v1299
  %v1316 = vlaneseq
  %v1317 = vshrl.u32 %v1316, 7
  %v1318 = vsub.s32 3, %v1317
  %v1319 = vrot.slane %v1299, %v1318
  %v1320 = vmul.f32 %v1272, %v1319
  %v1321 = vmul.f32 %v1273, %v1319
  %vm1322 = vcmp.eq.s32.totalorder %v750, 3
  %vm1323 = vcmp.eq.s32.totalorder %v751, 3
  %v1324 = vsel %vm1322, 1, 0
  %v1325 = vsel %vm1323, 1, 0
  %vm1326 = vcmp.eq.s32.totalorder %v1324, 1
  %vm1327 = vcmp.eq.s32.totalorder %v1325, 1
  %v1328 = vlaneseq
  %v1329 = vshrl.u32 %v1328, 7
  %v1330 = vsub.s32 3, %v1329
  %v1331 = vrot.slane %v1300, %v1330
  %v1332 = vlaneseq
  %v1333 = vshrl.u32 %v1332, 7
  %v1334 = vsub.s32 3, %v1333
  %v1335 = vrot.slane %v1301, %v1334
  %v1336 = vlaneseq
  %v1337 = vshrl.u32 %v1336, 7
  %v1338 = vsub.s32 3, %v1337
  %v1339 = vrot.slane %v1302, %v1338
  %v1340 = vlaneseq
  %v1341 = vshrl.u32 %v1340, 7
  %v1342 = vsub.s32 3, %v1341
  %v1343 = vrot.slane %v1303, %v1342
  %v1344 = vlaneseq
  %v1345 = vshrl.u32 %v1344, 7
  %v1346 = vsub.s32 3, %v1345
  %v1347 = vrot.slane %v1304, %v1346
  %v1348 = vlaneseq
  %v1349 = vshrl.u32 %v1348, 7
  %v1350 = vsub.s32 3, %v1349
  %v1351 = vrot.slane %v1305, %v1350
  %v1352 = vlaneseq
  %v1353 = vshrl.u32 %v1352, 7
  %v1354 = vsub.s32 3, %v1353
  %v1355 = vrot.slane %v1306, %v1354
  %v1356 = vlaneseq
  %v1357 = vshrl.u32 %v1356, 7
  %v1358 = vsub.s32 3, %v1357
  %v1359 = vrot.slane %v1307, %v1358
  %v1360 = vlaneseq
  %v1361 = vshrl.u32 %v1360, 7
  %v1362 = vsub.s32 3, %v1361
  %v1363 = vrot.slane %v1308, %v1362
  %v1364 = vlaneseq
  %v1365 = vshrl.u32 %v1364, 7
  %v1366 = vsub.s32 3, %v1365
  %v1367 = vrot.slane %v1309, %v1366
  %v1368 = vlaneseq
  %v1369 = vshrl.u32 %v1368, 7
  %v1370 = vsub.s32 3, %v1369
  %v1371 = vrot.slane %v1310, %v1370
  %v1372 = vlaneseq
  %v1373 = vshrl.u32 %v1372, 7
  %v1374 = vsub.s32 3, %v1373
  %v1375 = vrot.slane %v1311, %v1374
  %v1376 = vlaneseq
  %v1377 = vshrl.u32 %v1376, 7
  %v1378 = vsub.s32 3, %v1377
  %v1379 = vrot.slane %v1312, %v1378
  %v1380 = vlaneseq
  %v1381 = vshrl.u32 %v1380, 7
  %v1382 = vsub.s32 3, %v1381
  %v1383 = vrot.slane %v1313, %v1382
  %v1384 = vlaneseq
  %v1385 = vshrl.u32 %v1384, 7
  %v1386 = vsub.s32 3, %v1385
  %v1387 = vrot.slane %v1314, %v1386
  %v1388 = vlaneseq
  %v1389 = vshrl.u32 %v1388, 7
  %v1390 = vsub.s32 3, %v1389
  %v1391 = vrot.slane %v1315, %v1390
  %v1392 = vsel %vm1326, %v1331, %v1210
  %v1393 = vsel %vm1326, %v1335, %v1211
  %v1394 = vsel %vm1326, %v1339, %v1212
  %v1395 = vsel %vm1326, %v1343, %v1213
  %v1396 = vsel %vm1326, %v1347, %v1214
  %v1397 = vsel %vm1326, %v1351, %v1215
  %v1398 = vsel %vm1326, %v1355, %v1216
  %v1399 = vsel %vm1326, %v1359, %v1217
  %v1400 = vsel %vm1326, %v1363, %v1218
  %v1401 = vsel %vm1327, %v1363, %v1219
  %v1402 = vsel %vm1326, %v1367, %v1220
  %v1403 = vsel %vm1327, %v1367, %v1221
  %v1404 = vsel %vm1326, %v1371, %v1222
  %v1405 = vsel %vm1327, %v1371, %v1223
  %v1406 = vsel %vm1326, %v1375, %v1224
  %v1407 = vsel %vm1327, %v1375, %v1225
  %v1408 = vsel %vm1326, %v1379, %v1226
  %v1409 = vsel %vm1327, %v1379, %v1227
  %v1410 = vsel %vm1326, %v1383, %v1228
  %v1411 = vsel %vm1327, %v1383, %v1229
  %v1412 = vsel %vm1326, %v1387, %v1230
  %v1413 = vsel %vm1327, %v1387, %v1231
  %v1414 = vsel %vm1326, %v1391, %v1232
  %v1415 = vsel %vm1327, %v1391, %v1233
  %v1416 = vmul.f32 %v1331, %v1320
  %v1417 = vmul.f32 %v1331, %v1321
  %v1418 = vmul.f32 %v1335, %v1320
  %v1419 = vmul.f32 %v1335, %v1321
  %v1420 = vmul.f32 %v1339, %v1320
  %v1421 = vmul.f32 %v1339, %v1321
  %v1422 = vmul.f32 %v1343, %v1320
  %v1423 = vmul.f32 %v1343, %v1321
  %v1424 = vmul.f32 %v1347, %v1320
  %v1425 = vmul.f32 %v1347, %v1321
  %v1426 = vmul.f32 %v1351, %v1320
  %v1427 = vmul.f32 %v1351, %v1321
  %v1428 = vmul.f32 %v1355, %v1320
  %v1429 = vmul.f32 %v1355, %v1321
  %v1430 = vmul.f32 %v1359, %v1320
  %v1431 = vmul.f32 %v1359, %v1321
  %v1432 = vmul.f32 %v1363, %v1320
  %v1433 = vmul.f32 %v1363, %v1321
  %v1434 = vmul.f32 %v1367, %v1320
  %v1435 = vmul.f32 %v1367, %v1321
  %v1436 = vmul.f32 %v1371, %v1320
  %v1437 = vmul.f32 %v1371, %v1321
  %v1438 = vmul.f32 %v1375, %v1320
  %v1439 = vmul.f32 %v1375, %v1321
  %v1440 = vmul.f32 %v1379, %v1320
  %v1441 = vmul.f32 %v1379, %v1321
  %v1442 = vmul.f32 %v1383, %v1320
  %v1443 = vmul.f32 %v1383, %v1321
  %v1444 = vmul.f32 %v1387, %v1320
  %v1445 = vmul.f32 %v1387, %v1321
  %v1446 = vmul.f32 %v1391, %v1320
  %v1447 = vmul.f32 %v1391, %v1321
  %v1448 = vsub.f32 %v1266, %v1416
  %v1449 = vsub.f32 %v1267, %v1417
  %v1450 = vsub.f32 %v1268, %v1418
  %v1451 = vsub.f32 %v1269, %v1419
  %v1452 = vsub.f32 %v1270, %v1420
  %v1453 = vsub.f32 %v1271, %v1421
  %v1454 = vsub.f32 %v1272, %v1422
  %v1455 = vsub.f32 %v1273, %v1423
  %v1456 = vsub.f32 %v1274, %v1424
  %v1457 = vsub.f32 %v1275, %v1425
  %v1458 = vsub.f32 %v1276, %v1426
  %v1459 = vsub.f32 %v1277, %v1427
  %v1460 = vsub.f32 %v1278, %v1428
  %v1461 = vsub.f32 %v1279, %v1429
  %v1462 = vsub.f32 %v1280, %v1430
  %v1463 = vsub.f32 %v1281, %v1431
  %v1464 = vsub.f32 %v1282, %v1432
  %v1465 = vsub.f32 %v1283, %v1433
  %v1466 = vsub.f32 %v1284, %v1434
  %v1467 = vsub.f32 %v1285, %v1435
  %v1468 = vsub.f32 %v1286, %v1436
  %v1469 = vsub.f32 %v1287, %v1437
  %v1470 = vsub.f32 %v1288, %v1438
  %v1471 = vsub.f32 %v1289, %v1439
  %v1472 = vsub.f32 %v1290, %v1440
  %v1473 = vsub.f32 %v1291, %v1441
  %v1474 = vsub.f32 %v1292, %v1442
  %v1475 = vsub.f32 %v1293, %v1443
  %v1476 = vsub.f32 %v1294, %v1444
  %v1477 = vsub.f32 %v1295, %v1445
  %v1478 = vsub.f32 %v1296, %v1446
  %v1479 = vsub.f32 %v1297, %v1447
  %v1480 = vmax.f32 %v1456, 1e-20
  %v1481 = vrsqrt.pop %v1480
  %v1482 = vmul.f32 %v1448, %v1481
  %v1483 = vmul.f32 %v1450, %v1481
  %v1484 = vmul.f32 %v1452, %v1481
  %v1485 = vmul.f32 %v1454, %v1481
  %v1486 = vmul.f32 %v1456, %v1481
  %v1487 = vmul.f32 %v1458, %v1481
  %v1488 = vmul.f32 %v1460, %v1481
  %v1489 = vmul.f32 %v1462, %v1481
  %v1490 = vmul.f32 %v1464, %v1481
  %v1491 = vmul.f32 %v1466, %v1481
  %v1492 = vmul.f32 %v1468, %v1481
  %v1493 = vmul.f32 %v1470, %v1481
  %v1494 = vmul.f32 %v1472, %v1481
  %v1495 = vmul.f32 %v1474, %v1481
  %v1496 = vmul.f32 %v1476, %v1481
  %v1497 = vmul.f32 %v1478, %v1481
  %v1498 = vlaneseq
  %v1499 = vshrl.u32 %v1498, 7
  %v1500 = vsub.s32 4, %v1499
  %v1501 = vrot.slane %v1481, %v1500
  %v1502 = vmul.f32 %v1456, %v1501
  %v1503 = vmul.f32 %v1457, %v1501
  %vm1504 = vcmp.eq.s32.totalorder %v750, 4
  %vm1505 = vcmp.eq.s32.totalorder %v751, 4
  %v1506 = vsel %vm1504, 1, 0
  %v1507 = vsel %vm1505, 1, 0
  %vm1508 = vcmp.eq.s32.totalorder %v1506, 1
  %vm1509 = vcmp.eq.s32.totalorder %v1507, 1
  %v1510 = vlaneseq
  %v1511 = vshrl.u32 %v1510, 7
  %v1512 = vsub.s32 4, %v1511
  %v1513 = vrot.slane %v1482, %v1512
  %v1514 = vlaneseq
  %v1515 = vshrl.u32 %v1514, 7
  %v1516 = vsub.s32 4, %v1515
  %v1517 = vrot.slane %v1483, %v1516
  %v1518 = vlaneseq
  %v1519 = vshrl.u32 %v1518, 7
  %v1520 = vsub.s32 4, %v1519
  %v1521 = vrot.slane %v1484, %v1520
  %v1522 = vlaneseq
  %v1523 = vshrl.u32 %v1522, 7
  %v1524 = vsub.s32 4, %v1523
  %v1525 = vrot.slane %v1485, %v1524
  %v1526 = vlaneseq
  %v1527 = vshrl.u32 %v1526, 7
  %v1528 = vsub.s32 4, %v1527
  %v1529 = vrot.slane %v1486, %v1528
  %v1530 = vlaneseq
  %v1531 = vshrl.u32 %v1530, 7
  %v1532 = vsub.s32 4, %v1531
  %v1533 = vrot.slane %v1487, %v1532
  %v1534 = vlaneseq
  %v1535 = vshrl.u32 %v1534, 7
  %v1536 = vsub.s32 4, %v1535
  %v1537 = vrot.slane %v1488, %v1536
  %v1538 = vlaneseq
  %v1539 = vshrl.u32 %v1538, 7
  %v1540 = vsub.s32 4, %v1539
  %v1541 = vrot.slane %v1489, %v1540
  %v1542 = vlaneseq
  %v1543 = vshrl.u32 %v1542, 7
  %v1544 = vsub.s32 4, %v1543
  %v1545 = vrot.slane %v1490, %v1544
  %v1546 = vlaneseq
  %v1547 = vshrl.u32 %v1546, 7
  %v1548 = vsub.s32 4, %v1547
  %v1549 = vrot.slane %v1491, %v1548
  %v1550 = vlaneseq
  %v1551 = vshrl.u32 %v1550, 7
  %v1552 = vsub.s32 4, %v1551
  %v1553 = vrot.slane %v1492, %v1552
  %v1554 = vlaneseq
  %v1555 = vshrl.u32 %v1554, 7
  %v1556 = vsub.s32 4, %v1555
  %v1557 = vrot.slane %v1493, %v1556
  %v1558 = vlaneseq
  %v1559 = vshrl.u32 %v1558, 7
  %v1560 = vsub.s32 4, %v1559
  %v1561 = vrot.slane %v1494, %v1560
  %v1562 = vlaneseq
  %v1563 = vshrl.u32 %v1562, 7
  %v1564 = vsub.s32 4, %v1563
  %v1565 = vrot.slane %v1495, %v1564
  %v1566 = vlaneseq
  %v1567 = vshrl.u32 %v1566, 7
  %v1568 = vsub.s32 4, %v1567
  %v1569 = vrot.slane %v1496, %v1568
  %v1570 = vlaneseq
  %v1571 = vshrl.u32 %v1570, 7
  %v1572 = vsub.s32 4, %v1571
  %v1573 = vrot.slane %v1497, %v1572
  %v1574 = vsel %vm1508, %v1513, %v1392
  %v1575 = vsel %vm1508, %v1517, %v1393
  %v1576 = vsel %vm1508, %v1521, %v1394
  %v1577 = vsel %vm1508, %v1525, %v1395
  %v1578 = vsel %vm1508, %v1529, %v1396
  %v1579 = vsel %vm1508, %v1533, %v1397
  %v1580 = vsel %vm1508, %v1537, %v1398
  %v1581 = vsel %vm1508, %v1541, %v1399
  %v1582 = vsel %vm1508, %v1545, %v1400
  %v1583 = vsel %vm1509, %v1545, %v1401
  %v1584 = vsel %vm1508, %v1549, %v1402
  %v1585 = vsel %vm1509, %v1549, %v1403
  %v1586 = vsel %vm1508, %v1553, %v1404
  %v1587 = vsel %vm1509, %v1553, %v1405
  %v1588 = vsel %vm1508, %v1557, %v1406
  %v1589 = vsel %vm1509, %v1557, %v1407
  %v1590 = vsel %vm1508, %v1561, %v1408
  %v1591 = vsel %vm1509, %v1561, %v1409
  %v1592 = vsel %vm1508, %v1565, %v1410
  %v1593 = vsel %vm1509, %v1565, %v1411
  %v1594 = vsel %vm1508, %v1569, %v1412
  %v1595 = vsel %vm1509, %v1569, %v1413
  %v1596 = vsel %vm1508, %v1573, %v1414
  %v1597 = vsel %vm1509, %v1573, %v1415
  %v1598 = vmul.f32 %v1513, %v1502
  %v1599 = vmul.f32 %v1513, %v1503
  %v1600 = vmul.f32 %v1517, %v1502
  %v1601 = vmul.f32 %v1517, %v1503
  %v1602 = vmul.f32 %v1521, %v1502
  %v1603 = vmul.f32 %v1521, %v1503
  %v1604 = vmul.f32 %v1525, %v1502
  %v1605 = vmul.f32 %v1525, %v1503
  %v1606 = vmul.f32 %v1529, %v1502
  %v1607 = vmul.f32 %v1529, %v1503
  %v1608 = vmul.f32 %v1533, %v1502
  %v1609 = vmul.f32 %v1533, %v1503
  %v1610 = vmul.f32 %v1537, %v1502
  %v1611 = vmul.f32 %v1537, %v1503
  %v1612 = vmul.f32 %v1541, %v1502
  %v1613 = vmul.f32 %v1541, %v1503
  %v1614 = vmul.f32 %v1545, %v1502
  %v1615 = vmul.f32 %v1545, %v1503
  %v1616 = vmul.f32 %v1549, %v1502
  %v1617 = vmul.f32 %v1549, %v1503
  %v1618 = vmul.f32 %v1553, %v1502
  %v1619 = vmul.f32 %v1553, %v1503
  %v1620 = vmul.f32 %v1557, %v1502
  %v1621 = vmul.f32 %v1557, %v1503
  %v1622 = vmul.f32 %v1561, %v1502
  %v1623 = vmul.f32 %v1561, %v1503
  %v1624 = vmul.f32 %v1565, %v1502
  %v1625 = vmul.f32 %v1565, %v1503
  %v1626 = vmul.f32 %v1569, %v1502
  %v1627 = vmul.f32 %v1569, %v1503
  %v1628 = vmul.f32 %v1573, %v1502
  %v1629 = vmul.f32 %v1573, %v1503
  %v1630 = vsub.f32 %v1448, %v1598
  %v1631 = vsub.f32 %v1449, %v1599
  %v1632 = vsub.f32 %v1450, %v1600
  %v1633 = vsub.f32 %v1451, %v1601
  %v1634 = vsub.f32 %v1452, %v1602
  %v1635 = vsub.f32 %v1453, %v1603
  %v1636 = vsub.f32 %v1454, %v1604
  %v1637 = vsub.f32 %v1455, %v1605
  %v1638 = vsub.f32 %v1456, %v1606
  %v1639 = vsub.f32 %v1457, %v1607
  %v1640 = vsub.f32 %v1458, %v1608
  %v1641 = vsub.f32 %v1459, %v1609
  %v1642 = vsub.f32 %v1460, %v1610
  %v1643 = vsub.f32 %v1461, %v1611
  %v1644 = vsub.f32 %v1462, %v1612
  %v1645 = vsub.f32 %v1463, %v1613
  %v1646 = vsub.f32 %v1464, %v1614
  %v1647 = vsub.f32 %v1465, %v1615
  %v1648 = vsub.f32 %v1466, %v1616
  %v1649 = vsub.f32 %v1467, %v1617
  %v1650 = vsub.f32 %v1468, %v1618
  %v1651 = vsub.f32 %v1469, %v1619
  %v1652 = vsub.f32 %v1470, %v1620
  %v1653 = vsub.f32 %v1471, %v1621
  %v1654 = vsub.f32 %v1472, %v1622
  %v1655 = vsub.f32 %v1473, %v1623
  %v1656 = vsub.f32 %v1474, %v1624
  %v1657 = vsub.f32 %v1475, %v1625
  %v1658 = vsub.f32 %v1476, %v1626
  %v1659 = vsub.f32 %v1477, %v1627
  %v1660 = vsub.f32 %v1478, %v1628
  %v1661 = vsub.f32 %v1479, %v1629
  %v1662 = vmax.f32 %v1640, 1e-20
  %v1663 = vrsqrt.pop %v1662
  %v1664 = vmul.f32 %v1630, %v1663
  %v1665 = vmul.f32 %v1632, %v1663
  %v1666 = vmul.f32 %v1634, %v1663
  %v1667 = vmul.f32 %v1636, %v1663
  %v1668 = vmul.f32 %v1638, %v1663
  %v1669 = vmul.f32 %v1640, %v1663
  %v1670 = vmul.f32 %v1642, %v1663
  %v1671 = vmul.f32 %v1644, %v1663
  %v1672 = vmul.f32 %v1646, %v1663
  %v1673 = vmul.f32 %v1648, %v1663
  %v1674 = vmul.f32 %v1650, %v1663
  %v1675 = vmul.f32 %v1652, %v1663
  %v1676 = vmul.f32 %v1654, %v1663
  %v1677 = vmul.f32 %v1656, %v1663
  %v1678 = vmul.f32 %v1658, %v1663
  %v1679 = vmul.f32 %v1660, %v1663
  %v1680 = vlaneseq
  %v1681 = vshrl.u32 %v1680, 7
  %v1682 = vsub.s32 5, %v1681
  %v1683 = vrot.slane %v1663, %v1682
  %v1684 = vmul.f32 %v1640, %v1683
  %v1685 = vmul.f32 %v1641, %v1683
  %vm1686 = vcmp.eq.s32.totalorder %v750, 5
  %vm1687 = vcmp.eq.s32.totalorder %v751, 5
  %v1688 = vsel %vm1686, 1, 0
  %v1689 = vsel %vm1687, 1, 0
  %vm1690 = vcmp.eq.s32.totalorder %v1688, 1
  %vm1691 = vcmp.eq.s32.totalorder %v1689, 1
  %v1692 = vlaneseq
  %v1693 = vshrl.u32 %v1692, 7
  %v1694 = vsub.s32 5, %v1693
  %v1695 = vrot.slane %v1664, %v1694
  %v1696 = vlaneseq
  %v1697 = vshrl.u32 %v1696, 7
  %v1698 = vsub.s32 5, %v1697
  %v1699 = vrot.slane %v1665, %v1698
  %v1700 = vlaneseq
  %v1701 = vshrl.u32 %v1700, 7
  %v1702 = vsub.s32 5, %v1701
  %v1703 = vrot.slane %v1666, %v1702
  %v1704 = vlaneseq
  %v1705 = vshrl.u32 %v1704, 7
  %v1706 = vsub.s32 5, %v1705
  %v1707 = vrot.slane %v1667, %v1706
  %v1708 = vlaneseq
  %v1709 = vshrl.u32 %v1708, 7
  %v1710 = vsub.s32 5, %v1709
  %v1711 = vrot.slane %v1668, %v1710
  %v1712 = vlaneseq
  %v1713 = vshrl.u32 %v1712, 7
  %v1714 = vsub.s32 5, %v1713
  %v1715 = vrot.slane %v1669, %v1714
  %v1716 = vlaneseq
  %v1717 = vshrl.u32 %v1716, 7
  %v1718 = vsub.s32 5, %v1717
  %v1719 = vrot.slane %v1670, %v1718
  %v1720 = vlaneseq
  %v1721 = vshrl.u32 %v1720, 7
  %v1722 = vsub.s32 5, %v1721
  %v1723 = vrot.slane %v1671, %v1722
  %v1724 = vlaneseq
  %v1725 = vshrl.u32 %v1724, 7
  %v1726 = vsub.s32 5, %v1725
  %v1727 = vrot.slane %v1672, %v1726
  %v1728 = vlaneseq
  %v1729 = vshrl.u32 %v1728, 7
  %v1730 = vsub.s32 5, %v1729
  %v1731 = vrot.slane %v1673, %v1730
  %v1732 = vlaneseq
  %v1733 = vshrl.u32 %v1732, 7
  %v1734 = vsub.s32 5, %v1733
  %v1735 = vrot.slane %v1674, %v1734
  %v1736 = vlaneseq
  %v1737 = vshrl.u32 %v1736, 7
  %v1738 = vsub.s32 5, %v1737
  %v1739 = vrot.slane %v1675, %v1738
  %v1740 = vlaneseq
  %v1741 = vshrl.u32 %v1740, 7
  %v1742 = vsub.s32 5, %v1741
  %v1743 = vrot.slane %v1676, %v1742
  %v1744 = vlaneseq
  %v1745 = vshrl.u32 %v1744, 7
  %v1746 = vsub.s32 5, %v1745
  %v1747 = vrot.slane %v1677, %v1746
  %v1748 = vlaneseq
  %v1749 = vshrl.u32 %v1748, 7
  %v1750 = vsub.s32 5, %v1749
  %v1751 = vrot.slane %v1678, %v1750
  %v1752 = vlaneseq
  %v1753 = vshrl.u32 %v1752, 7
  %v1754 = vsub.s32 5, %v1753
  %v1755 = vrot.slane %v1679, %v1754
  %v1756 = vsel %vm1690, %v1695, %v1574
  %v1757 = vsel %vm1690, %v1699, %v1575
  %v1758 = vsel %vm1690, %v1703, %v1576
  %v1759 = vsel %vm1690, %v1707, %v1577
  %v1760 = vsel %vm1690, %v1711, %v1578
  %v1761 = vsel %vm1690, %v1715, %v1579
  %v1762 = vsel %vm1690, %v1719, %v1580
  %v1763 = vsel %vm1690, %v1723, %v1581
  %v1764 = vsel %vm1690, %v1727, %v1582
  %v1765 = vsel %vm1691, %v1727, %v1583
  %v1766 = vsel %vm1690, %v1731, %v1584
  %v1767 = vsel %vm1691, %v1731, %v1585
  %v1768 = vsel %vm1690, %v1735, %v1586
  %v1769 = vsel %vm1691, %v1735, %v1587
  %v1770 = vsel %vm1690, %v1739, %v1588
  %v1771 = vsel %vm1691, %v1739, %v1589
  %v1772 = vsel %vm1690, %v1743, %v1590
  %v1773 = vsel %vm1691, %v1743, %v1591
  %v1774 = vsel %vm1690, %v1747, %v1592
  %v1775 = vsel %vm1691, %v1747, %v1593
  %v1776 = vsel %vm1690, %v1751, %v1594
  %v1777 = vsel %vm1691, %v1751, %v1595
  %v1778 = vsel %vm1690, %v1755, %v1596
  %v1779 = vsel %vm1691, %v1755, %v1597
  %v1780 = vmul.f32 %v1695, %v1684
  %v1781 = vmul.f32 %v1695, %v1685
  %v1782 = vmul.f32 %v1699, %v1684
  %v1783 = vmul.f32 %v1699, %v1685
  %v1784 = vmul.f32 %v1703, %v1684
  %v1785 = vmul.f32 %v1703, %v1685
  %v1786 = vmul.f32 %v1707, %v1684
  %v1787 = vmul.f32 %v1707, %v1685
  %v1788 = vmul.f32 %v1711, %v1684
  %v1789 = vmul.f32 %v1711, %v1685
  %v1790 = vmul.f32 %v1715, %v1684
  %v1791 = vmul.f32 %v1715, %v1685
  %v1792 = vmul.f32 %v1719, %v1684
  %v1793 = vmul.f32 %v1719, %v1685
  %v1794 = vmul.f32 %v1723, %v1684
  %v1795 = vmul.f32 %v1723, %v1685
  %v1796 = vmul.f32 %v1727, %v1684
  %v1797 = vmul.f32 %v1727, %v1685
  %v1798 = vmul.f32 %v1731, %v1684
  %v1799 = vmul.f32 %v1731, %v1685
  %v1800 = vmul.f32 %v1735, %v1684
  %v1801 = vmul.f32 %v1735, %v1685
  %v1802 = vmul.f32 %v1739, %v1684
  %v1803 = vmul.f32 %v1739, %v1685
  %v1804 = vmul.f32 %v1743, %v1684
  %v1805 = vmul.f32 %v1743, %v1685
  %v1806 = vmul.f32 %v1747, %v1684
  %v1807 = vmul.f32 %v1747, %v1685
  %v1808 = vmul.f32 %v1751, %v1684
  %v1809 = vmul.f32 %v1751, %v1685
  %v1810 = vmul.f32 %v1755, %v1684
  %v1811 = vmul.f32 %v1755, %v1685
  %v1812 = vsub.f32 %v1630, %v1780
  %v1813 = vsub.f32 %v1631, %v1781
  %v1814 = vsub.f32 %v1632, %v1782
  %v1815 = vsub.f32 %v1633, %v1783
  %v1816 = vsub.f32 %v1634, %v1784
  %v1817 = vsub.f32 %v1635, %v1785
  %v1818 = vsub.f32 %v1636, %v1786
  %v1819 = vsub.f32 %v1637, %v1787
  %v1820 = vsub.f32 %v1638, %v1788
  %v1821 = vsub.f32 %v1639, %v1789
  %v1822 = vsub.f32 %v1640, %v1790
  %v1823 = vsub.f32 %v1641, %v1791
  %v1824 = vsub.f32 %v1642, %v1792
  %v1825 = vsub.f32 %v1643, %v1793
  %v1826 = vsub.f32 %v1644, %v1794
  %v1827 = vsub.f32 %v1645, %v1795
  %v1828 = vsub.f32 %v1646, %v1796
  %v1829 = vsub.f32 %v1647, %v1797
  %v1830 = vsub.f32 %v1648, %v1798
  %v1831 = vsub.f32 %v1649, %v1799
  %v1832 = vsub.f32 %v1650, %v1800
  %v1833 = vsub.f32 %v1651, %v1801
  %v1834 = vsub.f32 %v1652, %v1802
  %v1835 = vsub.f32 %v1653, %v1803
  %v1836 = vsub.f32 %v1654, %v1804
  %v1837 = vsub.f32 %v1655, %v1805
  %v1838 = vsub.f32 %v1656, %v1806
  %v1839 = vsub.f32 %v1657, %v1807
  %v1840 = vsub.f32 %v1658, %v1808
  %v1841 = vsub.f32 %v1659, %v1809
  %v1842 = vsub.f32 %v1660, %v1810
  %v1843 = vsub.f32 %v1661, %v1811
  %v1844 = vmax.f32 %v1824, 1e-20
  %v1845 = vrsqrt.pop %v1844
  %v1846 = vmul.f32 %v1812, %v1845
  %v1847 = vmul.f32 %v1814, %v1845
  %v1848 = vmul.f32 %v1816, %v1845
  %v1849 = vmul.f32 %v1818, %v1845
  %v1850 = vmul.f32 %v1820, %v1845
  %v1851 = vmul.f32 %v1822, %v1845
  %v1852 = vmul.f32 %v1824, %v1845
  %v1853 = vmul.f32 %v1826, %v1845
  %v1854 = vmul.f32 %v1828, %v1845
  %v1855 = vmul.f32 %v1830, %v1845
  %v1856 = vmul.f32 %v1832, %v1845
  %v1857 = vmul.f32 %v1834, %v1845
  %v1858 = vmul.f32 %v1836, %v1845
  %v1859 = vmul.f32 %v1838, %v1845
  %v1860 = vmul.f32 %v1840, %v1845
  %v1861 = vmul.f32 %v1842, %v1845
  %v1862 = vlaneseq
  %v1863 = vshrl.u32 %v1862, 7
  %v1864 = vsub.s32 6, %v1863
  %v1865 = vrot.slane %v1845, %v1864
  %v1866 = vmul.f32 %v1824, %v1865
  %v1867 = vmul.f32 %v1825, %v1865
  %vm1868 = vcmp.eq.s32.totalorder %v750, 6
  %vm1869 = vcmp.eq.s32.totalorder %v751, 6
  %v1870 = vsel %vm1868, 1, 0
  %v1871 = vsel %vm1869, 1, 0
  %vm1872 = vcmp.eq.s32.totalorder %v1870, 1
  %vm1873 = vcmp.eq.s32.totalorder %v1871, 1
  %v1874 = vlaneseq
  %v1875 = vshrl.u32 %v1874, 7
  %v1876 = vsub.s32 6, %v1875
  %v1877 = vrot.slane %v1846, %v1876
  %v1878 = vlaneseq
  %v1879 = vshrl.u32 %v1878, 7
  %v1880 = vsub.s32 6, %v1879
  %v1881 = vrot.slane %v1847, %v1880
  %v1882 = vlaneseq
  %v1883 = vshrl.u32 %v1882, 7
  %v1884 = vsub.s32 6, %v1883
  %v1885 = vrot.slane %v1848, %v1884
  %v1886 = vlaneseq
  %v1887 = vshrl.u32 %v1886, 7
  %v1888 = vsub.s32 6, %v1887
  %v1889 = vrot.slane %v1849, %v1888
  %v1890 = vlaneseq
  %v1891 = vshrl.u32 %v1890, 7
  %v1892 = vsub.s32 6, %v1891
  %v1893 = vrot.slane %v1850, %v1892
  %v1894 = vlaneseq
  %v1895 = vshrl.u32 %v1894, 7
  %v1896 = vsub.s32 6, %v1895
  %v1897 = vrot.slane %v1851, %v1896
  %v1898 = vlaneseq
  %v1899 = vshrl.u32 %v1898, 7
  %v1900 = vsub.s32 6, %v1899
  %v1901 = vrot.slane %v1852, %v1900
  %v1902 = vlaneseq
  %v1903 = vshrl.u32 %v1902, 7
  %v1904 = vsub.s32 6, %v1903
  %v1905 = vrot.slane %v1853, %v1904
  %v1906 = vlaneseq
  %v1907 = vshrl.u32 %v1906, 7
  %v1908 = vsub.s32 6, %v1907
  %v1909 = vrot.slane %v1854, %v1908
  %v1910 = vlaneseq
  %v1911 = vshrl.u32 %v1910, 7
  %v1912 = vsub.s32 6, %v1911
  %v1913 = vrot.slane %v1855, %v1912
  %v1914 = vlaneseq
  %v1915 = vshrl.u32 %v1914, 7
  %v1916 = vsub.s32 6, %v1915
  %v1917 = vrot.slane %v1856, %v1916
  %v1918 = vlaneseq
  %v1919 = vshrl.u32 %v1918, 7
  %v1920 = vsub.s32 6, %v1919
  %v1921 = vrot.slane %v1857, %v1920
  %v1922 = vlaneseq
  %v1923 = vshrl.u32 %v1922, 7
  %v1924 = vsub.s32 6, %v1923
  %v1925 = vrot.slane %v1858, %v1924
  %v1926 = vlaneseq
  %v1927 = vshrl.u32 %v1926, 7
  %v1928 = vsub.s32 6, %v1927
  %v1929 = vrot.slane %v1859, %v1928
  %v1930 = vlaneseq
  %v1931 = vshrl.u32 %v1930, 7
  %v1932 = vsub.s32 6, %v1931
  %v1933 = vrot.slane %v1860, %v1932
  %v1934 = vlaneseq
  %v1935 = vshrl.u32 %v1934, 7
  %v1936 = vsub.s32 6, %v1935
  %v1937 = vrot.slane %v1861, %v1936
  %v1938 = vsel %vm1872, %v1877, %v1756
  %v1939 = vsel %vm1872, %v1881, %v1757
  %v1940 = vsel %vm1872, %v1885, %v1758
  %v1941 = vsel %vm1872, %v1889, %v1759
  %v1942 = vsel %vm1872, %v1893, %v1760
  %v1943 = vsel %vm1872, %v1897, %v1761
  %v1944 = vsel %vm1872, %v1901, %v1762
  %v1945 = vsel %vm1872, %v1905, %v1763
  %v1946 = vsel %vm1872, %v1909, %v1764
  %v1947 = vsel %vm1873, %v1909, %v1765
  %v1948 = vsel %vm1872, %v1913, %v1766
  %v1949 = vsel %vm1873, %v1913, %v1767
  %v1950 = vsel %vm1872, %v1917, %v1768
  %v1951 = vsel %vm1873, %v1917, %v1769
  %v1952 = vsel %vm1872, %v1921, %v1770
  %v1953 = vsel %vm1873, %v1921, %v1771
  %v1954 = vsel %vm1872, %v1925, %v1772
  %v1955 = vsel %vm1873, %v1925, %v1773
  %v1956 = vsel %vm1872, %v1929, %v1774
  %v1957 = vsel %vm1873, %v1929, %v1775
  %v1958 = vsel %vm1872, %v1933, %v1776
  %v1959 = vsel %vm1873, %v1933, %v1777
  %v1960 = vsel %vm1872, %v1937, %v1778
  %v1961 = vsel %vm1873, %v1937, %v1779
  %v1962 = vmul.f32 %v1877, %v1866
  %v1963 = vmul.f32 %v1877, %v1867
  %v1964 = vmul.f32 %v1881, %v1866
  %v1965 = vmul.f32 %v1881, %v1867
  %v1966 = vmul.f32 %v1885, %v1866
  %v1967 = vmul.f32 %v1885, %v1867
  %v1968 = vmul.f32 %v1889, %v1866
  %v1969 = vmul.f32 %v1889, %v1867
  %v1970 = vmul.f32 %v1893, %v1866
  %v1971 = vmul.f32 %v1893, %v1867
  %v1972 = vmul.f32 %v1897, %v1866
  %v1973 = vmul.f32 %v1897, %v1867
  %v1974 = vmul.f32 %v1901, %v1866
  %v1975 = vmul.f32 %v1901, %v1867
  %v1976 = vmul.f32 %v1905, %v1866
  %v1977 = vmul.f32 %v1905, %v1867
  %v1978 = vmul.f32 %v1909, %v1866
  %v1979 = vmul.f32 %v1909, %v1867
  %v1980 = vmul.f32 %v1913, %v1866
  %v1981 = vmul.f32 %v1913, %v1867
  %v1982 = vmul.f32 %v1917, %v1866
  %v1983 = vmul.f32 %v1917, %v1867
  %v1984 = vmul.f32 %v1921, %v1866
  %v1985 = vmul.f32 %v1921, %v1867
  %v1986 = vmul.f32 %v1925, %v1866
  %v1987 = vmul.f32 %v1925, %v1867
  %v1988 = vmul.f32 %v1929, %v1866
  %v1989 = vmul.f32 %v1929, %v1867
  %v1990 = vmul.f32 %v1933, %v1866
  %v1991 = vmul.f32 %v1933, %v1867
  %v1992 = vmul.f32 %v1937, %v1866
  %v1993 = vmul.f32 %v1937, %v1867
  %v1994 = vsub.f32 %v1812, %v1962
  %v1995 = vsub.f32 %v1813, %v1963
  %v1996 = vsub.f32 %v1814, %v1964
  %v1997 = vsub.f32 %v1815, %v1965
  %v1998 = vsub.f32 %v1816, %v1966
  %v1999 = vsub.f32 %v1817, %v1967
  %v2000 = vsub.f32 %v1818, %v1968
  %v2001 = vsub.f32 %v1819, %v1969
  %v2002 = vsub.f32 %v1820, %v1970
  %v2003 = vsub.f32 %v1821, %v1971
  %v2004 = vsub.f32 %v1822, %v1972
  %v2005 = vsub.f32 %v1823, %v1973
  %v2006 = vsub.f32 %v1824, %v1974
  %v2007 = vsub.f32 %v1825, %v1975
  %v2008 = vsub.f32 %v1826, %v1976
  %v2009 = vsub.f32 %v1827, %v1977
  %v2010 = vsub.f32 %v1828, %v1978
  %v2011 = vsub.f32 %v1829, %v1979
  %v2012 = vsub.f32 %v1830, %v1980
  %v2013 = vsub.f32 %v1831, %v1981
  %v2014 = vsub.f32 %v1832, %v1982
  %v2015 = vsub.f32 %v1833, %v1983
  %v2016 = vsub.f32 %v1834, %v1984
  %v2017 = vsub.f32 %v1835, %v1985
  %v2018 = vsub.f32 %v1836, %v1986
  %v2019 = vsub.f32 %v1837, %v1987
  %v2020 = vsub.f32 %v1838, %v1988
  %v2021 = vsub.f32 %v1839, %v1989
  %v2022 = vsub.f32 %v1840, %v1990
  %v2023 = vsub.f32 %v1841, %v1991
  %v2024 = vsub.f32 %v1842, %v1992
  %v2025 = vsub.f32 %v1843, %v1993
  %v2026 = vmax.f32 %v2008, 1e-20
  %v2027 = vrsqrt.pop %v2026
  %v2028 = vmul.f32 %v1994, %v2027
  %v2029 = vmul.f32 %v1996, %v2027
  %v2030 = vmul.f32 %v1998, %v2027
  %v2031 = vmul.f32 %v2000, %v2027
  %v2032 = vmul.f32 %v2002, %v2027
  %v2033 = vmul.f32 %v2004, %v2027
  %v2034 = vmul.f32 %v2006, %v2027
  %v2035 = vmul.f32 %v2008, %v2027
  %v2036 = vmul.f32 %v2010, %v2027
  %v2037 = vmul.f32 %v2012, %v2027
  %v2038 = vmul.f32 %v2014, %v2027
  %v2039 = vmul.f32 %v2016, %v2027
  %v2040 = vmul.f32 %v2018, %v2027
  %v2041 = vmul.f32 %v2020, %v2027
  %v2042 = vmul.f32 %v2022, %v2027
  %v2043 = vmul.f32 %v2024, %v2027
  %v2044 = vlaneseq
  %v2045 = vshrl.u32 %v2044, 7
  %v2046 = vsub.s32 7, %v2045
  %v2047 = vrot.slane %v2027, %v2046
  %v2048 = vmul.f32 %v2009, %v2047
  %vm2049 = vcmp.eq.s32.totalorder %v750, 7
  %vm2050 = vcmp.eq.s32.totalorder %v751, 7
  %v2051 = vsel %vm2049, 1, 0
  %v2052 = vsel %vm2050, 1, 0
  %vm2053 = vcmp.eq.s32.totalorder %v2051, 1
  %vm2054 = vcmp.eq.s32.totalorder %v2052, 1
  %v2055 = vlaneseq
  %v2056 = vshrl.u32 %v2055, 7
  %v2057 = vsub.s32 7, %v2056
  %v2058 = vrot.slane %v2028, %v2057
  %v2059 = vlaneseq
  %v2060 = vshrl.u32 %v2059, 7
  %v2061 = vsub.s32 7, %v2060
  %v2062 = vrot.slane %v2029, %v2061
  %v2063 = vlaneseq
  %v2064 = vshrl.u32 %v2063, 7
  %v2065 = vsub.s32 7, %v2064
  %v2066 = vrot.slane %v2030, %v2065
  %v2067 = vlaneseq
  %v2068 = vshrl.u32 %v2067, 7
  %v2069 = vsub.s32 7, %v2068
  %v2070 = vrot.slane %v2031, %v2069
  %v2071 = vlaneseq
  %v2072 = vshrl.u32 %v2071, 7
  %v2073 = vsub.s32 7, %v2072
  %v2074 = vrot.slane %v2032, %v2073
  %v2075 = vlaneseq
  %v2076 = vshrl.u32 %v2075, 7
  %v2077 = vsub.s32 7, %v2076
  %v2078 = vrot.slane %v2033, %v2077
  %v2079 = vlaneseq
  %v2080 = vshrl.u32 %v2079, 7
  %v2081 = vsub.s32 7, %v2080
  %v2082 = vrot.slane %v2034, %v2081
  %v2083 = vlaneseq
  %v2084 = vshrl.u32 %v2083, 7
  %v2085 = vsub.s32 7, %v2084
  %v2086 = vrot.slane %v2035, %v2085
  %v2087 = vlaneseq
  %v2088 = vshrl.u32 %v2087, 7
  %v2089 = vsub.s32 7, %v2088
  %v2090 = vrot.slane %v2036, %v2089
  %v2091 = vlaneseq
  %v2092 = vshrl.u32 %v2091, 7
  %v2093 = vsub.s32 7, %v2092
  %v2094 = vrot.slane %v2037, %v2093
  %v2095 = vlaneseq
  %v2096 = vshrl.u32 %v2095, 7
  %v2097 = vsub.s32 7, %v2096
  %v2098 = vrot.slane %v2038, %v2097
  %v2099 = vlaneseq
  %v2100 = vshrl.u32 %v2099, 7
  %v2101 = vsub.s32 7, %v2100
  %v2102 = vrot.slane %v2039, %v2101
  %v2103 = vlaneseq
  %v2104 = vshrl.u32 %v2103, 7
  %v2105 = vsub.s32 7, %v2104
  %v2106 = vrot.slane %v2040, %v2105
  %v2107 = vlaneseq
  %v2108 = vshrl.u32 %v2107, 7
  %v2109 = vsub.s32 7, %v2108
  %v2110 = vrot.slane %v2041, %v2109
  %v2111 = vlaneseq
  %v2112 = vshrl.u32 %v2111, 7
  %v2113 = vsub.s32 7, %v2112
  %v2114 = vrot.slane %v2042, %v2113
  %v2115 = vlaneseq
  %v2116 = vshrl.u32 %v2115, 7
  %v2117 = vsub.s32 7, %v2116
  %v2118 = vrot.slane %v2043, %v2117
  %v2119 = vsel %vm2053, %v2058, %v1938
  %v2120 = vsel %vm2053, %v2062, %v1939
  %v2121 = vsel %vm2053, %v2066, %v1940
  %v2122 = vsel %vm2053, %v2070, %v1941
  %v2123 = vsel %vm2053, %v2074, %v1942
  %v2124 = vsel %vm2053, %v2078, %v1943
  %v2125 = vsel %vm2053, %v2082, %v1944
  %v2126 = vsel %vm2053, %v2086, %v1945
  %v2127 = vsel %vm2053, %v2090, %v1946
  %v2128 = vsel %vm2054, %v2090, %v1947
  %v2129 = vsel %vm2053, %v2094, %v1948
  %v2130 = vsel %vm2054, %v2094, %v1949
  %v2131 = vsel %vm2053, %v2098, %v1950
  %v2132 = vsel %vm2054, %v2098, %v1951
  %v2133 = vsel %vm2053, %v2102, %v1952
  %v2134 = vsel %vm2054, %v2102, %v1953
  %v2135 = vsel %vm2053, %v2106, %v1954
  %v2136 = vsel %vm2054, %v2106, %v1955
  %v2137 = vsel %vm2053, %v2110, %v1956
  %v2138 = vsel %vm2054, %v2110, %v1957
  %v2139 = vsel %vm2053, %v2114, %v1958
  %v2140 = vsel %vm2054, %v2114, %v1959
  %v2141 = vsel %vm2053, %v2118, %v1960
  %v2142 = vsel %vm2054, %v2118, %v1961
  %v2143 = vmul.f32 %v2058, %v2048
  %v2144 = vmul.f32 %v2062, %v2048
  %v2145 = vmul.f32 %v2066, %v2048
  %v2146 = vmul.f32 %v2070, %v2048
  %v2147 = vmul.f32 %v2074, %v2048
  %v2148 = vmul.f32 %v2078, %v2048
  %v2149 = vmul.f32 %v2082, %v2048
  %v2150 = vmul.f32 %v2086, %v2048
  %v2151 = vmul.f32 %v2090, %v2048
  %v2152 = vmul.f32 %v2094, %v2048
  %v2153 = vmul.f32 %v2098, %v2048
  %v2154 = vmul.f32 %v2102, %v2048
  %v2155 = vmul.f32 %v2106, %v2048
  %v2156 = vmul.f32 %v2110, %v2048
  %v2157 = vmul.f32 %v2114, %v2048
  %v2158 = vmul.f32 %v2118, %v2048
  %v2159 = vsub.f32 %v1995, %v2143
  %v2160 = vsub.f32 %v1997, %v2144
  %v2161 = vsub.f32 %v1999, %v2145
  %v2162 = vsub.f32 %v2001, %v2146
  %v2163 = vsub.f32 %v2003, %v2147
  %v2164 = vsub.f32 %v2005, %v2148
  %v2165 = vsub.f32 %v2007, %v2149
  %v2166 = vsub.f32 %v2009, %v2150
  %v2167 = vsub.f32 %v2011, %v2151
  %v2168 = vsub.f32 %v2013, %v2152
  %v2169 = vsub.f32 %v2015, %v2153
  %v2170 = vsub.f32 %v2017, %v2154
  %v2171 = vsub.f32 %v2019, %v2155
  %v2172 = vsub.f32 %v2021, %v2156
  %v2173 = vsub.f32 %v2023, %v2157
  %v2174 = vsub.f32 %v2025, %v2158
  %v2175 = vmax.f32 %v2167, 1e-20
  %v2176 = vrsqrt.pop %v2175
  %v2177 = vmul.f32 %v2159, %v2176
  %v2178 = vmul.f32 %v2160, %v2176
  %v2179 = vmul.f32 %v2161, %v2176
  %v2180 = vmul.f32 %v2162, %v2176
  %v2181 = vmul.f32 %v2163, %v2176
  %v2182 = vmul.f32 %v2164, %v2176
  %v2183 = vmul.f32 %v2165, %v2176
  %v2184 = vmul.f32 %v2166, %v2176
  %v2185 = vmul.f32 %v2167, %v2176
  %v2186 = vmul.f32 %v2168, %v2176
  %v2187 = vmul.f32 %v2169, %v2176
  %v2188 = vmul.f32 %v2170, %v2176
  %v2189 = vmul.f32 %v2171, %v2176
  %v2190 = vmul.f32 %v2172, %v2176
  %v2191 = vmul.f32 %v2173, %v2176
  %v2192 = vmul.f32 %v2174, %v2176
  %v2193 = vlaneseq
  %v2194 = vshrl.u32 %v2193, 7
  %v2195 = vsub.s32 0, %v2194
  %v2196 = vrot.slane %v2176, %v2195
  %v2197 = vmul.f32 %v2167, %v2196
  %vm2198 = vcmp.eq.s32.totalorder %v750, 8
  %vm2199 = vcmp.eq.s32.totalorder %v751, 8
  %v2200 = vsel %vm2198, 1, 0
  %v2201 = vsel %vm2199, 1, 0
  %vm2202 = vcmp.eq.s32.totalorder %v2200, 1
  %vm2203 = vcmp.eq.s32.totalorder %v2201, 1
  %v2204 = vlaneseq
  %v2205 = vshrl.u32 %v2204, 7
  %v2206 = vsub.s32 0, %v2205
  %v2207 = vrot.slane %v2177, %v2206
  %v2208 = vlaneseq
  %v2209 = vshrl.u32 %v2208, 7
  %v2210 = vsub.s32 0, %v2209
  %v2211 = vrot.slane %v2178, %v2210
  %v2212 = vlaneseq
  %v2213 = vshrl.u32 %v2212, 7
  %v2214 = vsub.s32 0, %v2213
  %v2215 = vrot.slane %v2179, %v2214
  %v2216 = vlaneseq
  %v2217 = vshrl.u32 %v2216, 7
  %v2218 = vsub.s32 0, %v2217
  %v2219 = vrot.slane %v2180, %v2218
  %v2220 = vlaneseq
  %v2221 = vshrl.u32 %v2220, 7
  %v2222 = vsub.s32 0, %v2221
  %v2223 = vrot.slane %v2181, %v2222
  %v2224 = vlaneseq
  %v2225 = vshrl.u32 %v2224, 7
  %v2226 = vsub.s32 0, %v2225
  %v2227 = vrot.slane %v2182, %v2226
  %v2228 = vlaneseq
  %v2229 = vshrl.u32 %v2228, 7
  %v2230 = vsub.s32 0, %v2229
  %v2231 = vrot.slane %v2183, %v2230
  %v2232 = vlaneseq
  %v2233 = vshrl.u32 %v2232, 7
  %v2234 = vsub.s32 0, %v2233
  %v2235 = vrot.slane %v2184, %v2234
  %v2236 = vlaneseq
  %v2237 = vshrl.u32 %v2236, 7
  %v2238 = vsub.s32 0, %v2237
  %v2239 = vrot.slane %v2185, %v2238
  %v2240 = vlaneseq
  %v2241 = vshrl.u32 %v2240, 7
  %v2242 = vsub.s32 0, %v2241
  %v2243 = vrot.slane %v2186, %v2242
  %v2244 = vlaneseq
  %v2245 = vshrl.u32 %v2244, 7
  %v2246 = vsub.s32 0, %v2245
  %v2247 = vrot.slane %v2187, %v2246
  %v2248 = vlaneseq
  %v2249 = vshrl.u32 %v2248, 7
  %v2250 = vsub.s32 0, %v2249
  %v2251 = vrot.slane %v2188, %v2250
  %v2252 = vlaneseq
  %v2253 = vshrl.u32 %v2252, 7
  %v2254 = vsub.s32 0, %v2253
  %v2255 = vrot.slane %v2189, %v2254
  %v2256 = vlaneseq
  %v2257 = vshrl.u32 %v2256, 7
  %v2258 = vsub.s32 0, %v2257
  %v2259 = vrot.slane %v2190, %v2258
  %v2260 = vlaneseq
  %v2261 = vshrl.u32 %v2260, 7
  %v2262 = vsub.s32 0, %v2261
  %v2263 = vrot.slane %v2191, %v2262
  %v2264 = vlaneseq
  %v2265 = vshrl.u32 %v2264, 7
  %v2266 = vsub.s32 0, %v2265
  %v2267 = vrot.slane %v2192, %v2266
  %v2268 = vsel %vm2202, %v2207, %v2119
  %v2269 = vsel %vm2202, %v2211, %v2120
  %v2270 = vsel %vm2202, %v2215, %v2121
  %v2271 = vsel %vm2202, %v2219, %v2122
  %v2272 = vsel %vm2202, %v2223, %v2123
  %v2273 = vsel %vm2202, %v2227, %v2124
  %v2274 = vsel %vm2202, %v2231, %v2125
  %v2275 = vsel %vm2202, %v2235, %v2126
  %v2276 = vsel %vm2202, %v2239, %v2127
  %v2277 = vsel %vm2203, %v2239, %v2128
  %v2278 = vsel %vm2202, %v2243, %v2129
  %v2279 = vsel %vm2203, %v2243, %v2130
  %v2280 = vsel %vm2202, %v2247, %v2131
  %v2281 = vsel %vm2203, %v2247, %v2132
  %v2282 = vsel %vm2202, %v2251, %v2133
  %v2283 = vsel %vm2203, %v2251, %v2134
  %v2284 = vsel %vm2202, %v2255, %v2135
  %v2285 = vsel %vm2203, %v2255, %v2136
  %v2286 = vsel %vm2202, %v2259, %v2137
  %v2287 = vsel %vm2203, %v2259, %v2138
  %v2288 = vsel %vm2202, %v2263, %v2139
  %v2289 = vsel %vm2203, %v2263, %v2140
  %v2290 = vsel %vm2202, %v2267, %v2141
  %v2291 = vsel %vm2203, %v2267, %v2142
  %v2292 = vmul.f32 %v2207, %v2197
  %v2293 = vmul.f32 %v2211, %v2197
  %v2294 = vmul.f32 %v2215, %v2197
  %v2295 = vmul.f32 %v2219, %v2197
  %v2296 = vmul.f32 %v2223, %v2197
  %v2297 = vmul.f32 %v2227, %v2197
  %v2298 = vmul.f32 %v2231, %v2197
  %v2299 = vmul.f32 %v2235, %v2197
  %v2300 = vmul.f32 %v2239, %v2197
  %v2301 = vmul.f32 %v2243, %v2197
  %v2302 = vmul.f32 %v2247, %v2197
  %v2303 = vmul.f32 %v2251, %v2197
  %v2304 = vmul.f32 %v2255, %v2197
  %v2305 = vmul.f32 %v2259, %v2197
  %v2306 = vmul.f32 %v2263, %v2197
  %v2307 = vmul.f32 %v2267, %v2197
  %v2308 = vsub.f32 %v2159, %v2292
  %v2309 = vsub.f32 %v2160, %v2293
  %v2310 = vsub.f32 %v2161, %v2294
  %v2311 = vsub.f32 %v2162, %v2295
  %v2312 = vsub.f32 %v2163, %v2296
  %v2313 = vsub.f32 %v2164, %v2297
  %v2314 = vsub.f32 %v2165, %v2298
  %v2315 = vsub.f32 %v2166, %v2299
  %v2316 = vsub.f32 %v2167, %v2300
  %v2317 = vsub.f32 %v2168, %v2301
  %v2318 = vsub.f32 %v2169, %v2302
  %v2319 = vsub.f32 %v2170, %v2303
  %v2320 = vsub.f32 %v2171, %v2304
  %v2321 = vsub.f32 %v2172, %v2305
  %v2322 = vsub.f32 %v2173, %v2306
  %v2323 = vsub.f32 %v2174, %v2307
  %v2324 = vmax.f32 %v2317, 1e-20
  %v2325 = vrsqrt.pop %v2324
  %v2326 = vmul.f32 %v2308, %v2325
  %v2327 = vmul.f32 %v2309, %v2325
  %v2328 = vmul.f32 %v2310, %v2325
  %v2329 = vmul.f32 %v2311, %v2325
  %v2330 = vmul.f32 %v2312, %v2325
  %v2331 = vmul.f32 %v2313, %v2325
  %v2332 = vmul.f32 %v2314, %v2325
  %v2333 = vmul.f32 %v2315, %v2325
  %v2334 = vmul.f32 %v2316, %v2325
  %v2335 = vmul.f32 %v2317, %v2325
  %v2336 = vmul.f32 %v2318, %v2325
  %v2337 = vmul.f32 %v2319, %v2325
  %v2338 = vmul.f32 %v2320, %v2325
  %v2339 = vmul.f32 %v2321, %v2325
  %v2340 = vmul.f32 %v2322, %v2325
  %v2341 = vmul.f32 %v2323, %v2325
  %v2342 = vlaneseq
  %v2343 = vshrl.u32 %v2342, 7
  %v2344 = vsub.s32 1, %v2343
  %v2345 = vrot.slane %v2325, %v2344
  %v2346 = vmul.f32 %v2317, %v2345
  %vm2347 = vcmp.eq.s32.totalorder %v750, 9
  %vm2348 = vcmp.eq.s32.totalorder %v751, 9
  %v2349 = vsel %vm2347, 1, 0
  %v2350 = vsel %vm2348, 1, 0
  %vm2351 = vcmp.eq.s32.totalorder %v2349, 1
  %vm2352 = vcmp.eq.s32.totalorder %v2350, 1
  %v2353 = vlaneseq
  %v2354 = vshrl.u32 %v2353, 7
  %v2355 = vsub.s32 1, %v2354
  %v2356 = vrot.slane %v2326, %v2355
  %v2357 = vlaneseq
  %v2358 = vshrl.u32 %v2357, 7
  %v2359 = vsub.s32 1, %v2358
  %v2360 = vrot.slane %v2327, %v2359
  %v2361 = vlaneseq
  %v2362 = vshrl.u32 %v2361, 7
  %v2363 = vsub.s32 1, %v2362
  %v2364 = vrot.slane %v2328, %v2363
  %v2365 = vlaneseq
  %v2366 = vshrl.u32 %v2365, 7
  %v2367 = vsub.s32 1, %v2366
  %v2368 = vrot.slane %v2329, %v2367
  %v2369 = vlaneseq
  %v2370 = vshrl.u32 %v2369, 7
  %v2371 = vsub.s32 1, %v2370
  %v2372 = vrot.slane %v2330, %v2371
  %v2373 = vlaneseq
  %v2374 = vshrl.u32 %v2373, 7
  %v2375 = vsub.s32 1, %v2374
  %v2376 = vrot.slane %v2331, %v2375
  %v2377 = vlaneseq
  %v2378 = vshrl.u32 %v2377, 7
  %v2379 = vsub.s32 1, %v2378
  %v2380 = vrot.slane %v2332, %v2379
  %v2381 = vlaneseq
  %v2382 = vshrl.u32 %v2381, 7
  %v2383 = vsub.s32 1, %v2382
  %v2384 = vrot.slane %v2333, %v2383
  %v2385 = vlaneseq
  %v2386 = vshrl.u32 %v2385, 7
  %v2387 = vsub.s32 1, %v2386
  %v2388 = vrot.slane %v2334, %v2387
  %v2389 = vlaneseq
  %v2390 = vshrl.u32 %v2389, 7
  %v2391 = vsub.s32 1, %v2390
  %v2392 = vrot.slane %v2335, %v2391
  %v2393 = vlaneseq
  %v2394 = vshrl.u32 %v2393, 7
  %v2395 = vsub.s32 1, %v2394
  %v2396 = vrot.slane %v2336, %v2395
  %v2397 = vlaneseq
  %v2398 = vshrl.u32 %v2397, 7
  %v2399 = vsub.s32 1, %v2398
  %v2400 = vrot.slane %v2337, %v2399
  %v2401 = vlaneseq
  %v2402 = vshrl.u32 %v2401, 7
  %v2403 = vsub.s32 1, %v2402
  %v2404 = vrot.slane %v2338, %v2403
  %v2405 = vlaneseq
  %v2406 = vshrl.u32 %v2405, 7
  %v2407 = vsub.s32 1, %v2406
  %v2408 = vrot.slane %v2339, %v2407
  %v2409 = vlaneseq
  %v2410 = vshrl.u32 %v2409, 7
  %v2411 = vsub.s32 1, %v2410
  %v2412 = vrot.slane %v2340, %v2411
  %v2413 = vlaneseq
  %v2414 = vshrl.u32 %v2413, 7
  %v2415 = vsub.s32 1, %v2414
  %v2416 = vrot.slane %v2341, %v2415
  %v2417 = vsel %vm2351, %v2356, %v2268
  %v2418 = vsel %vm2351, %v2360, %v2269
  %v2419 = vsel %vm2351, %v2364, %v2270
  %v2420 = vsel %vm2351, %v2368, %v2271
  %v2421 = vsel %vm2351, %v2372, %v2272
  %v2422 = vsel %vm2351, %v2376, %v2273
  %v2423 = vsel %vm2351, %v2380, %v2274
  %v2424 = vsel %vm2351, %v2384, %v2275
  %v2425 = vsel %vm2351, %v2388, %v2276
  %v2426 = vsel %vm2352, %v2388, %v2277
  %v2427 = vsel %vm2351, %v2392, %v2278
  %v2428 = vsel %vm2352, %v2392, %v2279
  %v2429 = vsel %vm2351, %v2396, %v2280
  %v2430 = vsel %vm2352, %v2396, %v2281
  %v2431 = vsel %vm2351, %v2400, %v2282
  %v2432 = vsel %vm2352, %v2400, %v2283
  %v2433 = vsel %vm2351, %v2404, %v2284
  %v2434 = vsel %vm2352, %v2404, %v2285
  %v2435 = vsel %vm2351, %v2408, %v2286
  %v2436 = vsel %vm2352, %v2408, %v2287
  %v2437 = vsel %vm2351, %v2412, %v2288
  %v2438 = vsel %vm2352, %v2412, %v2289
  %v2439 = vsel %vm2351, %v2416, %v2290
  %v2440 = vsel %vm2352, %v2416, %v2291
  %v2441 = vmul.f32 %v2356, %v2346
  %v2442 = vmul.f32 %v2360, %v2346
  %v2443 = vmul.f32 %v2364, %v2346
  %v2444 = vmul.f32 %v2368, %v2346
  %v2445 = vmul.f32 %v2372, %v2346
  %v2446 = vmul.f32 %v2376, %v2346
  %v2447 = vmul.f32 %v2380, %v2346
  %v2448 = vmul.f32 %v2384, %v2346
  %v2449 = vmul.f32 %v2388, %v2346
  %v2450 = vmul.f32 %v2392, %v2346
  %v2451 = vmul.f32 %v2396, %v2346
  %v2452 = vmul.f32 %v2400, %v2346
  %v2453 = vmul.f32 %v2404, %v2346
  %v2454 = vmul.f32 %v2408, %v2346
  %v2455 = vmul.f32 %v2412, %v2346
  %v2456 = vmul.f32 %v2416, %v2346
  %v2457 = vsub.f32 %v2308, %v2441
  %v2458 = vsub.f32 %v2309, %v2442
  %v2459 = vsub.f32 %v2310, %v2443
  %v2460 = vsub.f32 %v2311, %v2444
  %v2461 = vsub.f32 %v2312, %v2445
  %v2462 = vsub.f32 %v2313, %v2446
  %v2463 = vsub.f32 %v2314, %v2447
  %v2464 = vsub.f32 %v2315, %v2448
  %v2465 = vsub.f32 %v2316, %v2449
  %v2466 = vsub.f32 %v2317, %v2450
  %v2467 = vsub.f32 %v2318, %v2451
  %v2468 = vsub.f32 %v2319, %v2452
  %v2469 = vsub.f32 %v2320, %v2453
  %v2470 = vsub.f32 %v2321, %v2454
  %v2471 = vsub.f32 %v2322, %v2455
  %v2472 = vsub.f32 %v2323, %v2456
  %v2473 = vmax.f32 %v2467, 1e-20
  %v2474 = vrsqrt.pop %v2473
  %v2475 = vmul.f32 %v2457, %v2474
  %v2476 = vmul.f32 %v2458, %v2474
  %v2477 = vmul.f32 %v2459, %v2474
  %v2478 = vmul.f32 %v2460, %v2474
  %v2479 = vmul.f32 %v2461, %v2474
  %v2480 = vmul.f32 %v2462, %v2474
  %v2481 = vmul.f32 %v2463, %v2474
  %v2482 = vmul.f32 %v2464, %v2474
  %v2483 = vmul.f32 %v2465, %v2474
  %v2484 = vmul.f32 %v2466, %v2474
  %v2485 = vmul.f32 %v2467, %v2474
  %v2486 = vmul.f32 %v2468, %v2474
  %v2487 = vmul.f32 %v2469, %v2474
  %v2488 = vmul.f32 %v2470, %v2474
  %v2489 = vmul.f32 %v2471, %v2474
  %v2490 = vmul.f32 %v2472, %v2474
  %v2491 = vlaneseq
  %v2492 = vshrl.u32 %v2491, 7
  %v2493 = vsub.s32 2, %v2492
  %v2494 = vrot.slane %v2474, %v2493
  %v2495 = vmul.f32 %v2467, %v2494
  %vm2496 = vcmp.eq.s32.totalorder %v750, 10
  %vm2497 = vcmp.eq.s32.totalorder %v751, 10
  %v2498 = vsel %vm2496, 1, 0
  %v2499 = vsel %vm2497, 1, 0
  %vm2500 = vcmp.eq.s32.totalorder %v2498, 1
  %vm2501 = vcmp.eq.s32.totalorder %v2499, 1
  %v2502 = vlaneseq
  %v2503 = vshrl.u32 %v2502, 7
  %v2504 = vsub.s32 2, %v2503
  %v2505 = vrot.slane %v2475, %v2504
  %v2506 = vlaneseq
  %v2507 = vshrl.u32 %v2506, 7
  %v2508 = vsub.s32 2, %v2507
  %v2509 = vrot.slane %v2476, %v2508
  %v2510 = vlaneseq
  %v2511 = vshrl.u32 %v2510, 7
  %v2512 = vsub.s32 2, %v2511
  %v2513 = vrot.slane %v2477, %v2512
  %v2514 = vlaneseq
  %v2515 = vshrl.u32 %v2514, 7
  %v2516 = vsub.s32 2, %v2515
  %v2517 = vrot.slane %v2478, %v2516
  %v2518 = vlaneseq
  %v2519 = vshrl.u32 %v2518, 7
  %v2520 = vsub.s32 2, %v2519
  %v2521 = vrot.slane %v2479, %v2520
  %v2522 = vlaneseq
  %v2523 = vshrl.u32 %v2522, 7
  %v2524 = vsub.s32 2, %v2523
  %v2525 = vrot.slane %v2480, %v2524
  %v2526 = vlaneseq
  %v2527 = vshrl.u32 %v2526, 7
  %v2528 = vsub.s32 2, %v2527
  %v2529 = vrot.slane %v2481, %v2528
  %v2530 = vlaneseq
  %v2531 = vshrl.u32 %v2530, 7
  %v2532 = vsub.s32 2, %v2531
  %v2533 = vrot.slane %v2482, %v2532
  %v2534 = vlaneseq
  %v2535 = vshrl.u32 %v2534, 7
  %v2536 = vsub.s32 2, %v2535
  %v2537 = vrot.slane %v2483, %v2536
  %v2538 = vlaneseq
  %v2539 = vshrl.u32 %v2538, 7
  %v2540 = vsub.s32 2, %v2539
  %v2541 = vrot.slane %v2484, %v2540
  %v2542 = vlaneseq
  %v2543 = vshrl.u32 %v2542, 7
  %v2544 = vsub.s32 2, %v2543
  %v2545 = vrot.slane %v2485, %v2544
  %v2546 = vlaneseq
  %v2547 = vshrl.u32 %v2546, 7
  %v2548 = vsub.s32 2, %v2547
  %v2549 = vrot.slane %v2486, %v2548
  %v2550 = vlaneseq
  %v2551 = vshrl.u32 %v2550, 7
  %v2552 = vsub.s32 2, %v2551
  %v2553 = vrot.slane %v2487, %v2552
  %v2554 = vlaneseq
  %v2555 = vshrl.u32 %v2554, 7
  %v2556 = vsub.s32 2, %v2555
  %v2557 = vrot.slane %v2488, %v2556
  %v2558 = vlaneseq
  %v2559 = vshrl.u32 %v2558, 7
  %v2560 = vsub.s32 2, %v2559
  %v2561 = vrot.slane %v2489, %v2560
  %v2562 = vlaneseq
  %v2563 = vshrl.u32 %v2562, 7
  %v2564 = vsub.s32 2, %v2563
  %v2565 = vrot.slane %v2490, %v2564
  %v2566 = vsel %vm2500, %v2505, %v2417
  %v2567 = vsel %vm2500, %v2509, %v2418
  %v2568 = vsel %vm2500, %v2513, %v2419
  %v2569 = vsel %vm2500, %v2517, %v2420
  %v2570 = vsel %vm2500, %v2521, %v2421
  %v2571 = vsel %vm2500, %v2525, %v2422
  %v2572 = vsel %vm2500, %v2529, %v2423
  %v2573 = vsel %vm2500, %v2533, %v2424
  %v2574 = vsel %vm2500, %v2537, %v2425
  %v2575 = vsel %vm2501, %v2537, %v2426
  %v2576 = vsel %vm2500, %v2541, %v2427
  %v2577 = vsel %vm2501, %v2541, %v2428
  %v2578 = vsel %vm2500, %v2545, %v2429
  %v2579 = vsel %vm2501, %v2545, %v2430
  %v2580 = vsel %vm2500, %v2549, %v2431
  %v2581 = vsel %vm2501, %v2549, %v2432
  %v2582 = vsel %vm2500, %v2553, %v2433
  %v2583 = vsel %vm2501, %v2553, %v2434
  %v2584 = vsel %vm2500, %v2557, %v2435
  %v2585 = vsel %vm2501, %v2557, %v2436
  %v2586 = vsel %vm2500, %v2561, %v2437
  %v2587 = vsel %vm2501, %v2561, %v2438
  %v2588 = vsel %vm2500, %v2565, %v2439
  %v2589 = vsel %vm2501, %v2565, %v2440
  %v2590 = vmul.f32 %v2505, %v2495
  %v2591 = vmul.f32 %v2509, %v2495
  %v2592 = vmul.f32 %v2513, %v2495
  %v2593 = vmul.f32 %v2517, %v2495
  %v2594 = vmul.f32 %v2521, %v2495
  %v2595 = vmul.f32 %v2525, %v2495
  %v2596 = vmul.f32 %v2529, %v2495
  %v2597 = vmul.f32 %v2533, %v2495
  %v2598 = vmul.f32 %v2537, %v2495
  %v2599 = vmul.f32 %v2541, %v2495
  %v2600 = vmul.f32 %v2545, %v2495
  %v2601 = vmul.f32 %v2549, %v2495
  %v2602 = vmul.f32 %v2553, %v2495
  %v2603 = vmul.f32 %v2557, %v2495
  %v2604 = vmul.f32 %v2561, %v2495
  %v2605 = vmul.f32 %v2565, %v2495
  %v2606 = vsub.f32 %v2457, %v2590
  %v2607 = vsub.f32 %v2458, %v2591
  %v2608 = vsub.f32 %v2459, %v2592
  %v2609 = vsub.f32 %v2460, %v2593
  %v2610 = vsub.f32 %v2461, %v2594
  %v2611 = vsub.f32 %v2462, %v2595
  %v2612 = vsub.f32 %v2463, %v2596
  %v2613 = vsub.f32 %v2464, %v2597
  %v2614 = vsub.f32 %v2465, %v2598
  %v2615 = vsub.f32 %v2466, %v2599
  %v2616 = vsub.f32 %v2467, %v2600
  %v2617 = vsub.f32 %v2468, %v2601
  %v2618 = vsub.f32 %v2469, %v2602
  %v2619 = vsub.f32 %v2470, %v2603
  %v2620 = vsub.f32 %v2471, %v2604
  %v2621 = vsub.f32 %v2472, %v2605
  %v2622 = vmax.f32 %v2617, 1e-20
  %v2623 = vrsqrt.pop %v2622
  %v2624 = vmul.f32 %v2606, %v2623
  %v2625 = vmul.f32 %v2607, %v2623
  %v2626 = vmul.f32 %v2608, %v2623
  %v2627 = vmul.f32 %v2609, %v2623
  %v2628 = vmul.f32 %v2610, %v2623
  %v2629 = vmul.f32 %v2611, %v2623
  %v2630 = vmul.f32 %v2612, %v2623
  %v2631 = vmul.f32 %v2613, %v2623
  %v2632 = vmul.f32 %v2614, %v2623
  %v2633 = vmul.f32 %v2615, %v2623
  %v2634 = vmul.f32 %v2616, %v2623
  %v2635 = vmul.f32 %v2617, %v2623
  %v2636 = vmul.f32 %v2618, %v2623
  %v2637 = vmul.f32 %v2619, %v2623
  %v2638 = vmul.f32 %v2620, %v2623
  %v2639 = vmul.f32 %v2621, %v2623
  %v2640 = vlaneseq
  %v2641 = vshrl.u32 %v2640, 7
  %v2642 = vsub.s32 3, %v2641
  %v2643 = vrot.slane %v2623, %v2642
  %v2644 = vmul.f32 %v2617, %v2643
  %vm2645 = vcmp.eq.s32.totalorder %v750, 11
  %vm2646 = vcmp.eq.s32.totalorder %v751, 11
  %v2647 = vsel %vm2645, 1, 0
  %v2648 = vsel %vm2646, 1, 0
  %vm2649 = vcmp.eq.s32.totalorder %v2647, 1
  %vm2650 = vcmp.eq.s32.totalorder %v2648, 1
  %v2651 = vlaneseq
  %v2652 = vshrl.u32 %v2651, 7
  %v2653 = vsub.s32 3, %v2652
  %v2654 = vrot.slane %v2624, %v2653
  %v2655 = vlaneseq
  %v2656 = vshrl.u32 %v2655, 7
  %v2657 = vsub.s32 3, %v2656
  %v2658 = vrot.slane %v2625, %v2657
  %v2659 = vlaneseq
  %v2660 = vshrl.u32 %v2659, 7
  %v2661 = vsub.s32 3, %v2660
  %v2662 = vrot.slane %v2626, %v2661
  %v2663 = vlaneseq
  %v2664 = vshrl.u32 %v2663, 7
  %v2665 = vsub.s32 3, %v2664
  %v2666 = vrot.slane %v2627, %v2665
  %v2667 = vlaneseq
  %v2668 = vshrl.u32 %v2667, 7
  %v2669 = vsub.s32 3, %v2668
  %v2670 = vrot.slane %v2628, %v2669
  %v2671 = vlaneseq
  %v2672 = vshrl.u32 %v2671, 7
  %v2673 = vsub.s32 3, %v2672
  %v2674 = vrot.slane %v2629, %v2673
  %v2675 = vlaneseq
  %v2676 = vshrl.u32 %v2675, 7
  %v2677 = vsub.s32 3, %v2676
  %v2678 = vrot.slane %v2630, %v2677
  %v2679 = vlaneseq
  %v2680 = vshrl.u32 %v2679, 7
  %v2681 = vsub.s32 3, %v2680
  %v2682 = vrot.slane %v2631, %v2681
  %v2683 = vlaneseq
  %v2684 = vshrl.u32 %v2683, 7
  %v2685 = vsub.s32 3, %v2684
  %v2686 = vrot.slane %v2632, %v2685
  %v2687 = vlaneseq
  %v2688 = vshrl.u32 %v2687, 7
  %v2689 = vsub.s32 3, %v2688
  %v2690 = vrot.slane %v2633, %v2689
  %v2691 = vlaneseq
  %v2692 = vshrl.u32 %v2691, 7
  %v2693 = vsub.s32 3, %v2692
  %v2694 = vrot.slane %v2634, %v2693
  %v2695 = vlaneseq
  %v2696 = vshrl.u32 %v2695, 7
  %v2697 = vsub.s32 3, %v2696
  %v2698 = vrot.slane %v2635, %v2697
  %v2699 = vlaneseq
  %v2700 = vshrl.u32 %v2699, 7
  %v2701 = vsub.s32 3, %v2700
  %v2702 = vrot.slane %v2636, %v2701
  %v2703 = vlaneseq
  %v2704 = vshrl.u32 %v2703, 7
  %v2705 = vsub.s32 3, %v2704
  %v2706 = vrot.slane %v2637, %v2705
  %v2707 = vlaneseq
  %v2708 = vshrl.u32 %v2707, 7
  %v2709 = vsub.s32 3, %v2708
  %v2710 = vrot.slane %v2638, %v2709
  %v2711 = vlaneseq
  %v2712 = vshrl.u32 %v2711, 7
  %v2713 = vsub.s32 3, %v2712
  %v2714 = vrot.slane %v2639, %v2713
  %v2715 = vsel %vm2649, %v2654, %v2566
  %v2716 = vsel %vm2649, %v2658, %v2567
  %v2717 = vsel %vm2649, %v2662, %v2568
  %v2718 = vsel %vm2649, %v2666, %v2569
  %v2719 = vsel %vm2649, %v2670, %v2570
  %v2720 = vsel %vm2649, %v2674, %v2571
  %v2721 = vsel %vm2649, %v2678, %v2572
  %v2722 = vsel %vm2649, %v2682, %v2573
  %v2723 = vsel %vm2649, %v2686, %v2574
  %v2724 = vsel %vm2650, %v2686, %v2575
  %v2725 = vsel %vm2649, %v2690, %v2576
  %v2726 = vsel %vm2650, %v2690, %v2577
  %v2727 = vsel %vm2649, %v2694, %v2578
  %v2728 = vsel %vm2650, %v2694, %v2579
  %v2729 = vsel %vm2649, %v2698, %v2580
  %v2730 = vsel %vm2650, %v2698, %v2581
  %v2731 = vsel %vm2649, %v2702, %v2582
  %v2732 = vsel %vm2650, %v2702, %v2583
  %v2733 = vsel %vm2649, %v2706, %v2584
  %v2734 = vsel %vm2650, %v2706, %v2585
  %v2735 = vsel %vm2649, %v2710, %v2586
  %v2736 = vsel %vm2650, %v2710, %v2587
  %v2737 = vsel %vm2649, %v2714, %v2588
  %v2738 = vsel %vm2650, %v2714, %v2589
  %v2739 = vmul.f32 %v2702, %v2644
  %v2740 = vmul.f32 %v2706, %v2644
  %v2741 = vmul.f32 %v2710, %v2644
  %v2742 = vmul.f32 %v2714, %v2644
  %v2743 = vsub.f32 %v2618, %v2739
  %v2744 = vsub.f32 %v2619, %v2740
  %v2745 = vsub.f32 %v2620, %v2741
  %v2746 = vsub.f32 %v2621, %v2742
  %v2747 = vmul.f32 %v2743, 0.5
  %v2748 = vmul.f32 %v2744, 0.5
  %v2749 = vmul.f32 %v2745, 0.5
  %v2750 = vmul.f32 %v2746, 0.5
  %v2751 = vrcp.pop %v2730
  %v2752 = vmul.f32 %v2732, %v2751
  %v2753 = vmul.f32 %v2734, %v2751
  %v2754 = vmul.f32 %v2736, %v2751
  %v2755 = vmul.f32 %v2738, %v2751
  %v2756 = vlaneseq
  %v2757 = vshrl.u32 %v2756, 7
  %v2758 = vsub.s32 3, %v2757
  %v2759 = vrot.slane %v2752, %v2758
  %v2760 = vlaneseq
  %v2761 = vshrl.u32 %v2760, 7
  %v2762 = vsub.s32 3, %v2761
  %v2763 = vrot.slane %v2753, %v2762
  %v2764 = vlaneseq
  %v2765 = vshrl.u32 %v2764, 7
  %v2766 = vsub.s32 3, %v2765
  %v2767 = vrot.slane %v2754, %v2766
  %v2768 = vlaneseq
  %v2769 = vshrl.u32 %v2768, 7
  %v2770 = vsub.s32 3, %v2769
  %v2771 = vrot.slane %v2755, %v2770
  %v2772 = vsel %vm1326, %v2759, 0.0
  %v2773 = vsel %vm1327, %v2759, 0.0
  %v2774 = vsel %vm1326, %v2763, 0.0
  %v2775 = vsel %vm1327, %v2763, 0.0
  %v2776 = vsel %vm1326, %v2767, 0.0
  %v2777 = vsel %vm1327, %v2767, 0.0
  %v2778 = vsel %vm1326, %v2771, 0.0
  %v2779 = vsel %vm1327, %v2771, 0.0
  %v2780 = vmul.f32 %v2759, %v2729
  %v2781 = vmul.f32 %v2759, %v2730
  %v2782 = vmul.f32 %v2763, %v2729
  %v2783 = vmul.f32 %v2763, %v2730
  %v2784 = vmul.f32 %v2767, %v2729
  %v2785 = vmul.f32 %v2767, %v2730
  %v2786 = vmul.f32 %v2771, %v2729
  %v2787 = vmul.f32 %v2771, %v2730
  %v2788 = vsub.f32 %v2731, %v2780
  %v2789 = vsub.f32 %v2732, %v2781
  %v2790 = vsub.f32 %v2733, %v2782
  %v2791 = vsub.f32 %v2734, %v2783
  %v2792 = vsub.f32 %v2735, %v2784
  %v2793 = vsub.f32 %v2736, %v2785
  %v2794 = vsub.f32 %v2737, %v2786
  %v2795 = vsub.f32 %v2738, %v2787
  %v2796 = vrcp.pop %v2728
  %v2797 = vmul.f32 %v2789, %v2796
  %v2798 = vmul.f32 %v2791, %v2796
  %v2799 = vmul.f32 %v2793, %v2796
  %v2800 = vmul.f32 %v2795, %v2796
  %v2801 = vlaneseq
  %v2802 = vshrl.u32 %v2801, 7
  %v2803 = vsub.s32 2, %v2802
  %v2804 = vrot.slane %v2797, %v2803
  %v2805 = vlaneseq
  %v2806 = vshrl.u32 %v2805, 7
  %v2807 = vsub.s32 2, %v2806
  %v2808 = vrot.slane %v2798, %v2807
  %v2809 = vlaneseq
  %v2810 = vshrl.u32 %v2809, 7
  %v2811 = vsub.s32 2, %v2810
  %v2812 = vrot.slane %v2799, %v2811
  %v2813 = vlaneseq
  %v2814 = vshrl.u32 %v2813, 7
  %v2815 = vsub.s32 2, %v2814
  %v2816 = vrot.slane %v2800, %v2815
  %v2817 = vsel %vm1144, %v2804, %v2772
  %v2818 = vsel %vm1145, %v2804, %v2773
  %v2819 = vsel %vm1144, %v2808, %v2774
  %v2820 = vsel %vm1145, %v2808, %v2775
  %v2821 = vsel %vm1144, %v2812, %v2776
  %v2822 = vsel %vm1145, %v2812, %v2777
  %v2823 = vsel %vm1144, %v2816, %v2778
  %v2824 = vsel %vm1145, %v2816, %v2779
  %v2825 = vmul.f32 %v2804, %v2727
  %v2826 = vmul.f32 %v2804, %v2728
  %v2827 = vmul.f32 %v2808, %v2727
  %v2828 = vmul.f32 %v2808, %v2728
  %v2829 = vmul.f32 %v2812, %v2727
  %v2830 = vmul.f32 %v2812, %v2728
  %v2831 = vmul.f32 %v2816, %v2727
  %v2832 = vmul.f32 %v2816, %v2728
  %v2833 = vsub.f32 %v2788, %v2825
  %v2834 = vsub.f32 %v2789, %v2826
  %v2835 = vsub.f32 %v2790, %v2827
  %v2836 = vsub.f32 %v2791, %v2828
  %v2837 = vsub.f32 %v2792, %v2829
  %v2838 = vsub.f32 %v2793, %v2830
  %v2839 = vsub.f32 %v2794, %v2831
  %v2840 = vsub.f32 %v2795, %v2832
  %v2841 = vrcp.pop %v2726
  %v2842 = vmul.f32 %v2834, %v2841
  %v2843 = vmul.f32 %v2836, %v2841
  %v2844 = vmul.f32 %v2838, %v2841
  %v2845 = vmul.f32 %v2840, %v2841
  %v2846 = vlaneseq
  %v2847 = vshrl.u32 %v2846, 7
  %v2848 = vsub.s32 1, %v2847
  %v2849 = vrot.slane %v2842, %v2848
  %v2850 = vlaneseq
  %v2851 = vshrl.u32 %v2850, 7
  %v2852 = vsub.s32 1, %v2851
  %v2853 = vrot.slane %v2843, %v2852
  %v2854 = vlaneseq
  %v2855 = vshrl.u32 %v2854, 7
  %v2856 = vsub.s32 1, %v2855
  %v2857 = vrot.slane %v2844, %v2856
  %v2858 = vlaneseq
  %v2859 = vshrl.u32 %v2858, 7
  %v2860 = vsub.s32 1, %v2859
  %v2861 = vrot.slane %v2845, %v2860
  %v2862 = vsel %vm962, %v2849, %v2817
  %v2863 = vsel %vm963, %v2849, %v2818
  %v2864 = vsel %vm962, %v2853, %v2819
  %v2865 = vsel %vm963, %v2853, %v2820
  %v2866 = vsel %vm962, %v2857, %v2821
  %v2867 = vsel %vm963, %v2857, %v2822
  %v2868 = vsel %vm962, %v2861, %v2823
  %v2869 = vsel %vm963, %v2861, %v2824
  %v2870 = vmul.f32 %v2849, %v2725
  %v2871 = vmul.f32 %v2849, %v2726
  %v2872 = vmul.f32 %v2853, %v2725
  %v2873 = vmul.f32 %v2853, %v2726
  %v2874 = vmul.f32 %v2857, %v2725
  %v2875 = vmul.f32 %v2857, %v2726
  %v2876 = vmul.f32 %v2861, %v2725
  %v2877 = vmul.f32 %v2861, %v2726
  %v2878 = vsub.f32 %v2833, %v2870
  %v2879 = vsub.f32 %v2834, %v2871
  %v2880 = vsub.f32 %v2835, %v2872
  %v2881 = vsub.f32 %v2836, %v2873
  %v2882 = vsub.f32 %v2837, %v2874
  %v2883 = vsub.f32 %v2838, %v2875
  %v2884 = vsub.f32 %v2839, %v2876
  %v2885 = vsub.f32 %v2840, %v2877
  %v2886 = vrcp.pop %v2724
  %v2887 = vmul.f32 %v2879, %v2886
  %v2888 = vmul.f32 %v2881, %v2886
  %v2889 = vmul.f32 %v2883, %v2886
  %v2890 = vmul.f32 %v2885, %v2886
  %v2891 = vlaneseq
  %v2892 = vshrl.u32 %v2891, 7
  %v2893 = vsub.s32 0, %v2892
  %v2894 = vrot.slane %v2887, %v2893
  %v2895 = vlaneseq
  %v2896 = vshrl.u32 %v2895, 7
  %v2897 = vsub.s32 0, %v2896
  %v2898 = vrot.slane %v2888, %v2897
  %v2899 = vlaneseq
  %v2900 = vshrl.u32 %v2899, 7
  %v2901 = vsub.s32 0, %v2900
  %v2902 = vrot.slane %v2889, %v2901
  %v2903 = vlaneseq
  %v2904 = vshrl.u32 %v2903, 7
  %v2905 = vsub.s32 0, %v2904
  %v2906 = vrot.slane %v2890, %v2905
  %v2907 = vsel %vm780, %v2894, %v2862
  %v2908 = vsel %vm781, %v2894, %v2863
  %v2909 = vsel %vm780, %v2898, %v2864
  %v2910 = vsel %vm781, %v2898, %v2865
  %v2911 = vsel %vm780, %v2902, %v2866
  %v2912 = vsel %vm781, %v2902, %v2867
  %v2913 = vsel %vm780, %v2906, %v2868
  %v2914 = vsel %vm781, %v2906, %v2869
  %v2915 = vmul.f32 %v2894, %v2723
  %v2916 = vmul.f32 %v2898, %v2723
  %v2917 = vmul.f32 %v2902, %v2723
  %v2918 = vmul.f32 %v2906, %v2723
  %v2919 = vsub.f32 %v2878, %v2915
  %v2920 = vsub.f32 %v2880, %v2916
  %v2921 = vsub.f32 %v2882, %v2917
  %v2922 = vsub.f32 %v2884, %v2918
  %v2923 = vrcp.pop %v2722
  %v2924 = vmul.f32 %v2919, %v2923
  %v2925 = vmul.f32 %v2920, %v2923
  %v2926 = vmul.f32 %v2921, %v2923
  %v2927 = vmul.f32 %v2922, %v2923
  %v2928 = vlaneseq
  %v2929 = vshrl.u32 %v2928, 7
  %v2930 = vsub.s32 7, %v2929
  %v2931 = vrot.slane %v2924, %v2930
  %v2932 = vlaneseq
  %v2933 = vshrl.u32 %v2932, 7
  %v2934 = vsub.s32 7, %v2933
  %v2935 = vrot.slane %v2925, %v2934
  %v2936 = vlaneseq
  %v2937 = vshrl.u32 %v2936, 7
  %v2938 = vsub.s32 7, %v2937
  %v2939 = vrot.slane %v2926, %v2938
  %v2940 = vlaneseq
  %v2941 = vshrl.u32 %v2940, 7
  %v2942 = vsub.s32 7, %v2941
  %v2943 = vrot.slane %v2927, %v2942
  %v2944 = vsel %vm2053, %v2931, %v2907
  %v2945 = vsel %vm2054, %v2931, %v2908
  %v2946 = vsel %vm2053, %v2935, %v2909
  %v2947 = vsel %vm2054, %v2935, %v2910
  %v2948 = vsel %vm2053, %v2939, %v2911
  %v2949 = vsel %vm2054, %v2939, %v2912
  %v2950 = vsel %vm2053, %v2943, %v2913
  %v2951 = vsel %vm2054, %v2943, %v2914
  %v2952 = vmul.f32 %v2931, %v2722
  %v2953 = vmul.f32 %v2935, %v2722
  %v2954 = vmul.f32 %v2939, %v2722
  %v2955 = vmul.f32 %v2943, %v2722
  %v2956 = vsub.f32 %v2919, %v2952
  %v2957 = vsub.f32 %v2920, %v2953
  %v2958 = vsub.f32 %v2921, %v2954
  %v2959 = vsub.f32 %v2922, %v2955
  %v2960 = vrcp.pop %v2721
  %v2961 = vmul.f32 %v2956, %v2960
  %v2962 = vmul.f32 %v2957, %v2960
  %v2963 = vmul.f32 %v2958, %v2960
  %v2964 = vmul.f32 %v2959, %v2960
  %v2965 = vlaneseq
  %v2966 = vshrl.u32 %v2965, 7
  %v2967 = vsub.s32 6, %v2966
  %v2968 = vrot.slane %v2961, %v2967
  %v2969 = vlaneseq
  %v2970 = vshrl.u32 %v2969, 7
  %v2971 = vsub.s32 6, %v2970
  %v2972 = vrot.slane %v2962, %v2971
  %v2973 = vlaneseq
  %v2974 = vshrl.u32 %v2973, 7
  %v2975 = vsub.s32 6, %v2974
  %v2976 = vrot.slane %v2963, %v2975
  %v2977 = vlaneseq
  %v2978 = vshrl.u32 %v2977, 7
  %v2979 = vsub.s32 6, %v2978
  %v2980 = vrot.slane %v2964, %v2979
  %v2981 = vsel %vm1872, %v2968, %v2944
  %v2982 = vsel %vm1873, %v2968, %v2945
  %v2983 = vsel %vm1872, %v2972, %v2946
  %v2984 = vsel %vm1873, %v2972, %v2947
  %v2985 = vsel %vm1872, %v2976, %v2948
  %v2986 = vsel %vm1873, %v2976, %v2949
  %v2987 = vsel %vm1872, %v2980, %v2950
  %v2988 = vsel %vm1873, %v2980, %v2951
  %v2989 = vmul.f32 %v2968, %v2721
  %v2990 = vmul.f32 %v2972, %v2721
  %v2991 = vmul.f32 %v2976, %v2721
  %v2992 = vmul.f32 %v2980, %v2721
  %v2993 = vsub.f32 %v2956, %v2989
  %v2994 = vsub.f32 %v2957, %v2990
  %v2995 = vsub.f32 %v2958, %v2991
  %v2996 = vsub.f32 %v2959, %v2992
  %v2997 = vrcp.pop %v2720
  %v2998 = vmul.f32 %v2993, %v2997
  %v2999 = vmul.f32 %v2994, %v2997
  %v3000 = vmul.f32 %v2995, %v2997
  %v3001 = vmul.f32 %v2996, %v2997
  %v3002 = vlaneseq
  %v3003 = vshrl.u32 %v3002, 7
  %v3004 = vsub.s32 5, %v3003
  %v3005 = vrot.slane %v2998, %v3004
  %v3006 = vlaneseq
  %v3007 = vshrl.u32 %v3006, 7
  %v3008 = vsub.s32 5, %v3007
  %v3009 = vrot.slane %v2999, %v3008
  %v3010 = vlaneseq
  %v3011 = vshrl.u32 %v3010, 7
  %v3012 = vsub.s32 5, %v3011
  %v3013 = vrot.slane %v3000, %v3012
  %v3014 = vlaneseq
  %v3015 = vshrl.u32 %v3014, 7
  %v3016 = vsub.s32 5, %v3015
  %v3017 = vrot.slane %v3001, %v3016
  %v3018 = vsel %vm1690, %v3005, %v2981
  %v3019 = vsel %vm1691, %v3005, %v2982
  %v3020 = vsel %vm1690, %v3009, %v2983
  %v3021 = vsel %vm1691, %v3009, %v2984
  %v3022 = vsel %vm1690, %v3013, %v2985
  %v3023 = vsel %vm1691, %v3013, %v2986
  %v3024 = vsel %vm1690, %v3017, %v2987
  %v3025 = vsel %vm1691, %v3017, %v2988
  %v3026 = vmul.f32 %v3005, %v2720
  %v3027 = vmul.f32 %v3009, %v2720
  %v3028 = vmul.f32 %v3013, %v2720
  %v3029 = vmul.f32 %v3017, %v2720
  %v3030 = vsub.f32 %v2993, %v3026
  %v3031 = vsub.f32 %v2994, %v3027
  %v3032 = vsub.f32 %v2995, %v3028
  %v3033 = vsub.f32 %v2996, %v3029
  %v3034 = vrcp.pop %v2719
  %v3035 = vmul.f32 %v3030, %v3034
  %v3036 = vmul.f32 %v3031, %v3034
  %v3037 = vmul.f32 %v3032, %v3034
  %v3038 = vmul.f32 %v3033, %v3034
  %v3039 = vlaneseq
  %v3040 = vshrl.u32 %v3039, 7
  %v3041 = vsub.s32 4, %v3040
  %v3042 = vrot.slane %v3035, %v3041
  %v3043 = vlaneseq
  %v3044 = vshrl.u32 %v3043, 7
  %v3045 = vsub.s32 4, %v3044
  %v3046 = vrot.slane %v3036, %v3045
  %v3047 = vlaneseq
  %v3048 = vshrl.u32 %v3047, 7
  %v3049 = vsub.s32 4, %v3048
  %v3050 = vrot.slane %v3037, %v3049
  %v3051 = vlaneseq
  %v3052 = vshrl.u32 %v3051, 7
  %v3053 = vsub.s32 4, %v3052
  %v3054 = vrot.slane %v3038, %v3053
  %v3055 = vsel %vm1508, %v3042, %v3018
  %v3056 = vsel %vm1509, %v3042, %v3019
  %v3057 = vsel %vm1508, %v3046, %v3020
  %v3058 = vsel %vm1509, %v3046, %v3021
  %v3059 = vsel %vm1508, %v3050, %v3022
  %v3060 = vsel %vm1509, %v3050, %v3023
  %v3061 = vsel %vm1508, %v3054, %v3024
  %v3062 = vsel %vm1509, %v3054, %v3025
  %v3063 = vmul.f32 %v3042, %v2719
  %v3064 = vmul.f32 %v3046, %v2719
  %v3065 = vmul.f32 %v3050, %v2719
  %v3066 = vmul.f32 %v3054, %v2719
  %v3067 = vsub.f32 %v3030, %v3063
  %v3068 = vsub.f32 %v3031, %v3064
  %v3069 = vsub.f32 %v3032, %v3065
  %v3070 = vsub.f32 %v3033, %v3066
  %v3071 = vrcp.pop %v2718
  %v3072 = vmul.f32 %v3067, %v3071
  %v3073 = vmul.f32 %v3068, %v3071
  %v3074 = vmul.f32 %v3069, %v3071
  %v3075 = vmul.f32 %v3070, %v3071
  %v3076 = vlaneseq
  %v3077 = vshrl.u32 %v3076, 7
  %v3078 = vsub.s32 3, %v3077
  %v3079 = vrot.slane %v3072, %v3078
  %v3080 = vlaneseq
  %v3081 = vshrl.u32 %v3080, 7
  %v3082 = vsub.s32 3, %v3081
  %v3083 = vrot.slane %v3073, %v3082
  %v3084 = vlaneseq
  %v3085 = vshrl.u32 %v3084, 7
  %v3086 = vsub.s32 3, %v3085
  %v3087 = vrot.slane %v3074, %v3086
  %v3088 = vlaneseq
  %v3089 = vshrl.u32 %v3088, 7
  %v3090 = vsub.s32 3, %v3089
  %v3091 = vrot.slane %v3075, %v3090
  %v3092 = vsel %vm2649, %v3079, %v3055
  %v3093 = vsel %vm2650, %v3079, %v3056
  %v3094 = vsel %vm2649, %v3083, %v3057
  %v3095 = vsel %vm2650, %v3083, %v3058
  %v3096 = vsel %vm2649, %v3087, %v3059
  %v3097 = vsel %vm2650, %v3087, %v3060
  %v3098 = vsel %vm2649, %v3091, %v3061
  %v3099 = vsel %vm2650, %v3091, %v3062
  %v3100 = vmul.f32 %v3079, %v2718
  %v3101 = vmul.f32 %v3083, %v2718
  %v3102 = vmul.f32 %v3087, %v2718
  %v3103 = vmul.f32 %v3091, %v2718
  %v3104 = vsub.f32 %v3067, %v3100
  %v3105 = vsub.f32 %v3068, %v3101
  %v3106 = vsub.f32 %v3069, %v3102
  %v3107 = vsub.f32 %v3070, %v3103
  %v3108 = vrcp.pop %v2717
  %v3109 = vmul.f32 %v3104, %v3108
  %v3110 = vmul.f32 %v3105, %v3108
  %v3111 = vmul.f32 %v3106, %v3108
  %v3112 = vmul.f32 %v3107, %v3108
  %v3113 = vlaneseq
  %v3114 = vshrl.u32 %v3113, 7
  %v3115 = vsub.s32 2, %v3114
  %v3116 = vrot.slane %v3109, %v3115
  %v3117 = vlaneseq
  %v3118 = vshrl.u32 %v3117, 7
  %v3119 = vsub.s32 2, %v3118
  %v3120 = vrot.slane %v3110, %v3119
  %v3121 = vlaneseq
  %v3122 = vshrl.u32 %v3121, 7
  %v3123 = vsub.s32 2, %v3122
  %v3124 = vrot.slane %v3111, %v3123
  %v3125 = vlaneseq
  %v3126 = vshrl.u32 %v3125, 7
  %v3127 = vsub.s32 2, %v3126
  %v3128 = vrot.slane %v3112, %v3127
  %v3129 = vsel %vm2500, %v3116, %v3092
  %v3130 = vsel %vm2501, %v3116, %v3093
  %v3131 = vsel %vm2500, %v3120, %v3094
  %v3132 = vsel %vm2501, %v3120, %v3095
  %v3133 = vsel %vm2500, %v3124, %v3096
  %v3134 = vsel %vm2501, %v3124, %v3097
  %v3135 = vsel %vm2500, %v3128, %v3098
  %v3136 = vsel %vm2501, %v3128, %v3099
  %v3137 = vmul.f32 %v3116, %v2717
  %v3138 = vmul.f32 %v3120, %v2717
  %v3139 = vmul.f32 %v3124, %v2717
  %v3140 = vmul.f32 %v3128, %v2717
  %v3141 = vsub.f32 %v3104, %v3137
  %v3142 = vsub.f32 %v3105, %v3138
  %v3143 = vsub.f32 %v3106, %v3139
  %v3144 = vsub.f32 %v3107, %v3140
  %v3145 = vrcp.pop %v2716
  %v3146 = vmul.f32 %v3141, %v3145
  %v3147 = vmul.f32 %v3142, %v3145
  %v3148 = vmul.f32 %v3143, %v3145
  %v3149 = vmul.f32 %v3144, %v3145
  %v3150 = vlaneseq
  %v3151 = vshrl.u32 %v3150, 7
  %v3152 = vsub.s32 1, %v3151
  %v3153 = vrot.slane %v3146, %v3152
  %v3154 = vlaneseq
  %v3155 = vshrl.u32 %v3154, 7
  %v3156 = vsub.s32 1, %v3155
  %v3157 = vrot.slane %v3147, %v3156
  %v3158 = vlaneseq
  %v3159 = vshrl.u32 %v3158, 7
  %v3160 = vsub.s32 1, %v3159
  %v3161 = vrot.slane %v3148, %v3160
  %v3162 = vlaneseq
  %v3163 = vshrl.u32 %v3162, 7
  %v3164 = vsub.s32 1, %v3163
  %v3165 = vrot.slane %v3149, %v3164
  %v3166 = vsel %vm2351, %v3153, %v3129
  %v3167 = vsel %vm2352, %v3153, %v3130
  %v3168 = vsel %vm2351, %v3157, %v3131
  %v3169 = vsel %vm2352, %v3157, %v3132
  %v3170 = vsel %vm2351, %v3161, %v3133
  %v3171 = vsel %vm2352, %v3161, %v3134
  %v3172 = vsel %vm2351, %v3165, %v3135
  %v3173 = vsel %vm2352, %v3165, %v3136
  %v3174 = vmul.f32 %v3153, %v2716
  %v3175 = vmul.f32 %v3157, %v2716
  %v3176 = vmul.f32 %v3161, %v2716
  %v3177 = vmul.f32 %v3165, %v2716
  %v3178 = vsub.f32 %v3141, %v3174
  %v3179 = vsub.f32 %v3142, %v3175
  %v3180 = vsub.f32 %v3143, %v3176
  %v3181 = vsub.f32 %v3144, %v3177
  %v3182 = vrcp.pop %v2715
  %v3183 = vmul.f32 %v3178, %v3182
  %v3184 = vmul.f32 %v3179, %v3182
  %v3185 = vmul.f32 %v3180, %v3182
  %v3186 = vmul.f32 %v3181, %v3182
  %v3187 = vlaneseq
  %v3188 = vshrl.u32 %v3187, 7
  %v3189 = vsub.s32 0, %v3188
  %v3190 = vrot.slane %v3183, %v3189
  %v3191 = vlaneseq
  %v3192 = vshrl.u32 %v3191, 7
  %v3193 = vsub.s32 0, %v3192
  %v3194 = vrot.slane %v3184, %v3193
  %v3195 = vlaneseq
  %v3196 = vshrl.u32 %v3195, 7
  %v3197 = vsub.s32 0, %v3196
  %v3198 = vrot.slane %v3185, %v3197
  %v3199 = vlaneseq
  %v3200 = vshrl.u32 %v3199, 7
  %v3201 = vsub.s32 0, %v3200
  %v3202 = vrot.slane %v3186, %v3201
  %v3203 = vsel %vm2202, %v3190, %v3166
  %v3204 = vsel %vm2203, %v3190, %v3167
  %v3205 = vsel %vm2202, %v3194, %v3168
  %v3206 = vsel %vm2203, %v3194, %v3169
  %v3207 = vsel %vm2202, %v3198, %v3170
  %v3208 = vsel %vm2203, %v3198, %v3171
  %v3209 = vsel %vm2202, %v3202, %v3172
  %v3210 = vsel %vm2203, %v3202, %v3173
  %v3211 = vld [vmem:[%s3] sm:$0xff]
  %v3212 = vld [vmem:[%s3 + $0x8] sm:$0xf]
  %v3213 = vld [vmem:[%s3 + $0x10] sm:$0xff]
  %v3214 = vld [vmem:[%s3 + $0x18] sm:$0xf]
  %v3215 = vld [vmem:[%s3 + $0x20] sm:$0xff]
  %v3216 = vld [vmem:[%s3 + $0x28] sm:$0xf]
  %v3217 = vld [vmem:[%s3 + $0x30] sm:$0xff]
  %v3218 = vld [vmem:[%s3 + $0x38] sm:$0xf]
  %v3219 = vld [vmem:[%s3 + $0x40] sm:$0xff]
  %v3220 = vld [vmem:[%s3 + $0x48] sm:$0xf]
  %v3221 = vld [vmem:[%s3 + $0x50] sm:$0xff]
  %v3222 = vld [vmem:[%s3 + $0x58] sm:$0xf]
  %v3223 = vld [vmem:[%s3 + $0x60] sm:$0xff]
  %v3224 = vld [vmem:[%s3 + $0x68] sm:$0xf]
  %v3225 = vld [vmem:[%s3 + $0x70] sm:$0xff]
  %v3226 = vld [vmem:[%s3 + $0x78] sm:$0xf]
  %3228 = vset.pattern.permute.xlu0 0
  %3229 = vperm.xlu0 %3228, %v3211
  %v3230 = vpop.permute.xlu0 %3229
  %3233 = vset.pattern.permute.xlu0 0
  %3234 = vperm.xlu0 %3233, %v3212
  %v3235 = vpop.permute.xlu0 %3234
  %3238 = vset.pattern.permute.xlu0 0
  %3239 = vperm.xlu0 %3238, %v3213
  %v3240 = vpop.permute.xlu0 %3239
  %3243 = vset.pattern.permute.xlu0 0
  %3244 = vperm.xlu0 %3243, %v3214
  %v3245 = vpop.permute.xlu0 %3244
  %3248 = vset.pattern.permute.xlu0 0
  %3249 = vperm.xlu0 %3248, %v3215
  %v3250 = vpop.permute.xlu0 %3249
  %3253 = vset.pattern.permute.xlu0 0
  %3254 = vperm.xlu0 %3253, %v3216
  %v3255 = vpop.permute.xlu0 %3254
  %3258 = vset.pattern.permute.xlu0 0
  %3259 = vperm.xlu0 %3258, %v3217
  %v3260 = vpop.permute.xlu0 %3259
  %3263 = vset.pattern.permute.xlu0 0
  %3264 = vperm.xlu0 %3263, %v3218
  %v3265 = vpop.permute.xlu0 %3264
  %3268 = vset.pattern.permute.xlu0 0
  %3269 = vperm.xlu0 %3268, %v3219
  %v3270 = vpop.permute.xlu0 %3269
  %3273 = vset.pattern.permute.xlu0 0
  %3274 = vperm.xlu0 %3273, %v3220
  %v3275 = vpop.permute.xlu0 %3274
  %3278 = vset.pattern.permute.xlu0 0
  %3279 = vperm.xlu0 %3278, %v3221
  %v3280 = vpop.permute.xlu0 %3279
  %3283 = vset.pattern.permute.xlu0 0
  %3284 = vperm.xlu0 %3283, %v3222
  %v3285 = vpop.permute.xlu0 %3284
  %3288 = vset.pattern.permute.xlu0 0
  %3289 = vperm.xlu0 %3288, %v3223
  %v3290 = vpop.permute.xlu0 %3289
  %3293 = vset.pattern.permute.xlu0 0
  %3294 = vperm.xlu0 %3293, %v3224
  %v3295 = vpop.permute.xlu0 %3294
  %3298 = vset.pattern.permute.xlu0 0
  %3299 = vperm.xlu0 %3298, %v3225
  %v3300 = vpop.permute.xlu0 %3299
  %3303 = vset.pattern.permute.xlu0 0
  %3304 = vperm.xlu0 %3303, %v3226
  %v3305 = vpop.permute.xlu0 %3304
  %v3311 = vrot.slane %v2747, 4
  %v3312 = vrot.slane %v2748, 4
  %v3313 = vrot.slane %v2749, 4
  %v3314 = vrot.slane %v2750, 4
  %vm3319 = vcmask 1043456
  %v3320 = vsel %vm3319, %v3311, 0.0
  %v3321 = vsel %vm3319, %v3312, 0.0
  %v3322 = vsel %vm3319, %v3313, 0.0
  %v3323 = vsel %vm3319, %v3314, 0.0
  %v3324 = vsel %vm3319, 0.0, %v2747
  %v3325 = vsel %vm3319, 0.0, %v2748
  %v3326 = vsel %vm3319, 0.0, %v2749
  %v3327 = vsel %vm3319, 0.0, %v2750
  %vm3328 = vcmask 64512
  %3329 = vst.msk [vmem:[%s6] sm:$0xff] %vm3328, %v3203
  %vm3330 = vcmask 60416
  %3331 = vst.msk [vmem:[%s6 + $0x8] sm:$0xf] %vm3330, %v3204
  %3332 = vst.msk [vmem:[%s6 + $0x10] sm:$0xff] %vm3328, %v3205
  %3333 = vst.msk [vmem:[%s6 + $0x18] sm:$0xf] %vm3330, %v3206
  %3334 = vst.msk [vmem:[%s6 + $0x20] sm:$0xff] %vm3328, %v3207
  %3335 = vst.msk [vmem:[%s6 + $0x28] sm:$0xf] %vm3330, %v3208
  %3336 = vst.msk [vmem:[%s6 + $0x30] sm:$0xff] %vm3328, %v3209
  %3337 = vst.msk [vmem:[%s6 + $0x38] sm:$0xf] %vm3330, %v3210
  %3338 = vst.msk [vmem:[%s6 + $0x40] sm:$0xff] %vm3328, %v3230
  %3339 = vst.msk [vmem:[%s6 + $0x48] sm:$0xf] %vm3330, %v3235
  %3340 = vst.msk [vmem:[%s6 + $0x50] sm:$0xff] %vm3328, %v3240
  %3341 = vst.msk [vmem:[%s6 + $0x58] sm:$0xf] %vm3330, %v3245
  %3342 = vst.msk [vmem:[%s6 + $0x60] sm:$0xff] %vm3328, %v3250
  %3343 = vst.msk [vmem:[%s6 + $0x68] sm:$0xf] %vm3330, %v3255
  %3344 = vst.msk [vmem:[%s6 + $0x70] sm:$0xff] %vm3328, %v3260
  %3345 = vst.msk [vmem:[%s6 + $0x78] sm:$0xf] %vm3330, %v3265
  %3346 = vst.msk [vmem:[%s6 + $0x80] sm:$0xff] %vm3328, %v3270
  %3347 = vst.msk [vmem:[%s6 + $0x88] sm:$0xf] %vm3330, %v3275
  %3348 = vst.msk [vmem:[%s6 + $0x90] sm:$0xff] %vm3328, %v3280
  %3349 = vst.msk [vmem:[%s6 + $0x98] sm:$0xf] %vm3330, %v3285
  %3350 = vst.msk [vmem:[%s6 + $0xa0] sm:$0xff] %vm3328, %v3290
  %3351 = vst.msk [vmem:[%s6 + $0xa8] sm:$0xf] %vm3330, %v3295
  %3352 = vst.msk [vmem:[%s6 + $0xb0] sm:$0xff] %vm3328, %v3300
  %3353 = vst.msk [vmem:[%s6 + $0xb8] sm:$0xf] %vm3330, %v3305
  %3354 = vst.msk [vmem:[%s6 + $0xc0] sm:$0xff] %vm3328, %v3320
  %3355 = vst.msk [vmem:[%s6 + $0xc8] sm:$0xf] %vm3330, 0.0
  %3356 = vst.msk [vmem:[%s6 + $0xd0] sm:$0xff] %vm3328, %v3321
  %3357 = vst.msk [vmem:[%s6 + $0xd8] sm:$0xf] %vm3330, 0.0
  %3358 = vst.msk [vmem:[%s6 + $0xe0] sm:$0xff] %vm3328, %v3322
  %3359 = vst.msk [vmem:[%s6 + $0xe8] sm:$0xf] %vm3330, 0.0
  %3360 = vst.msk [vmem:[%s6 + $0xf0] sm:$0xff] %vm3328, %v3323
  %3361 = vst.msk [vmem:[%s6 + $0xf8] sm:$0xf] %vm3330, 0.0
  %3362 = vst.msk [vmem:[%s6 + $0x100] sm:$0xff] %vm3328, %v3324
  %3363 = vst.msk [vmem:[%s6 + $0x108] sm:$0xf] %vm3330, 0.0
  %3364 = vst.msk [vmem:[%s6 + $0x110] sm:$0xff] %vm3328, %v3325
  %3365 = vst.msk [vmem:[%s6 + $0x118] sm:$0xf] %vm3330, 0.0
  %3366 = vst.msk [vmem:[%s6 + $0x120] sm:$0xff] %vm3328, %v3326
  %3367 = vst.msk [vmem:[%s6 + $0x128] sm:$0xf] %vm3330, 0.0
  %3368 = vst.msk [vmem:[%s6 + $0x130] sm:$0xff] %vm3328, %v3327
  %3369 = vst.msk [vmem:[%s6 + $0x138] sm:$0xf] %vm3330, 0.0
  %3370 = vst.msk [vmem:[%s6 + $0x140] sm:$0xff] %vm3328, 0.0
  %3371 = vst.msk [vmem:[%s6 + $0x148] sm:$0xf] %vm3330, %v3311
  %3372 = vst.msk [vmem:[%s6 + $0x150] sm:$0xff] %vm3328, 0.0
  %3373 = vst.msk [vmem:[%s6 + $0x158] sm:$0xf] %vm3330, %v3312
  %3374 = vst.msk [vmem:[%s6 + $0x160] sm:$0xff] %vm3328, 0.0
  %3375 = vst.msk [vmem:[%s6 + $0x168] sm:$0xf] %vm3330, %v3313
  %3376 = vst.msk [vmem:[%s6 + $0x170] sm:$0xff] %vm3328, 0.0
  %3377 = vst.msk [vmem:[%s6 + $0x178] sm:$0xf] %vm3330, %v3314
  // Predicated region
  $region26: #{tpu_custom_call.1} parent=0 // pred_check
    _
  $region27: #{tpu_custom_call.1} parent=0 // pred_check_branch
    %3379 = sbr.rel (0) target = $region29
  $region28: #{tpu_custom_call.1} parent=0 // pred_region
    _
  $region29: #{tpu_custom_call.1} parent=0 // pred_fallthru
    _
  // Predicated region
  $region30: #{tpu_custom_call.1} parent=0 // pred_check
    _
  $region31: #{tpu_custom_call.1} parent=0 // pred_check_branch
    %3381 = sbr.rel (0) target = $region33
  $region32: #{tpu_custom_call.1} parent=0 // pred_region
    _
  $region33: #{tpu_custom_call.1} parent=0 // pred_fallthru
    _

</llo_original>
